<compile_context>
chip_gen: v7x
topology: tpu7x:2x2x1
jax: 0.10.0
libtpu: 0.0.40
codegen_flags: <defaults>
</compile_context>

<pallas_src>
import jax
import jax.numpy as jnp
from jax.experimental import pallas as pl
from jax.experimental.pallas import tpu as pltpu

# ---------------- config (small synthetic CLIP ViT) ----------------
B = 2                    # batch
C = 3                    # image channels
IMG = 16                 # image height/width
PATCH = 4                # patch size
GRID = IMG // PATCH      # 4
N_PATCH = GRID * GRID    # 16
SEQ = N_PATCH + 1        # 17 (CLS + patches)
SP = 24                  # SEQ padded to a multiple of 8 (sublane-aligned)
WIDTH = 32               # transformer width
HEADS = 4
HEAD_DIM = WIDTH // HEADS  # 8
MLP = WIDTH * 4            # 128
LAYERS = 2
OUT_DIM = 16               # CLIP visual projection dim
CPP = C * PATCH * PATCH    # 48
OUT_ROWS = 8               # sublane-aligned output slab rows
OUT_LANES = 128            # lane-dense output slab width
EPS = 1e-5                 # nn.LayerNorm default eps
BF16 = jnp.bfloat16
F32 = jnp.float32
ELEMENTWISE_DTYPE = F32    # keep f32 (v5e-safe); bf16 is an option on v6e/v7x


# ---------------- in-kernel helpers ----------------
def _layer_norm(x, g, b):
    mu = jnp.mean(x, axis=-1, keepdims=True)
    xc = x - mu
    var = jnp.mean(xc * xc, axis=-1, keepdims=True)
    return xc * jax.lax.rsqrt(var + EPS) * g + b


# ---------------- fused encoder kernel (one image per grid step) ----------------
def encoder_kernel(patches_ref, w_patch_ref, add_emb_ref, attn_bias_ref,
                   ln_pre_g_ref, ln_pre_b_ref,
                   ln1_g_ref, ln1_b_ref, wqkv_ref, bqkv_ref, wout_ref, bout_ref,
                   ln2_g_ref, ln2_b_ref, wfc_ref, bfc_ref, wproj_ref, bproj_ref,
                   ln_post_g_ref, ln_post_b_ref, w_head_ref,
                   o_ref):
    # ---- conv1-as-matmul patch embed + class/pos embed + ln_pre ----
    x = jnp.dot(patches_ref[...], w_patch_ref[...],
                preferred_element_type=jnp.float32) + add_emb_ref[...]
    x = _layer_norm(x, ln_pre_g_ref[...], ln_pre_b_ref[...])      # (SP, WIDTH) f32
    key_bias = attn_bias_ref[...]                                  # (1, SP): 0 / -1e30

    # ---- all transformer layers, weights resident in VMEM ----
    for l in range(LAYERS):
        # attention branch: x + out_proj(MHA(ln_1(x)))
        h = _layer_norm(x, ln1_g_ref[l], ln1_b_ref[l]).astype(BF16)
        # single full-width QKV matmul; q columns/bias pre-scaled by 1/sqrt(Dh)
        qkv = jnp.dot(h, wqkv_ref[l],
                      preferred_element_type=jnp.float32) + bqkv_ref[l]   # (SP, 3W) f32

        # per-head QK^T, stacked along sublanes for one batched softmax
        scores = []
        for hh in range(HEADS):
            q_h = qkv[:, hh * HEAD_DIM:(hh + 1) * HEAD_DIM].astype(BF16)
            k_h = qkv[:, WIDTH + hh * HEAD_DIM:WIDTH + (hh + 1) * HEAD_DIM].astype(BF16)
            scores.append(jax.lax.dot_general(
                q_h, k_h, (((1,), (1,)), ((), ())),
                preferred_element_type=jnp.float32))               # (SP, SP)
        s = jnp.concatenate(scores, axis=0)                        # (HEADS*SP, SP)
        s = s + key_bias                                           # mask padded keys
        s = s - jnp.max(s, axis=-1, keepdims=True)
        p = jnp.exp(s)
        p = p * pl.reciprocal(jnp.sum(p, axis=-1, keepdims=True), approx=True)

        # per-head AV, lane-concat heads -> single K=32 out-projection
        av = []
        for hh in range(HEADS):
            p_h = p[hh * SP:(hh + 1) * SP, :].astype(BF16)                     # (SP, SP)
            v_h = qkv[:, 2 * WIDTH + hh * HEAD_DIM:
                      2 * WIDTH + (hh + 1) * HEAD_DIM].astype(BF16)            # (SP, Dh)
            av.append(jnp.dot(p_h, v_h, preferred_element_type=jnp.float32))
        attn = jnp.concatenate(av, axis=-1)                        # (SP, WIDTH)
        x = x + jnp.dot(attn.astype(BF16), wout_ref[l],
                        preferred_element_type=jnp.float32) + bout_ref[l]

        # MLP branch: x + c_proj(QuickGELU(c_fc(ln_2(x))))
        h2 = _layer_norm(x, ln2_g_ref[l], ln2_b_ref[l]).astype(BF16)
        m = jnp.dot(h2, wfc_ref[l],
                    preferred_element_type=jnp.float32) + bfc_ref[l]
        m = m.astype(ELEMENTWISE_DTYPE)
        m = m * jax.nn.sigmoid(1.702 * m)                          # QuickGELU
        x = x + jnp.dot(m.astype(BF16), wproj_ref[l],
                        preferred_element_type=jnp.float32) + bproj_ref[l]

    # ---- head: ln_post(CLS) @ proj, emitted as a lane-dense (8,128) slab ----
    # rows 0..7 of x are CLS + first 7 patch tokens; only row 0 is read back.
    cls8 = _layer_norm(x[0:8, :], ln_post_g_ref[...], ln_post_b_ref[...])
    o_ref[...] = jnp.dot(cls8.astype(BF16), w_head_ref[...],
                         preferred_element_type=jnp.float32)       # (8, 128) f32


# ---------------- BlockSpec helpers ----------------
def _full_spec(shape):
    nd = len(shape)
    return pl.BlockSpec(shape, lambda b, _nd=nd: (0,) * _nd)


# ---------------- full forward ----------------
def encode_image(images, params):
    # conv1(kernel=stride=PATCH) == per-patch flatten in (c,u,v) order + matmul.
    p = images.reshape(B, C, GRID, PATCH, GRID, PATCH)
    p = p.transpose(0, 2, 4, 1, 3, 5).reshape(B, N_PATCH, CPP)
    # token layout: row 0 = CLS (zero patch), rows 1..N_PATCH = patches,
    # rows SEQ..SP-1 = padding (zeros, masked out of attention).
    patches = jnp.zeros((B, SP, CPP), F32).at[:, 1:1 + N_PATCH, :].set(p).astype(BF16)

    w_patch = params['conv1'].reshape(WIDTH, CPP).T.astype(BF16)

    # class token + positional embedding, padded to SP rows.
    add_emb = jnp.zeros((SP, WIDTH), F32).at[:SEQ].set(params['pos_embedding'])
    add_emb = add_emb.at[0].add(params['class_embedding'])

    # additive softmax key bias: 0 for valid keys, -1e30 for padded keys.
    attn_bias = jnp.where(jnp.arange(SP)[None, :] < SEQ, 0.0, -1e30).astype(F32)  # (1, SP)

    blocks = params['blocks']

    def stack(fn):
        return jnp.stack([fn(bp) for bp in blocks], axis=0)

    # fold 1/sqrt(head_dim) into the q columns of the QKV weight/bias.
    scale = 1.0 / (HEAD_DIM ** 0.5)
    qscale = jnp.concatenate([jnp.full((WIDTH,), scale, F32),
                              jnp.ones((2 * WIDTH,), F32)])         # (3W,)

    ln1_g = stack(lambda bp: bp['ln1_g'][None, :])
    ln1_b = stack(lambda bp: bp['ln1_b'][None, :])
    wqkv = stack(lambda bp: bp['in_proj_w'].T * qscale[None, :]).astype(BF16)   # (L,W,3W)
    bqkv = stack(lambda bp: (bp['in_proj_b'] * qscale)[None, :])                # (L,1,3W)
    wout = stack(lambda bp: bp['out_proj_w'].T).astype(BF16)                    # (L,W,W)
    bout = stack(lambda bp: bp['out_proj_b'][None, :])
    ln2_g = stack(lambda bp: bp['ln2_g'][None, :])
    ln2_b = stack(lambda bp: bp['ln2_b'][None, :])
    wfc = stack(lambda bp: bp['c_fc_w'].T).astype(BF16)                         # (L,W,MLP)
    bfc = stack(lambda bp: bp['c_fc_b'][None, :])
    wproj = stack(lambda bp: bp['c_proj_w'].T).astype(BF16)                     # (L,MLP,W)
    bproj = stack(lambda bp: bp['c_proj_b'][None, :])

    # visual projection zero-padded to a full 128-lane slab (lane-dense store).
    w_head = jnp.zeros((WIDTH, OUT_LANES), F32).at[:, :OUT_DIM].set(
        params['proj']).astype(BF16)

    args = (patches, w_patch, add_emb, attn_bias,
            params['ln_pre_g'][None, :], params['ln_pre_b'][None, :],
            ln1_g, ln1_b, wqkv, bqkv, wout, bout,
            ln2_g, ln2_b, wfc, bfc, wproj, bproj,
            params['ln_post_g'][None, :], params['ln_post_b'][None, :],
            w_head)

    in_specs = [
        pl.BlockSpec((None, SP, CPP), lambda b: (b, 0, 0)),   # per-image patches
        _full_spec((CPP, WIDTH)),                             # conv1 weight
        _full_spec((SP, WIDTH)),                              # class + positional emb
        _full_spec((1, SP)),                                  # softmax pad-key bias
        _full_spec((1, WIDTH)), _full_spec((1, WIDTH)),       # ln_pre
        _full_spec((LAYERS, 1, WIDTH)), _full_spec((LAYERS, 1, WIDTH)),   # ln_1
        _full_spec((LAYERS, WIDTH, 3 * WIDTH)),               # attn in_proj weight
        _full_spec((LAYERS, 1, 3 * WIDTH)),                   # attn in_proj bias
        _full_spec((LAYERS, WIDTH, WIDTH)),                   # attn out_proj weight
        _full_spec((LAYERS, 1, WIDTH)),                       # attn out_proj bias
        _full_spec((LAYERS, 1, WIDTH)), _full_spec((LAYERS, 1, WIDTH)),   # ln_2
        _full_spec((LAYERS, WIDTH, MLP)),                     # c_fc weight
        _full_spec((LAYERS, 1, MLP)),                         # c_fc bias
        _full_spec((LAYERS, MLP, WIDTH)),                     # c_proj weight
        _full_spec((LAYERS, 1, WIDTH)),                       # c_proj bias
        _full_spec((1, WIDTH)), _full_spec((1, WIDTH)),       # ln_post
        _full_spec((WIDTH, OUT_LANES)),                       # padded visual projection
    ]

    out = pl.pallas_call(
        encoder_kernel,
        out_shape=jax.ShapeDtypeStruct((B, OUT_ROWS, OUT_LANES), jnp.float32),
        grid=(B,),
        in_specs=in_specs,
        out_specs=pl.BlockSpec((None, OUT_ROWS, OUT_LANES), lambda b: (b, 0, 0)),
        compiler_params=pltpu.CompilerParams(
            dimension_semantics=("parallel",)),
    )(*args)
    return out[:, 0, :OUT_DIM]


# ---------------- deterministic parameter init (matches random_init branch) ----------------
def init_params(key):
    attn_std = WIDTH ** -0.5
    proj_std = (WIDTH ** -0.5) * ((2 * LAYERS) ** -0.5)
    fc_std = (2 * WIDTH) ** -0.5
    keys = iter(jax.random.split(key, 8 + 8 * LAYERS))

    def nrm(shape, std):
        return std * jax.random.normal(next(keys), shape, F32)

    params = dict(
        conv1=nrm((WIDTH, C, PATCH, PATCH), 0.02),
        class_embedding=nrm((WIDTH,), 0.02),
        pos_embedding=nrm((SEQ, WIDTH), 0.01),
        ln_pre_g=jnp.ones((WIDTH,), F32),
        ln_pre_b=jnp.zeros((WIDTH,), F32),
        ln_post_g=jnp.ones((WIDTH,), F32),
        ln_post_b=jnp.zeros((WIDTH,), F32),
        proj=nrm((WIDTH, OUT_DIM), 0.01),
        blocks=[],
    )
    for _ in range(LAYERS):
        params['blocks'].append(dict(
            ln1_g=jnp.ones((WIDTH,), F32),
            ln1_b=jnp.zeros((WIDTH,), F32),
            in_proj_w=nrm((3 * WIDTH, WIDTH), attn_std),
            in_proj_b=nrm((3 * WIDTH,), attn_std),
            out_proj_w=nrm((WIDTH, WIDTH), proj_std),
            out_proj_b=nrm((WIDTH,), proj_std),
            ln2_g=jnp.ones((WIDTH,), F32),
            ln2_b=jnp.zeros((WIDTH,), F32),
            c_fc_w=nrm((MLP, WIDTH), fc_std),
            c_fc_b=nrm((MLP,), fc_std),
            c_proj_w=nrm((WIDTH, MLP), proj_std),
            c_proj_b=nrm((WIDTH,), proj_std),
        ))
    return params


# TODO(synk): open_clip checkpoint loading / train_preprocess / val_preprocess have
# no kernel equivalent; only the encode_image compute path is implemented.

if __name__ == "__main__":
    key = jax.random.PRNGKey(0)
    k_img, k_par = jax.random.split(key)
    images = jax.random.normal(k_img, (B, C, IMG, IMG), jnp.float32)  # NCHW like PyTorch
    params = init_params(k_par)

    fwd = jax.jit(encode_image)
    out = jax.block_until_ready(fwd(images, params))
    assert out.shape == (B, OUT_DIM) and out.dtype == jnp.float32
    print("KERNEL_OK")
</pallas_src>

<mosaic_0001>
module attributes {stable_mosaic.version = 11 : i64} {
  func.func @encoder_kernel(%arg0: i32, %arg1: memref<1x24x48xbf16, #tpu.memory_space<vmem>>, %arg2: memref<48x32xbf16, #tpu.memory_space<vmem>>, %arg3: memref<24x32xf32, #tpu.memory_space<vmem>>, %arg4: memref<1x24xf32, #tpu.memory_space<vmem>>, %arg5: memref<1x32xf32, #tpu.memory_space<vmem>>, %arg6: memref<1x32xf32, #tpu.memory_space<vmem>>, %arg7: memref<2x1x32xf32, #tpu.memory_space<vmem>>, %arg8: memref<2x1x32xf32, #tpu.memory_space<vmem>>, %arg9: memref<2x32x96xbf16, #tpu.memory_space<vmem>>, %arg10: memref<2x1x96xf32, #tpu.memory_space<vmem>>, %arg11: memref<2x32x32xbf16, #tpu.memory_space<vmem>>, %arg12: memref<2x1x32xf32, #tpu.memory_space<vmem>>, %arg13: memref<2x1x32xf32, #tpu.memory_space<vmem>>, %arg14: memref<2x1x32xf32, #tpu.memory_space<vmem>>, %arg15: memref<2x32x128xbf16, #tpu.memory_space<vmem>>, %arg16: memref<2x1x128xf32, #tpu.memory_space<vmem>>, %arg17: memref<2x128x32xbf16, #tpu.memory_space<vmem>>, %arg18: memref<2x1x32xf32, #tpu.memory_space<vmem>>, %arg19: memref<1x32xf32, #tpu.memory_space<vmem>>, %arg20: memref<1x32xf32, #tpu.memory_space<vmem>>, %arg21: memref<32x128xbf16, #tpu.memory_space<vmem>>, %arg22: memref<1x8x128xf32, #tpu.memory_space<vmem>>) attributes {dimension_semantics = [#tpu.dimension_semantics<parallel>], iteration_bounds = array<i64: 2>, scalar_prefetch = 0 : i64, scratch_operands = 0 : i64, tpu.core_type = #tpu.core_type<tc>, window_params = [{transform_indices = @transform_0, window_bounds = array<i64: 1, 24, 48>}, {pipeline_mode = #tpu.pipeline_mode<synchronous>, transform_indices = @transform_1, window_bounds = array<i64: 48, 32>}, {pipeline_mode = #tpu.pipeline_mode<synchronous>, transform_indices = @transform_2, window_bounds = array<i64: 24, 32>}, {pipeline_mode = #tpu.pipeline_mode<synchronous>, transform_indices = @transform_3, window_bounds = array<i64: 1, 24>}, {pipeline_mode = #tpu.pipeline_mode<synchronous>, transform_indices = @transform_4, window_bounds = array<i64: 1, 32>}, {pipeline_mode = #tpu.pipeline_mode<synchronous>, transform_indices = @transform_5, window_bounds = array<i64: 1, 32>}, {pipeline_mode = #tpu.pipeline_mode<synchronous>, transform_indices = @transform_6, window_bounds = array<i64: 2, 1, 32>}, {pipeline_mode = #tpu.pipeline_mode<synchronous>, transform_indices = @transform_7, window_bounds = array<i64: 2, 1, 32>}, {pipeline_mode = #tpu.pipeline_mode<synchronous>, transform_indices = @transform_8, window_bounds = array<i64: 2, 32, 96>}, {pipeline_mode = #tpu.pipeline_mode<synchronous>, transform_indices = @transform_9, window_bounds = array<i64: 2, 1, 96>}, {pipeline_mode = #tpu.pipeline_mode<synchronous>, transform_indices = @transform_10, window_bounds = array<i64: 2, 32, 32>}, {pipeline_mode = #tpu.pipeline_mode<synchronous>, transform_indices = @transform_11, window_bounds = array<i64: 2, 1, 32>}, {pipeline_mode = #tpu.pipeline_mode<synchronous>, transform_indices = @transform_12, window_bounds = array<i64: 2, 1, 32>}, {pipeline_mode = #tpu.pipeline_mode<synchronous>, transform_indices = @transform_13, window_bounds = array<i64: 2, 1, 32>}, {pipeline_mode = #tpu.pipeline_mode<synchronous>, transform_indices = @transform_14, window_bounds = array<i64: 2, 32, 128>}, {pipeline_mode = #tpu.pipeline_mode<synchronous>, transform_indices = @transform_15, window_bounds = array<i64: 2, 1, 128>}, {pipeline_mode = #tpu.pipeline_mode<synchronous>, transform_indices = @transform_16, window_bounds = array<i64: 2, 128, 32>}, {pipeline_mode = #tpu.pipeline_mode<synchronous>, transform_indices = @transform_17, window_bounds = array<i64: 2, 1, 32>}, {pipeline_mode = #tpu.pipeline_mode<synchronous>, transform_indices = @transform_18, window_bounds = array<i64: 1, 32>}, {pipeline_mode = #tpu.pipeline_mode<synchronous>, transform_indices = @transform_19, window_bounds = array<i64: 1, 32>}, {pipeline_mode = #tpu.pipeline_mode<synchronous>, transform_indices = @transform_20, window_bounds = array<i64: 32, 128>}, {transform_indices = @transform_21, window_bounds = array<i64: 1, 8, 128>}]} {
    %c0 = arith.constant 0 : index
    %c0_0 = arith.constant 0 : index
    %c0_1 = arith.constant 0 : index
    %0 = vector.load %arg1[%c0, %c0_0, %c0_1] : memref<1x24x48xbf16, #tpu.memory_space<vmem>>, vector<1x24x48xbf16>
    %1 = vector.shape_cast %0 : vector<1x24x48xbf16> to vector<24x48xbf16>
    %c0_2 = arith.constant 0 : index
    %c0_3 = arith.constant 0 : index
    %2 = vector.load %arg2[%c0_2, %c0_3] : memref<48x32xbf16, #tpu.memory_space<vmem>>, vector<48x32xbf16>
    %cst = arith.constant dense<0.000000e+00> : vector<24x32xf32>
    %3 = tpu.matmul %1, %2, %cst {dimension_numbers = #tpu.dot_dimension_numbers<[1], [0], [0], [1], [0, 0, 1, 1], [], []>} : vector<24x48xbf16>, vector<48x32xbf16>, vector<24x32xf32> -> vector<24x32xf32>
    %c0_4 = arith.constant 0 : index
    %c0_5 = arith.constant 0 : index
    %4 = vector.load %arg3[%c0_4, %c0_5] : memref<24x32xf32, #tpu.memory_space<vmem>>, vector<24x32xf32>
    %5 = arith.addf %3, %4 : vector<24x32xf32>
    %c0_6 = arith.constant 0 : index
    %c0_7 = arith.constant 0 : index
    %6 = vector.load %arg5[%c0_6, %c0_7] : memref<1x32xf32, #tpu.memory_space<vmem>>, vector<1x32xf32>
    %c0_8 = arith.constant 0 : index
    %c0_9 = arith.constant 0 : index
    %7 = vector.load %arg6[%c0_8, %c0_9] : memref<1x32xf32, #tpu.memory_space<vmem>>, vector<1x32xf32>
    %cst_10 = arith.constant dense<0.000000e+00> : vector<24xf32>
    %8 = vector.multi_reduction <add>, %5, %cst_10 [1] : vector<24x32xf32> to vector<24xf32>
    %9 = vector.shape_cast %8 : vector<24xf32> to vector<24x1xf32>
    %cst_11 = arith.constant 3.200000e+01 : f32
    %10 = vector.broadcast %cst_11 : f32 to vector<24x1xf32>
    %11 = arith.divf %9, %10 : vector<24x1xf32>
    %12 = vector.broadcast %11 : vector<24x1xf32> to vector<24x32xf32>
    %13 = arith.subf %5, %12 : vector<24x32xf32>
    %14 = arith.mulf %13, %13 : vector<24x32xf32>
    %cst_12 = arith.constant dense<0.000000e+00> : vector<24xf32>
    %15 = vector.multi_reduction <add>, %14, %cst_12 [1] : vector<24x32xf32> to vector<24xf32>
    %16 = vector.shape_cast %15 : vector<24xf32> to vector<24x1xf32>
    %cst_13 = arith.constant 3.200000e+01 : f32
    %17 = vector.broadcast %cst_13 : f32 to vector<24x1xf32>
    %18 = arith.divf %16, %17 : vector<24x1xf32>
    %cst_14 = arith.constant 9.99999974E-6 : f32
    %19 = vector.broadcast %cst_14 : f32 to vector<24x1xf32>
    %20 = arith.addf %18, %19 : vector<24x1xf32>
    %21 = math.rsqrt %20 : vector<24x1xf32>
    %22 = vector.broadcast %21 : vector<24x1xf32> to vector<24x32xf32>
    %23 = arith.mulf %13, %22 : vector<24x32xf32>
    %24 = vector.broadcast %6 : vector<1x32xf32> to vector<24x32xf32>
    %25 = arith.mulf %23, %24 : vector<24x32xf32>
    %26 = vector.broadcast %7 : vector<1x32xf32> to vector<24x32xf32>
    %27 = arith.addf %25, %26 : vector<24x32xf32>
    %c0_15 = arith.constant 0 : index
    %c0_16 = arith.constant 0 : index
    %28 = vector.load %arg4[%c0_15, %c0_16] : memref<1x24xf32, #tpu.memory_space<vmem>>, vector<1x24xf32>
    %c0_17 = arith.constant 0 : index
    %c0_18 = arith.constant 0 : index
    %c0_19 = arith.constant 0 : index
    %29 = vector.load %arg7[%c0_17, %c0_18, %c0_19] : memref<2x1x32xf32, #tpu.memory_space<vmem>>, vector<1x1x32xf32>
    %30 = vector.shape_cast %29 : vector<1x1x32xf32> to vector<1x32xf32>
    %c0_20 = arith.constant 0 : index
    %c0_21 = arith.constant 0 : index
    %c0_22 = arith.constant 0 : index
    %31 = vector.load %arg8[%c0_20, %c0_21, %c0_22] : memref<2x1x32xf32, #tpu.memory_space<vmem>>, vector<1x1x32xf32>
    %32 = vector.shape_cast %31 : vector<1x1x32xf32> to vector<1x32xf32>
    %cst_23 = arith.constant dense<0.000000e+00> : vector<24xf32>
    %33 = vector.multi_reduction <add>, %27, %cst_23 [1] : vector<24x32xf32> to vector<24xf32>
    %34 = vector.shape_cast %33 : vector<24xf32> to vector<24x1xf32>
    %cst_24 = arith.constant 3.200000e+01 : f32
    %35 = vector.broadcast %cst_24 : f32 to vector<24x1xf32>
    %36 = arith.divf %34, %35 : vector<24x1xf32>
    %37 = vector.broadcast %36 : vector<24x1xf32> to vector<24x32xf32>
    %38 = arith.subf %27, %37 : vector<24x32xf32>
    %39 = arith.mulf %38, %38 : vector<24x32xf32>
    %cst_25 = arith.constant dense<0.000000e+00> : vector<24xf32>
    %40 = vector.multi_reduction <add>, %39, %cst_25 [1] : vector<24x32xf32> to vector<24xf32>
    %41 = vector.shape_cast %40 : vector<24xf32> to vector<24x1xf32>
    %cst_26 = arith.constant 3.200000e+01 : f32
    %42 = vector.broadcast %cst_26 : f32 to vector<24x1xf32>
    %43 = arith.divf %41, %42 : vector<24x1xf32>
    %cst_27 = arith.constant 9.99999974E-6 : f32
    %44 = vector.broadcast %cst_27 : f32 to vector<24x1xf32>
    %45 = arith.addf %43, %44 : vector<24x1xf32>
    %46 = math.rsqrt %45 : vector<24x1xf32>
    %47 = vector.broadcast %46 : vector<24x1xf32> to vector<24x32xf32>
    %48 = arith.mulf %38, %47 : vector<24x32xf32>
    %49 = vector.broadcast %30 : vector<1x32xf32> to vector<24x32xf32>
    %50 = arith.mulf %48, %49 : vector<24x32xf32>
    %51 = vector.broadcast %32 : vector<1x32xf32> to vector<24x32xf32>
    %52 = arith.addf %50, %51 : vector<24x32xf32>
    %53 = arith.truncf %52 : vector<24x32xf32> to vector<24x32xbf16>
    %c0_28 = arith.constant 0 : index
    %c0_29 = arith.constant 0 : index
    %c0_30 = arith.constant 0 : index
    %54 = vector.load %arg9[%c0_28, %c0_29, %c0_30] : memref<2x32x96xbf16, #tpu.memory_space<vmem>>, vector<1x32x96xbf16>
    %55 = vector.shape_cast %54 : vector<1x32x96xbf16> to vector<32x96xbf16>
    %cst_31 = arith.constant dense<0.000000e+00> : vector<24x96xf32>
    %56 = tpu.matmul %53, %55, %cst_31 {dimension_numbers = #tpu.dot_dimension_numbers<[1], [0], [0], [1], [0, 0, 1, 1], [], []>} : vector<24x32xbf16>, vector<32x96xbf16>, vector<24x96xf32> -> vector<24x96xf32>
    %c0_32 = arith.constant 0 : index
    %c0_33 = arith.constant 0 : index
    %c0_34 = arith.constant 0 : index
    %57 = vector.load %arg10[%c0_32, %c0_33, %c0_34] : memref<2x1x96xf32, #tpu.memory_space<vmem>>, vector<1x1x96xf32>
    %58 = vector.shape_cast %57 : vector<1x1x96xf32> to vector<1x96xf32>
    %59 = vector.broadcast %58 : vector<1x96xf32> to vector<24x96xf32>
    %60 = arith.addf %56, %59 : vector<24x96xf32>
    %61 = vector.extract_strided_slice %60 {offsets = [0, 0], sizes = [24, 8], strides = [1, 1]} : vector<24x96xf32> to vector<24x8xf32>
    %62 = arith.truncf %61 : vector<24x8xf32> to vector<24x8xbf16>
    %63 = vector.extract_strided_slice %60 {offsets = [0, 32], sizes = [24, 8], strides = [1, 1]} : vector<24x96xf32> to vector<24x8xf32>
    %64 = arith.truncf %63 : vector<24x8xf32> to vector<24x8xbf16>
    %cst_35 = arith.constant dense<0.000000e+00> : vector<24x24xf32>
    %65 = tpu.matmul %62, %64, %cst_35 {dimension_numbers = #tpu.dot_dimension_numbers<[1], [1], [0], [0], [0, 0, 1, 0], [], []>} : vector<24x8xbf16>, vector<24x8xbf16>, vector<24x24xf32> -> vector<24x24xf32>
    %66 = vector.extract_strided_slice %60 {offsets = [0, 8], sizes = [24, 8], strides = [1, 1]} : vector<24x96xf32> to vector<24x8xf32>
    %67 = arith.truncf %66 : vector<24x8xf32> to vector<24x8xbf16>
    %68 = vector.extract_strided_slice %60 {offsets = [0, 40], sizes = [24, 8], strides = [1, 1]} : vector<24x96xf32> to vector<24x8xf32>
    %69 = arith.truncf %68 : vector<24x8xf32> to vector<24x8xbf16>
    %cst_36 = arith.constant dense<0.000000e+00> : vector<24x24xf32>
    %70 = tpu.matmul %67, %69, %cst_36 {dimension_numbers = #tpu.dot_dimension_numbers<[1], [1], [0], [0], [0, 0, 1, 0], [], []>} : vector<24x8xbf16>, vector<24x8xbf16>, vector<24x24xf32> -> vector<24x24xf32>
    %71 = vector.extract_strided_slice %60 {offsets = [0, 16], sizes = [24, 8], strides = [1, 1]} : vector<24x96xf32> to vector<24x8xf32>
    %72 = arith.truncf %71 : vector<24x8xf32> to vector<24x8xbf16>
    %73 = vector.extract_strided_slice %60 {offsets = [0, 48], sizes = [24, 8], strides = [1, 1]} : vector<24x96xf32> to vector<24x8xf32>
    %74 = arith.truncf %73 : vector<24x8xf32> to vector<24x8xbf16>
    %cst_37 = arith.constant dense<0.000000e+00> : vector<24x24xf32>
    %75 = tpu.matmul %72, %74, %cst_37 {dimension_numbers = #tpu.dot_dimension_numbers<[1], [1], [0], [0], [0, 0, 1, 0], [], []>} : vector<24x8xbf16>, vector<24x8xbf16>, vector<24x24xf32> -> vector<24x24xf32>
    %76 = vector.extract_strided_slice %60 {offsets = [0, 24], sizes = [24, 8], strides = [1, 1]} : vector<24x96xf32> to vector<24x8xf32>
    %77 = arith.truncf %76 : vector<24x8xf32> to vector<24x8xbf16>
    %78 = vector.extract_strided_slice %60 {offsets = [0, 56], sizes = [24, 8], strides = [1, 1]} : vector<24x96xf32> to vector<24x8xf32>
    %79 = arith.truncf %78 : vector<24x8xf32> to vector<24x8xbf16>
    %cst_38 = arith.constant dense<0.000000e+00> : vector<24x24xf32>
    %80 = tpu.matmul %77, %79, %cst_38 {dimension_numbers = #tpu.dot_dimension_numbers<[1], [1], [0], [0], [0, 0, 1, 0], [], []>} : vector<24x8xbf16>, vector<24x8xbf16>, vector<24x24xf32> -> vector<24x24xf32>
    %81 = tpu.concatenate %65, %70, %75, %80 in 0 : vector<24x24xf32>, vector<24x24xf32>, vector<24x24xf32>, vector<24x24xf32> -> vector<96x24xf32>
    %82 = vector.broadcast %28 : vector<1x24xf32> to vector<96x24xf32>
    %83 = arith.addf %81, %82 : vector<96x24xf32>
    %cst_39 = arith.constant dense<0xFF800000> : vector<96xf32>
    %84 = vector.multi_reduction <maximumf>, %83, %cst_39 [1] : vector<96x24xf32> to vector<96xf32>
    %85 = vector.shape_cast %84 : vector<96xf32> to vector<96x1xf32>
    %86 = vector.broadcast %85 : vector<96x1xf32> to vector<96x24xf32>
    %87 = arith.subf %83, %86 : vector<96x24xf32>
    %88 = math.exp %87 : vector<96x24xf32>
    %cst_40 = arith.constant dense<0.000000e+00> : vector<96xf32>
    %89 = vector.multi_reduction <add>, %88, %cst_40 [1] : vector<96x24xf32> to vector<96xf32>
    %90 = vector.shape_cast %89 : vector<96xf32> to vector<96x1xf32>
    %91 = tpu.reciprocal %90 {approx = true} : vector<96x1xf32> -> vector<96x1xf32>
    %92 = vector.broadcast %91 : vector<96x1xf32> to vector<96x24xf32>
    %93 = arith.mulf %88, %92 : vector<96x24xf32>
    %94 = vector.extract_strided_slice %93 {offsets = [0, 0], sizes = [24, 24], strides = [1, 1]} : vector<96x24xf32> to vector<24x24xf32>
    %95 = arith.truncf %94 : vector<24x24xf32> to vector<24x24xbf16>
    %96 = vector.extract_strided_slice %60 {offsets = [0, 64], sizes = [24, 8], strides = [1, 1]} : vector<24x96xf32> to vector<24x8xf32>
    %97 = arith.truncf %96 : vector<24x8xf32> to vector<24x8xbf16>
    %cst_41 = arith.constant dense<0.000000e+00> : vector<24x8xf32>
    %98 = tpu.matmul %95, %97, %cst_41 {dimension_numbers = #tpu.dot_dimension_numbers<[1], [0], [0], [1], [0, 0, 1, 1], [], []>} : vector<24x24xbf16>, vector<24x8xbf16>, vector<24x8xf32> -> vector<24x8xf32>
    %99 = vector.extract_strided_slice %93 {offsets = [24, 0], sizes = [24, 24], strides = [1, 1]} : vector<96x24xf32> to vector<24x24xf32>
    %100 = arith.truncf %99 : vector<24x24xf32> to vector<24x24xbf16>
    %101 = vector.extract_strided_slice %60 {offsets = [0, 72], sizes = [24, 8], strides = [1, 1]} : vector<24x96xf32> to vector<24x8xf32>
    %102 = arith.truncf %101 : vector<24x8xf32> to vector<24x8xbf16>
    %cst_42 = arith.constant dense<0.000000e+00> : vector<24x8xf32>
    %103 = tpu.matmul %100, %102, %cst_42 {dimension_numbers = #tpu.dot_dimension_numbers<[1], [0], [0], [1], [0, 0, 1, 1], [], []>} : vector<24x24xbf16>, vector<24x8xbf16>, vector<24x8xf32> -> vector<24x8xf32>
    %104 = vector.extract_strided_slice %93 {offsets = [48, 0], sizes = [24, 24], strides = [1, 1]} : vector<96x24xf32> to vector<24x24xf32>
    %105 = arith.truncf %104 : vector<24x24xf32> to vector<24x24xbf16>
    %106 = vector.extract_strided_slice %60 {offsets = [0, 80], sizes = [24, 8], strides = [1, 1]} : vector<24x96xf32> to vector<24x8xf32>
    %107 = arith.truncf %106 : vector<24x8xf32> to vector<24x8xbf16>
    %cst_43 = arith.constant dense<0.000000e+00> : vector<24x8xf32>
    %108 = tpu.matmul %105, %107, %cst_43 {dimension_numbers = #tpu.dot_dimension_numbers<[1], [0], [0], [1], [0, 0, 1, 1], [], []>} : vector<24x24xbf16>, vector<24x8xbf16>, vector<24x8xf32> -> vector<24x8xf32>
    %109 = vector.extract_strided_slice %93 {offsets = [72, 0], sizes = [24, 24], strides = [1, 1]} : vector<96x24xf32> to vector<24x24xf32>
    %110 = arith.truncf %109 : vector<24x24xf32> to vector<24x24xbf16>
    %111 = vector.extract_strided_slice %60 {offsets = [0, 88], sizes = [24, 8], strides = [1, 1]} : vector<24x96xf32> to vector<24x8xf32>
    %112 = arith.truncf %111 : vector<24x8xf32> to vector<24x8xbf16>
    %cst_44 = arith.constant dense<0.000000e+00> : vector<24x8xf32>
    %113 = tpu.matmul %110, %112, %cst_44 {dimension_numbers = #tpu.dot_dimension_numbers<[1], [0], [0], [1], [0, 0, 1, 1], [], []>} : vector<24x24xbf16>, vector<24x8xbf16>, vector<24x8xf32> -> vector<24x8xf32>
    %114 = tpu.concatenate %98, %103, %108, %113 in 1 : vector<24x8xf32>, vector<24x8xf32>, vector<24x8xf32>, vector<24x8xf32> -> vector<24x32xf32>
    %115 = arith.truncf %114 : vector<24x32xf32> to vector<24x32xbf16>
    %c0_45 = arith.constant 0 : index
    %c0_46 = arith.constant 0 : index
    %c0_47 = arith.constant 0 : index
    %116 = vector.load %arg11[%c0_45, %c0_46, %c0_47] : memref<2x32x32xbf16, #tpu.memory_space<vmem>>, vector<1x32x32xbf16>
    %117 = vector.shape_cast %116 : vector<1x32x32xbf16> to vector<32x32xbf16>
    %cst_48 = arith.constant dense<0.000000e+00> : vector<24x32xf32>
    %118 = tpu.matmul %115, %117, %cst_48 {dimension_numbers = #tpu.dot_dimension_numbers<[1], [0], [0], [1], [0, 0, 1, 1], [], []>} : vector<24x32xbf16>, vector<32x32xbf16>, vector<24x32xf32> -> vector<24x32xf32>
    %119 = arith.addf %27, %118 : vector<24x32xf32>
    %c0_49 = arith.constant 0 : index
    %c0_50 = arith.constant 0 : index
    %c0_51 = arith.constant 0 : index
    %120 = vector.load %arg12[%c0_49, %c0_50, %c0_51] : memref<2x1x32xf32, #tpu.memory_space<vmem>>, vector<1x1x32xf32>
    %121 = vector.shape_cast %120 : vector<1x1x32xf32> to vector<1x32xf32>
    %122 = vector.broadcast %121 : vector<1x32xf32> to vector<24x32xf32>
    %123 = arith.addf %119, %122 : vector<24x32xf32>
    %c0_52 = arith.constant 0 : index
    %c0_53 = arith.constant 0 : index
    %c0_54 = arith.constant 0 : index
    %124 = vector.load %arg13[%c0_52, %c0_53, %c0_54] : memref<2x1x32xf32, #tpu.memory_space<vmem>>, vector<1x1x32xf32>
    %125 = vector.shape_cast %124 : vector<1x1x32xf32> to vector<1x32xf32>
    %c0_55 = arith.constant 0 : index
    %c0_56 = arith.constant 0 : index
    %c0_57 = arith.constant 0 : index
    %126 = vector.load %arg14[%c0_55, %c0_56, %c0_57] : memref<2x1x32xf32, #tpu.memory_space<vmem>>, vector<1x1x32xf32>
    %127 = vector.shape_cast %126 : vector<1x1x32xf32> to vector<1x32xf32>
    %cst_58 = arith.constant dense<0.000000e+00> : vector<24xf32>
    %128 = vector.multi_reduction <add>, %123, %cst_58 [1] : vector<24x32xf32> to vector<24xf32>
    %129 = vector.shape_cast %128 : vector<24xf32> to vector<24x1xf32>
    %cst_59 = arith.constant 3.200000e+01 : f32
    %130 = vector.broadcast %cst_59 : f32 to vector<24x1xf32>
    %131 = arith.divf %129, %130 : vector<24x1xf32>
    %132 = vector.broadcast %131 : vector<24x1xf32> to vector<24x32xf32>
    %133 = arith.subf %123, %132 : vector<24x32xf32>
    %134 = arith.mulf %133, %133 : vector<24x32xf32>
    %cst_60 = arith.constant dense<0.000000e+00> : vector<24xf32>
    %135 = vector.multi_reduction <add>, %134, %cst_60 [1] : vector<24x32xf32> to vector<24xf32>
    %136 = vector.shape_cast %135 : vector<24xf32> to vector<24x1xf32>
    %cst_61 = arith.constant 3.200000e+01 : f32
    %137 = vector.broadcast %cst_61 : f32 to vector<24x1xf32>
    %138 = arith.divf %136, %137 : vector<24x1xf32>
    %cst_62 = arith.constant 9.99999974E-6 : f32
    %139 = vector.broadcast %cst_62 : f32 to vector<24x1xf32>
    %140 = arith.addf %138, %139 : vector<24x1xf32>
    %141 = math.rsqrt %140 : vector<24x1xf32>
    %142 = vector.broadcast %141 : vector<24x1xf32> to vector<24x32xf32>
    %143 = arith.mulf %133, %142 : vector<24x32xf32>
    %144 = vector.broadcast %125 : vector<1x32xf32> to vector<24x32xf32>
    %145 = arith.mulf %143, %144 : vector<24x32xf32>
    %146 = vector.broadcast %127 : vector<1x32xf32> to vector<24x32xf32>
    %147 = arith.addf %145, %146 : vector<24x32xf32>
    %148 = arith.truncf %147 : vector<24x32xf32> to vector<24x32xbf16>
    %c0_63 = arith.constant 0 : index
    %c0_64 = arith.constant 0 : index
    %c0_65 = arith.constant 0 : index
    %149 = vector.load %arg15[%c0_63, %c0_64, %c0_65] : memref<2x32x128xbf16, #tpu.memory_space<vmem>>, vector<1x32x128xbf16>
    %150 = vector.shape_cast %149 : vector<1x32x128xbf16> to vector<32x128xbf16>
    %cst_66 = arith.constant dense<0.000000e+00> : vector<24x128xf32>
    %151 = tpu.matmul %148, %150, %cst_66 {dimension_numbers = #tpu.dot_dimension_numbers<[1], [0], [0], [1], [0, 0, 1, 1], [], []>} : vector<24x32xbf16>, vector<32x128xbf16>, vector<24x128xf32> -> vector<24x128xf32>
    %c0_67 = arith.constant 0 : index
    %c0_68 = arith.constant 0 : index
    %c0_69 = arith.constant 0 : index
    %152 = vector.load %arg16[%c0_67, %c0_68, %c0_69] : memref<2x1x128xf32, #tpu.memory_space<vmem>>, vector<1x1x128xf32>
    %153 = vector.shape_cast %152 : vector<1x1x128xf32> to vector<1x128xf32>
    %154 = vector.broadcast %153 : vector<1x128xf32> to vector<24x128xf32>
    %155 = arith.addf %151, %154 : vector<24x128xf32>
    %cst_70 = arith.constant 1.702000e+00 : f32
    %156 = vector.broadcast %cst_70 : f32 to vector<24x128xf32>
    %157 = arith.mulf %156, %155 : vector<24x128xf32>
    %158 = arith.negf %157 : vector<24x128xf32>
    %159 = math.exp %158 : vector<24x128xf32>
    %cst_71 = arith.constant 1.000000e+00 : f32
    %160 = vector.broadcast %cst_71 : f32 to vector<24x128xf32>
    %161 = arith.addf %160, %159 : vector<24x128xf32>
    %162 = arith.divf %160, %161 : vector<24x128xf32>
    %163 = arith.mulf %155, %162 : vector<24x128xf32>
    %164 = arith.truncf %163 : vector<24x128xf32> to vector<24x128xbf16>
    %c0_72 = arith.constant 0 : index
    %c0_73 = arith.constant 0 : index
    %c0_74 = arith.constant 0 : index
    %165 = vector.load %arg17[%c0_72, %c0_73, %c0_74] : memref<2x128x32xbf16, #tpu.memory_space<vmem>>, vector<1x128x32xbf16>
    %166 = vector.shape_cast %165 : vector<1x128x32xbf16> to vector<128x32xbf16>
    %cst_75 = arith.constant dense<0.000000e+00> : vector<24x32xf32>
    %167 = tpu.matmul %164, %166, %cst_75 {dimension_numbers = #tpu.dot_dimension_numbers<[1], [0], [0], [1], [0, 0, 1, 1], [], []>} : vector<24x128xbf16>, vector<128x32xbf16>, vector<24x32xf32> -> vector<24x32xf32>
    %168 = arith.addf %123, %167 : vector<24x32xf32>
    %c0_76 = arith.constant 0 : index
    %c0_77 = arith.constant 0 : index
    %c0_78 = arith.constant 0 : index
    %169 = vector.load %arg18[%c0_76, %c0_77, %c0_78] : memref<2x1x32xf32, #tpu.memory_space<vmem>>, vector<1x1x32xf32>
    %170 = vector.shape_cast %169 : vector<1x1x32xf32> to vector<1x32xf32>
    %171 = vector.broadcast %170 : vector<1x32xf32> to vector<24x32xf32>
    %172 = arith.addf %168, %171 : vector<24x32xf32>
    %c1 = arith.constant 1 : index
    %c0_79 = arith.constant 0 : index
    %c0_80 = arith.constant 0 : index
    %173 = vector.load %arg7[%c1, %c0_79, %c0_80] : memref<2x1x32xf32, #tpu.memory_space<vmem>>, vector<1x1x32xf32>
    %174 = vector.shape_cast %173 : vector<1x1x32xf32> to vector<1x32xf32>
    %c1_81 = arith.constant 1 : index
    %c0_82 = arith.constant 0 : index
    %c0_83 = arith.constant 0 : index
    %175 = vector.load %arg8[%c1_81, %c0_82, %c0_83] : memref<2x1x32xf32, #tpu.memory_space<vmem>>, vector<1x1x32xf32>
    %176 = vector.shape_cast %175 : vector<1x1x32xf32> to vector<1x32xf32>
    %cst_84 = arith.constant dense<0.000000e+00> : vector<24xf32>
    %177 = vector.multi_reduction <add>, %172, %cst_84 [1] : vector<24x32xf32> to vector<24xf32>
    %178 = vector.shape_cast %177 : vector<24xf32> to vector<24x1xf32>
    %cst_85 = arith.constant 3.200000e+01 : f32
    %179 = vector.broadcast %cst_85 : f32 to vector<24x1xf32>
    %180 = arith.divf %178, %179 : vector<24x1xf32>
    %181 = vector.broadcast %180 : vector<24x1xf32> to vector<24x32xf32>
    %182 = arith.subf %172, %181 : vector<24x32xf32>
    %183 = arith.mulf %182, %182 : vector<24x32xf32>
    %cst_86 = arith.constant dense<0.000000e+00> : vector<24xf32>
    %184 = vector.multi_reduction <add>, %183, %cst_86 [1] : vector<24x32xf32> to vector<24xf32>
    %185 = vector.shape_cast %184 : vector<24xf32> to vector<24x1xf32>
    %cst_87 = arith.constant 3.200000e+01 : f32
    %186 = vector.broadcast %cst_87 : f32 to vector<24x1xf32>
    %187 = arith.divf %185, %186 : vector<24x1xf32>
    %cst_88 = arith.constant 9.99999974E-6 : f32
    %188 = vector.broadcast %cst_88 : f32 to vector<24x1xf32>
    %189 = arith.addf %187, %188 : vector<24x1xf32>
    %190 = math.rsqrt %189 : vector<24x1xf32>
    %191 = vector.broadcast %190 : vector<24x1xf32> to vector<24x32xf32>
    %192 = arith.mulf %182, %191 : vector<24x32xf32>
    %193 = vector.broadcast %174 : vector<1x32xf32> to vector<24x32xf32>
    %194 = arith.mulf %192, %193 : vector<24x32xf32>
    %195 = vector.broadcast %176 : vector<1x32xf32> to vector<24x32xf32>
    %196 = arith.addf %194, %195 : vector<24x32xf32>
    %197 = arith.truncf %196 : vector<24x32xf32> to vector<24x32xbf16>
    %c1_89 = arith.constant 1 : index
    %c0_90 = arith.constant 0 : index
    %c0_91 = arith.constant 0 : index
    %198 = vector.load %arg9[%c1_89, %c0_90, %c0_91] : memref<2x32x96xbf16, #tpu.memory_space<vmem>>, vector<1x32x96xbf16>
    %199 = vector.shape_cast %198 : vector<1x32x96xbf16> to vector<32x96xbf16>
    %cst_92 = arith.constant dense<0.000000e+00> : vector<24x96xf32>
    %200 = tpu.matmul %197, %199, %cst_92 {dimension_numbers = #tpu.dot_dimension_numbers<[1], [0], [0], [1], [0, 0, 1, 1], [], []>} : vector<24x32xbf16>, vector<32x96xbf16>, vector<24x96xf32> -> vector<24x96xf32>
    %c1_93 = arith.constant 1 : index
    %c0_94 = arith.constant 0 : index
    %c0_95 = arith.constant 0 : index
    %201 = vector.load %arg10[%c1_93, %c0_94, %c0_95] : memref<2x1x96xf32, #tpu.memory_space<vmem>>, vector<1x1x96xf32>
    %202 = vector.shape_cast %201 : vector<1x1x96xf32> to vector<1x96xf32>
    %203 = vector.broadcast %202 : vector<1x96xf32> to vector<24x96xf32>
    %204 = arith.addf %200, %203 : vector<24x96xf32>
    %205 = vector.extract_strided_slice %204 {offsets = [0, 0], sizes = [24, 8], strides = [1, 1]} : vector<24x96xf32> to vector<24x8xf32>
    %206 = arith.truncf %205 : vector<24x8xf32> to vector<24x8xbf16>
    %207 = vector.extract_strided_slice %204 {offsets = [0, 32], sizes = [24, 8], strides = [1, 1]} : vector<24x96xf32> to vector<24x8xf32>
    %208 = arith.truncf %207 : vector<24x8xf32> to vector<24x8xbf16>
    %cst_96 = arith.constant dense<0.000000e+00> : vector<24x24xf32>
    %209 = tpu.matmul %206, %208, %cst_96 {dimension_numbers = #tpu.dot_dimension_numbers<[1], [1], [0], [0], [0, 0, 1, 0], [], []>} : vector<24x8xbf16>, vector<24x8xbf16>, vector<24x24xf32> -> vector<24x24xf32>
    %210 = vector.extract_strided_slice %204 {offsets = [0, 8], sizes = [24, 8], strides = [1, 1]} : vector<24x96xf32> to vector<24x8xf32>
    %211 = arith.truncf %210 : vector<24x8xf32> to vector<24x8xbf16>
    %212 = vector.extract_strided_slice %204 {offsets = [0, 40], sizes = [24, 8], strides = [1, 1]} : vector<24x96xf32> to vector<24x8xf32>
    %213 = arith.truncf %212 : vector<24x8xf32> to vector<24x8xbf16>
    %cst_97 = arith.constant dense<0.000000e+00> : vector<24x24xf32>
    %214 = tpu.matmul %211, %213, %cst_97 {dimension_numbers = #tpu.dot_dimension_numbers<[1], [1], [0], [0], [0, 0, 1, 0], [], []>} : vector<24x8xbf16>, vector<24x8xbf16>, vector<24x24xf32> -> vector<24x24xf32>
    %215 = vector.extract_strided_slice %204 {offsets = [0, 16], sizes = [24, 8], strides = [1, 1]} : vector<24x96xf32> to vector<24x8xf32>
    %216 = arith.truncf %215 : vector<24x8xf32> to vector<24x8xbf16>
    %217 = vector.extract_strided_slice %204 {offsets = [0, 48], sizes = [24, 8], strides = [1, 1]} : vector<24x96xf32> to vector<24x8xf32>
    %218 = arith.truncf %217 : vector<24x8xf32> to vector<24x8xbf16>
    %cst_98 = arith.constant dense<0.000000e+00> : vector<24x24xf32>
    %219 = tpu.matmul %216, %218, %cst_98 {dimension_numbers = #tpu.dot_dimension_numbers<[1], [1], [0], [0], [0, 0, 1, 0], [], []>} : vector<24x8xbf16>, vector<24x8xbf16>, vector<24x24xf32> -> vector<24x24xf32>
    %220 = vector.extract_strided_slice %204 {offsets = [0, 24], sizes = [24, 8], strides = [1, 1]} : vector<24x96xf32> to vector<24x8xf32>
    %221 = arith.truncf %220 : vector<24x8xf32> to vector<24x8xbf16>
    %222 = vector.extract_strided_slice %204 {offsets = [0, 56], sizes = [24, 8], strides = [1, 1]} : vector<24x96xf32> to vector<24x8xf32>
    %223 = arith.truncf %222 : vector<24x8xf32> to vector<24x8xbf16>
    %cst_99 = arith.constant dense<0.000000e+00> : vector<24x24xf32>
    %224 = tpu.matmul %221, %223, %cst_99 {dimension_numbers = #tpu.dot_dimension_numbers<[1], [1], [0], [0], [0, 0, 1, 0], [], []>} : vector<24x8xbf16>, vector<24x8xbf16>, vector<24x24xf32> -> vector<24x24xf32>
    %225 = tpu.concatenate %209, %214, %219, %224 in 0 : vector<24x24xf32>, vector<24x24xf32>, vector<24x24xf32>, vector<24x24xf32> -> vector<96x24xf32>
    %226 = vector.broadcast %28 : vector<1x24xf32> to vector<96x24xf32>
    %227 = arith.addf %225, %226 : vector<96x24xf32>
    %cst_100 = arith.constant dense<0xFF800000> : vector<96xf32>
    %228 = vector.multi_reduction <maximumf>, %227, %cst_100 [1] : vector<96x24xf32> to vector<96xf32>
    %229 = vector.shape_cast %228 : vector<96xf32> to vector<96x1xf32>
    %230 = vector.broadcast %229 : vector<96x1xf32> to vector<96x24xf32>
    %231 = arith.subf %227, %230 : vector<96x24xf32>
    %232 = math.exp %231 : vector<96x24xf32>
    %cst_101 = arith.constant dense<0.000000e+00> : vector<96xf32>
    %233 = vector.multi_reduction <add>, %232, %cst_101 [1] : vector<96x24xf32> to vector<96xf32>
    %234 = vector.shape_cast %233 : vector<96xf32> to vector<96x1xf32>
    %235 = tpu.reciprocal %234 {approx = true} : vector<96x1xf32> -> vector<96x1xf32>
    %236 = vector.broadcast %235 : vector<96x1xf32> to vector<96x24xf32>
    %237 = arith.mulf %232, %236 : vector<96x24xf32>
    %238 = vector.extract_strided_slice %237 {offsets = [0, 0], sizes = [24, 24], strides = [1, 1]} : vector<96x24xf32> to vector<24x24xf32>
    %239 = arith.truncf %238 : vector<24x24xf32> to vector<24x24xbf16>
    %240 = vector.extract_strided_slice %204 {offsets = [0, 64], sizes = [24, 8], strides = [1, 1]} : vector<24x96xf32> to vector<24x8xf32>
    %241 = arith.truncf %240 : vector<24x8xf32> to vector<24x8xbf16>
    %cst_102 = arith.constant dense<0.000000e+00> : vector<24x8xf32>
    %242 = tpu.matmul %239, %241, %cst_102 {dimension_numbers = #tpu.dot_dimension_numbers<[1], [0], [0], [1], [0, 0, 1, 1], [], []>} : vector<24x24xbf16>, vector<24x8xbf16>, vector<24x8xf32> -> vector<24x8xf32>
    %243 = vector.extract_strided_slice %237 {offsets = [24, 0], sizes = [24, 24], strides = [1, 1]} : vector<96x24xf32> to vector<24x24xf32>
    %244 = arith.truncf %243 : vector<24x24xf32> to vector<24x24xbf16>
    %245 = vector.extract_strided_slice %204 {offsets = [0, 72], sizes = [24, 8], strides = [1, 1]} : vector<24x96xf32> to vector<24x8xf32>
    %246 = arith.truncf %245 : vector<24x8xf32> to vector<24x8xbf16>
    %cst_103 = arith.constant dense<0.000000e+00> : vector<24x8xf32>
    %247 = tpu.matmul %244, %246, %cst_103 {dimension_numbers = #tpu.dot_dimension_numbers<[1], [0], [0], [1], [0, 0, 1, 1], [], []>} : vector<24x24xbf16>, vector<24x8xbf16>, vector<24x8xf32> -> vector<24x8xf32>
    %248 = vector.extract_strided_slice %237 {offsets = [48, 0], sizes = [24, 24], strides = [1, 1]} : vector<96x24xf32> to vector<24x24xf32>
    %249 = arith.truncf %248 : vector<24x24xf32> to vector<24x24xbf16>
    %250 = vector.extract_strided_slice %204 {offsets = [0, 80], sizes = [24, 8], strides = [1, 1]} : vector<24x96xf32> to vector<24x8xf32>
    %251 = arith.truncf %250 : vector<24x8xf32> to vector<24x8xbf16>
    %cst_104 = arith.constant dense<0.000000e+00> : vector<24x8xf32>
    %252 = tpu.matmul %249, %251, %cst_104 {dimension_numbers = #tpu.dot_dimension_numbers<[1], [0], [0], [1], [0, 0, 1, 1], [], []>} : vector<24x24xbf16>, vector<24x8xbf16>, vector<24x8xf32> -> vector<24x8xf32>
    %253 = vector.extract_strided_slice %237 {offsets = [72, 0], sizes = [24, 24], strides = [1, 1]} : vector<96x24xf32> to vector<24x24xf32>
    %254 = arith.truncf %253 : vector<24x24xf32> to vector<24x24xbf16>
    %255 = vector.extract_strided_slice %204 {offsets = [0, 88], sizes = [24, 8], strides = [1, 1]} : vector<24x96xf32> to vector<24x8xf32>
    %256 = arith.truncf %255 : vector<24x8xf32> to vector<24x8xbf16>
    %cst_105 = arith.constant dense<0.000000e+00> : vector<24x8xf32>
    %257 = tpu.matmul %254, %256, %cst_105 {dimension_numbers = #tpu.dot_dimension_numbers<[1], [0], [0], [1], [0, 0, 1, 1], [], []>} : vector<24x24xbf16>, vector<24x8xbf16>, vector<24x8xf32> -> vector<24x8xf32>
    %258 = tpu.concatenate %242, %247, %252, %257 in 1 : vector<24x8xf32>, vector<24x8xf32>, vector<24x8xf32>, vector<24x8xf32> -> vector<24x32xf32>
    %259 = arith.truncf %258 : vector<24x32xf32> to vector<24x32xbf16>
    %c1_106 = arith.constant 1 : index
    %c0_107 = arith.constant 0 : index
    %c0_108 = arith.constant 0 : index
    %260 = vector.load %arg11[%c1_106, %c0_107, %c0_108] : memref<2x32x32xbf16, #tpu.memory_space<vmem>>, vector<1x32x32xbf16>
    %261 = vector.shape_cast %260 : vector<1x32x32xbf16> to vector<32x32xbf16>
    %cst_109 = arith.constant dense<0.000000e+00> : vector<24x32xf32>
    %262 = tpu.matmul %259, %261, %cst_109 {dimension_numbers = #tpu.dot_dimension_numbers<[1], [0], [0], [1], [0, 0, 1, 1], [], []>} : vector<24x32xbf16>, vector<32x32xbf16>, vector<24x32xf32> -> vector<24x32xf32>
    %263 = arith.addf %172, %262 : vector<24x32xf32>
    %c1_110 = arith.constant 1 : index
    %c0_111 = arith.constant 0 : index
    %c0_112 = arith.constant 0 : index
    %264 = vector.load %arg12[%c1_110, %c0_111, %c0_112] : memref<2x1x32xf32, #tpu.memory_space<vmem>>, vector<1x1x32xf32>
    %265 = vector.shape_cast %264 : vector<1x1x32xf32> to vector<1x32xf32>
    %266 = vector.broadcast %265 : vector<1x32xf32> to vector<24x32xf32>
    %267 = arith.addf %263, %266 : vector<24x32xf32>
    %c1_113 = arith.constant 1 : index
    %c0_114 = arith.constant 0 : index
    %c0_115 = arith.constant 0 : index
    %268 = vector.load %arg13[%c1_113, %c0_114, %c0_115] : memref<2x1x32xf32, #tpu.memory_space<vmem>>, vector<1x1x32xf32>
    %269 = vector.shape_cast %268 : vector<1x1x32xf32> to vector<1x32xf32>
    %c1_116 = arith.constant 1 : index
    %c0_117 = arith.constant 0 : index
    %c0_118 = arith.constant 0 : index
    %270 = vector.load %arg14[%c1_116, %c0_117, %c0_118] : memref<2x1x32xf32, #tpu.memory_space<vmem>>, vector<1x1x32xf32>
    %271 = vector.shape_cast %270 : vector<1x1x32xf32> to vector<1x32xf32>
    %cst_119 = arith.constant dense<0.000000e+00> : vector<24xf32>
    %272 = vector.multi_reduction <add>, %267, %cst_119 [1] : vector<24x32xf32> to vector<24xf32>
    %273 = vector.shape_cast %272 : vector<24xf32> to vector<24x1xf32>
    %cst_120 = arith.constant 3.200000e+01 : f32
    %274 = vector.broadcast %cst_120 : f32 to vector<24x1xf32>
    %275 = arith.divf %273, %274 : vector<24x1xf32>
    %276 = vector.broadcast %275 : vector<24x1xf32> to vector<24x32xf32>
    %277 = arith.subf %267, %276 : vector<24x32xf32>
    %278 = arith.mulf %277, %277 : vector<24x32xf32>
    %cst_121 = arith.constant dense<0.000000e+00> : vector<24xf32>
    %279 = vector.multi_reduction <add>, %278, %cst_121 [1] : vector<24x32xf32> to vector<24xf32>
    %280 = vector.shape_cast %279 : vector<24xf32> to vector<24x1xf32>
    %cst_122 = arith.constant 3.200000e+01 : f32
    %281 = vector.broadcast %cst_122 : f32 to vector<24x1xf32>
    %282 = arith.divf %280, %281 : vector<24x1xf32>
    %cst_123 = arith.constant 9.99999974E-6 : f32
    %283 = vector.broadcast %cst_123 : f32 to vector<24x1xf32>
    %284 = arith.addf %282, %283 : vector<24x1xf32>
    %285 = math.rsqrt %284 : vector<24x1xf32>
    %286 = vector.broadcast %285 : vector<24x1xf32> to vector<24x32xf32>
    %287 = arith.mulf %277, %286 : vector<24x32xf32>
    %288 = vector.broadcast %269 : vector<1x32xf32> to vector<24x32xf32>
    %289 = arith.mulf %287, %288 : vector<24x32xf32>
    %290 = vector.broadcast %271 : vector<1x32xf32> to vector<24x32xf32>
    %291 = arith.addf %289, %290 : vector<24x32xf32>
    %292 = arith.truncf %291 : vector<24x32xf32> to vector<24x32xbf16>
    %c1_124 = arith.constant 1 : index
    %c0_125 = arith.constant 0 : index
    %c0_126 = arith.constant 0 : index
    %293 = vector.load %arg15[%c1_124, %c0_125, %c0_126] : memref<2x32x128xbf16, #tpu.memory_space<vmem>>, vector<1x32x128xbf16>
    %294 = vector.shape_cast %293 : vector<1x32x128xbf16> to vector<32x128xbf16>
    %cst_127 = arith.constant dense<0.000000e+00> : vector<24x128xf32>
    %295 = tpu.matmul %292, %294, %cst_127 {dimension_numbers = #tpu.dot_dimension_numbers<[1], [0], [0], [1], [0, 0, 1, 1], [], []>} : vector<24x32xbf16>, vector<32x128xbf16>, vector<24x128xf32> -> vector<24x128xf32>
    %c1_128 = arith.constant 1 : index
    %c0_129 = arith.constant 0 : index
    %c0_130 = arith.constant 0 : index
    %296 = vector.load %arg16[%c1_128, %c0_129, %c0_130] : memref<2x1x128xf32, #tpu.memory_space<vmem>>, vector<1x1x128xf32>
    %297 = vector.shape_cast %296 : vector<1x1x128xf32> to vector<1x128xf32>
    %298 = vector.broadcast %297 : vector<1x128xf32> to vector<24x128xf32>
    %299 = arith.addf %295, %298 : vector<24x128xf32>
    %cst_131 = arith.constant 1.702000e+00 : f32
    %300 = vector.broadcast %cst_131 : f32 to vector<24x128xf32>
    %301 = arith.mulf %300, %299 : vector<24x128xf32>
    %302 = arith.negf %301 : vector<24x128xf32>
    %303 = math.exp %302 : vector<24x128xf32>
    %cst_132 = arith.constant 1.000000e+00 : f32
    %304 = vector.broadcast %cst_132 : f32 to vector<24x128xf32>
    %305 = arith.addf %304, %303 : vector<24x128xf32>
    %306 = arith.divf %304, %305 : vector<24x128xf32>
    %307 = arith.mulf %299, %306 : vector<24x128xf32>
    %308 = arith.truncf %307 : vector<24x128xf32> to vector<24x128xbf16>
    %c1_133 = arith.constant 1 : index
    %c0_134 = arith.constant 0 : index
    %c0_135 = arith.constant 0 : index
    %309 = vector.load %arg17[%c1_133, %c0_134, %c0_135] : memref<2x128x32xbf16, #tpu.memory_space<vmem>>, vector<1x128x32xbf16>
    %310 = vector.shape_cast %309 : vector<1x128x32xbf16> to vector<128x32xbf16>
    %cst_136 = arith.constant dense<0.000000e+00> : vector<24x32xf32>
    %311 = tpu.matmul %308, %310, %cst_136 {dimension_numbers = #tpu.dot_dimension_numbers<[1], [0], [0], [1], [0, 0, 1, 1], [], []>} : vector<24x128xbf16>, vector<128x32xbf16>, vector<24x32xf32> -> vector<24x32xf32>
    %312 = arith.addf %267, %311 : vector<24x32xf32>
    %c1_137 = arith.constant 1 : index
    %c0_138 = arith.constant 0 : index
    %c0_139 = arith.constant 0 : index
    %313 = vector.load %arg18[%c1_137, %c0_138, %c0_139] : memref<2x1x32xf32, #tpu.memory_space<vmem>>, vector<1x1x32xf32>
    %314 = vector.shape_cast %313 : vector<1x1x32xf32> to vector<1x32xf32>
    %315 = vector.broadcast %314 : vector<1x32xf32> to vector<24x32xf32>
    %316 = arith.addf %312, %315 : vector<24x32xf32>
    %317 = vector.extract_strided_slice %316 {offsets = [0, 0], sizes = [8, 32], strides = [1, 1]} : vector<24x32xf32> to vector<8x32xf32>
    %c0_140 = arith.constant 0 : index
    %c0_141 = arith.constant 0 : index
    %318 = vector.load %arg19[%c0_140, %c0_141] : memref<1x32xf32, #tpu.memory_space<vmem>>, vector<1x32xf32>
    %c0_142 = arith.constant 0 : index
    %c0_143 = arith.constant 0 : index
    %319 = vector.load %arg20[%c0_142, %c0_143] : memref<1x32xf32, #tpu.memory_space<vmem>>, vector<1x32xf32>
    %cst_144 = arith.constant dense<0.000000e+00> : vector<8xf32>
    %320 = vector.multi_reduction <add>, %317, %cst_144 [1] : vector<8x32xf32> to vector<8xf32>
    %321 = vector.shape_cast %320 : vector<8xf32> to vector<8x1xf32>
    %cst_145 = arith.constant 3.200000e+01 : f32
    %322 = vector.broadcast %cst_145 : f32 to vector<8x1xf32>
    %323 = arith.divf %321, %322 : vector<8x1xf32>
    %324 = vector.broadcast %323 : vector<8x1xf32> to vector<8x32xf32>
    %325 = arith.subf %317, %324 : vector<8x32xf32>
    %326 = arith.mulf %325, %325 : vector<8x32xf32>
    %cst_146 = arith.constant dense<0.000000e+00> : vector<8xf32>
    %327 = vector.multi_reduction <add>, %326, %cst_146 [1] : vector<8x32xf32> to vector<8xf32>
    %328 = vector.shape_cast %327 : vector<8xf32> to vector<8x1xf32>
    %cst_147 = arith.constant 3.200000e+01 : f32
    %329 = vector.broadcast %cst_147 : f32 to vector<8x1xf32>
    %330 = arith.divf %328, %329 : vector<8x1xf32>
    %cst_148 = arith.constant 9.99999974E-6 : f32
    %331 = vector.broadcast %cst_148 : f32 to vector<8x1xf32>
    %332 = arith.addf %330, %331 : vector<8x1xf32>
    %333 = math.rsqrt %332 : vector<8x1xf32>
    %334 = vector.broadcast %333 : vector<8x1xf32> to vector<8x32xf32>
    %335 = arith.mulf %325, %334 : vector<8x32xf32>
    %336 = vector.broadcast %318 : vector<1x32xf32> to vector<8x32xf32>
    %337 = arith.mulf %335, %336 : vector<8x32xf32>
    %338 = vector.broadcast %319 : vector<1x32xf32> to vector<8x32xf32>
    %339 = arith.addf %337, %338 : vector<8x32xf32>
    %340 = arith.truncf %339 : vector<8x32xf32> to vector<8x32xbf16>
    %c0_149 = arith.constant 0 : index
    %c0_150 = arith.constant 0 : index
    %341 = vector.load %arg21[%c0_149, %c0_150] : memref<32x128xbf16, #tpu.memory_space<vmem>>, vector<32x128xbf16>
    %cst_151 = arith.constant dense<0.000000e+00> : vector<8x128xf32>
    %342 = tpu.matmul %340, %341, %cst_151 {dimension_numbers = #tpu.dot_dimension_numbers<[1], [0], [0], [1], [0, 0, 1, 1], [], []>} : vector<8x32xbf16>, vector<32x128xbf16>, vector<8x128xf32> -> vector<8x128xf32>
    %c0_152 = arith.constant 0 : index
    %c0_153 = arith.constant 0 : index
    %c0_154 = arith.constant 0 : index
    %343 = vector.load %arg22[%c0_152, %c0_153, %c0_154] : memref<1x8x128xf32, #tpu.memory_space<vmem>>, vector<1x8x128xf32>
    %344 = vector.shape_cast %343 : vector<1x8x128xf32> to vector<8x128xf32>
    %345 = vector.shape_cast %342 : vector<8x128xf32> to vector<1x8x128xf32>
    tpu.vector_store %arg22[%c0_152, %c0_153, %c0_154], %345 {strides = array<i32>} : memref<1x8x128xf32, #tpu.memory_space<vmem>>, vector<1x8x128xf32>,
    return
  }
  func.func @transform_0(%arg0: i32) -> (i32, i32, i32) {
    %c0_i32 = arith.constant 0 : i32
    %c0_i32_0 = arith.constant 0 : i32
    %c0_i32_1 = arith.constant 0 : i32
    return %arg0, %c0_i32, %c0_i32_0 : i32, i32, i32
  }
  func.func @transform_1(%arg0: i32) -> (i32, i32) {
    %c0_i32 = arith.constant 0 : i32
    %c0_i32_0 = arith.constant 0 : i32
    %c0_i32_1 = arith.constant 0 : i32
    return %c0_i32, %c0_i32_0 : i32, i32
  }
  func.func @transform_2(%arg0: i32) -> (i32, i32) {
    %c0_i32 = arith.constant 0 : i32
    %c0_i32_0 = arith.constant 0 : i32
    %c0_i32_1 = arith.constant 0 : i32
    return %c0_i32, %c0_i32_0 : i32, i32
  }
  func.func @transform_3(%arg0: i32) -> (i32, i32) {
    %c0_i32 = arith.constant 0 : i32
    %c0_i32_0 = arith.constant 0 : i32
    %c0_i32_1 = arith.constant 0 : i32
    return %c0_i32, %c0_i32_0 : i32, i32
  }
  func.func @transform_4(%arg0: i32) -> (i32, i32) {
    %c0_i32 = arith.constant 0 : i32
    %c0_i32_0 = arith.constant 0 : i32
    %c0_i32_1 = arith.constant 0 : i32
    return %c0_i32, %c0_i32_0 : i32, i32
  }
  func.func @transform_5(%arg0: i32) -> (i32, i32) {
    %c0_i32 = arith.constant 0 : i32
    %c0_i32_0 = arith.constant 0 : i32
    %c0_i32_1 = arith.constant 0 : i32
    return %c0_i32, %c0_i32_0 : i32, i32
  }
  func.func @transform_6(%arg0: i32) -> (i32, i32, i32) {
    %c0_i32 = arith.constant 0 : i32
    %c0_i32_0 = arith.constant 0 : i32
    %c0_i32_1 = arith.constant 0 : i32
    %c0_i32_2 = arith.constant 0 : i32
    return %c0_i32, %c0_i32_0, %c0_i32_1 : i32, i32, i32
  }
  func.func @transform_7(%arg0: i32) -> (i32, i32, i32) {
    %c0_i32 = arith.constant 0 : i32
    %c0_i32_0 = arith.constant 0 : i32
    %c0_i32_1 = arith.constant 0 : i32
    %c0_i32_2 = arith.constant 0 : i32
    return %c0_i32, %c0_i32_0, %c0_i32_1 : i32, i32, i32
  }
  func.func @transform_8(%arg0: i32) -> (i32, i32, i32) {
    %c0_i32 = arith.constant 0 : i32
    %c0_i32_0 = arith.constant 0 : i32
    %c0_i32_1 = arith.constant 0 : i32
    %c0_i32_2 = arith.constant 0 : i32
    return %c0_i32, %c0_i32_0, %c0_i32_1 : i32, i32, i32
  }
  func.func @transform_9(%arg0: i32) -> (i32, i32, i32) {
    %c0_i32 = arith.constant 0 : i32
    %c0_i32_0 = arith.constant 0 : i32
    %c0_i32_1 = arith.constant 0 : i32
    %c0_i32_2 = arith.constant 0 : i32
    return %c0_i32, %c0_i32_0, %c0_i32_1 : i32, i32, i32
  }
  func.func @transform_10(%arg0: i32) -> (i32, i32, i32) {
    %c0_i32 = arith.constant 0 : i32
    %c0_i32_0 = arith.constant 0 : i32
    %c0_i32_1 = arith.constant 0 : i32
    %c0_i32_2 = arith.constant 0 : i32
    return %c0_i32, %c0_i32_0, %c0_i32_1 : i32, i32, i32
  }
  func.func @transform_11(%arg0: i32) -> (i32, i32, i32) {
    %c0_i32 = arith.constant 0 : i32
    %c0_i32_0 = arith.constant 0 : i32
    %c0_i32_1 = arith.constant 0 : i32
    %c0_i32_2 = arith.constant 0 : i32
    return %c0_i32, %c0_i32_0, %c0_i32_1 : i32, i32, i32
  }
  func.func @transform_12(%arg0: i32) -> (i32, i32, i32) {
    %c0_i32 = arith.constant 0 : i32
    %c0_i32_0 = arith.constant 0 : i32
    %c0_i32_1 = arith.constant 0 : i32
    %c0_i32_2 = arith.constant 0 : i32
    return %c0_i32, %c0_i32_0, %c0_i32_1 : i32, i32, i32
  }
  func.func @transform_13(%arg0: i32) -> (i32, i32, i32) {
    %c0_i32 = arith.constant 0 : i32
    %c0_i32_0 = arith.constant 0 : i32
    %c0_i32_1 = arith.constant 0 : i32
    %c0_i32_2 = arith.constant 0 : i32
    return %c0_i32, %c0_i32_0, %c0_i32_1 : i32, i32, i32
  }
  func.func @transform_14(%arg0: i32) -> (i32, i32, i32) {
    %c0_i32 = arith.constant 0 : i32
    %c0_i32_0 = arith.constant 0 : i32
    %c0_i32_1 = arith.constant 0 : i32
    %c0_i32_2 = arith.constant 0 : i32
    return %c0_i32, %c0_i32_0, %c0_i32_1 : i32, i32, i32
  }
  func.func @transform_15(%arg0: i32) -> (i32, i32, i32) {
    %c0_i32 = arith.constant 0 : i32
    %c0_i32_0 = arith.constant 0 : i32
    %c0_i32_1 = arith.constant 0 : i32
    %c0_i32_2 = arith.constant 0 : i32
    return %c0_i32, %c0_i32_0, %c0_i32_1 : i32, i32, i32
  }
  func.func @transform_16(%arg0: i32) -> (i32, i32, i32) {
    %c0_i32 = arith.constant 0 : i32
    %c0_i32_0 = arith.constant 0 : i32
    %c0_i32_1 = arith.constant 0 : i32
    %c0_i32_2 = arith.constant 0 : i32
    return %c0_i32, %c0_i32_0, %c0_i32_1 : i32, i32, i32
  }
  func.func @transform_17(%arg0: i32) -> (i32, i32, i32) {
    %c0_i32 = arith.constant 0 : i32
    %c0_i32_0 = arith.constant 0 : i32
    %c0_i32_1 = arith.constant 0 : i32
    %c0_i32_2 = arith.constant 0 : i32
    return %c0_i32, %c0_i32_0, %c0_i32_1 : i32, i32, i32
  }
  func.func @transform_18(%arg0: i32) -> (i32, i32) {
    %c0_i32 = arith.constant 0 : i32
    %c0_i32_0 = arith.constant 0 : i32
    %c0_i32_1 = arith.constant 0 : i32
    return %c0_i32, %c0_i32_0 : i32, i32
  }
  func.func @transform_19(%arg0: i32) -> (i32, i32) {
    %c0_i32 = arith.constant 0 : i32
    %c0_i32_0 = arith.constant 0 : i32
    %c0_i32_1 = arith.constant 0 : i32
    return %c0_i32, %c0_i32_0 : i32, i32
  }
  func.func @transform_20(%arg0: i32) -> (i32, i32) {
    %c0_i32 = arith.constant 0 : i32
    %c0_i32_0 = arith.constant 0 : i32
    %c0_i32_1 = arith.constant 0 : i32
    return %c0_i32, %c0_i32_0 : i32, i32
  }
  func.func @transform_21(%arg0: i32) -> (i32, i32, i32) {
    %c0_i32 = arith.constant 0 : i32
    %c0_i32_0 = arith.constant 0 : i32
    %c0_i32_1 = arith.constant 0 : i32
    return %arg0, %c0_i32, %c0_i32_0 : i32, i32, i32
  }
}

</mosaic_0001>

<llo_original>
// kernel: encode_image.1
$region0: #{encode_image.1}
  #allocation0 [shape = 'u32[]', space=smem, size = 0x4, offset = 0x4, fixed_abs, tag = 'smem constant byte address 0x4 - core index']
  #allocation1 [shape = 'u32[144,128]{1,0:T(1,128)}', space=vmem, size = 0x12000, scoped, tag = 'internal scratch']
  %s0 = inlined_call_operand.vmem [shape: bf16[2,24,48], index: 0, kind: input, shape index: {}]
  %s1 = inlined_call_operand.vmem [shape: bf16[48,32], index: 1, kind: input, shape index: {}]
  %s2 = inlined_call_operand.vmem [shape: f32[24,32], index: 2, kind: input, shape index: {}]
  %s3 = inlined_call_operand.vmem [shape: f32[1,24], index: 3, kind: input, shape index: {}]
  %s4 = inlined_call_operand.vmem [shape: f32[1,32], index: 4, kind: input, shape index: {}]
  %s5 = inlined_call_operand.vmem [shape: f32[1,32], index: 5, kind: input, shape index: {}]
  %s6 = inlined_call_operand.vmem [shape: f32[2,1,32], index: 6, kind: input, shape index: {}]
  %s7 = inlined_call_operand.vmem [shape: f32[2,1,32], index: 7, kind: input, shape index: {}]
  %s8 = inlined_call_operand.vmem [shape: bf16[2,32,96], index: 8, kind: input, shape index: {}]
  %s9 = inlined_call_operand.vmem [shape: f32[2,1,96], index: 9, kind: input, shape index: {}]
  %s10 = inlined_call_operand.vmem [shape: bf16[2,32,32], index: 10, kind: input, shape index: {}]
  %s11 = inlined_call_operand.vmem [shape: f32[2,1,32], index: 11, kind: input, shape index: {}]
  %s12 = inlined_call_operand.vmem [shape: f32[2,1,32], index: 12, kind: input, shape index: {}]
  %s13 = inlined_call_operand.vmem [shape: f32[2,1,32], index: 13, kind: input, shape index: {}]
  %s14 = inlined_call_operand.vmem [shape: bf16[2,32,128], index: 14, kind: input, shape index: {}]
  %s15 = inlined_call_operand.vmem [shape: f32[2,1,128], index: 15, kind: input, shape index: {}]
  %s16 = inlined_call_operand.vmem [shape: bf16[2,128,32], index: 16, kind: input, shape index: {}]
  %s17 = inlined_call_operand.vmem [shape: f32[2,1,32], index: 17, kind: input, shape index: {}]
  %s18 = inlined_call_operand.vmem [shape: f32[1,32], index: 18, kind: input, shape index: {}]
  %s19 = inlined_call_operand.vmem [shape: f32[1,32], index: 19, kind: input, shape index: {}]
  %s20 = inlined_call_operand.vmem [shape: bf16[32,128], index: 20, kind: input, shape index: {}]
  %s21 = inlined_call_operand.vmem [shape: f32[2,8,128], index: 21, kind: output, shape index: {}]
  %s22 = sld [smem:[#allocation0]]
  $region117: #{encode_image.1} parent=0
    _
  %s24 = ssub.s32 1, %s22
  %s25 = scalar_select 0, %s24, %s22
  loop: start=0, step=1, limit=4
  $region2: #{encode_image.1} parent=0 // loop_pre_header
    _
  $region3: #{encode_image.1} parent=0 // loop_header
    %s27 = sphi 0, %s31
    %p28 = scmp.ge.s32.totalorder %s27, 4
    %s37 = sphi 0, %s39
    %s40 = sphi 0, %s37
    %s41 = sphi 0, %s40
    %s57 = sphi 0, %s41
    %s61 = sphi 0, %s61
    %s63 = sphi 0, %s61
    %s64 = sphi 0, %s63
    %s78 = sphi 0, %s64
    %s82 = sphi 0, %s82
    %s84 = sphi 0, %s82
    %s85 = sphi 0, %s84
    %s99 = sphi 0, %s85
    %s103 = sphi 0, %s103
    %s105 = sphi 0, %s103
    %s106 = sphi 0, %s105
    %s120 = sphi 0, %s106
    %s124 = sphi 0, %s124
    %s126 = sphi 0, %s124
    %s127 = sphi 0, %s126
    %s141 = sphi 0, %s127
    %s145 = sphi 0, %s145
    %s147 = sphi 0, %s145
    %s148 = sphi 0, %s147
    %s162 = sphi 0, %s148
    %s166 = sphi 0, %s166
    %s168 = sphi 0, %s166
    %s169 = sphi 0, %s168
    %s183 = sphi 0, %s169
    %s187 = sphi 0, %s187
    %s189 = sphi 0, %s187
    %s190 = sphi 0, %s189
    %s204 = sphi 0, %s190
    %s208 = sphi 0, %s208
    %s210 = sphi 0, %s208
    %s211 = sphi 0, %s210
    %s225 = sphi 0, %s211
    %s229 = sphi 0, %s229
    %s231 = sphi 0, %s229
    %s232 = sphi 0, %s231
    %s246 = sphi 0, %s232
    %s250 = sphi 0, %s250
    %s252 = sphi 0, %s250
    %s253 = sphi 0, %s252
    %s267 = sphi 0, %s253
    %s271 = sphi 0, %s271
    %s273 = sphi 0, %s271
    %s274 = sphi 0, %s273
    %s288 = sphi 0, %s274
    %s292 = sphi 0, %s292
    %s294 = sphi 0, %s292
    %s295 = sphi 0, %s294
    %s309 = sphi 0, %s295
    %s313 = sphi 0, %s313
    %s315 = sphi 0, %s313
    %s316 = sphi 0, %s315
    %s330 = sphi 0, %s316
    %s334 = sphi 0, %s334
    %s336 = sphi 0, %s334
    %s337 = sphi 0, %s336
    %s351 = sphi 0, %s337
    %s355 = sphi 0, %s355
    %s357 = sphi 0, %s355
    %s358 = sphi 0, %s357
    %s372 = sphi 0, %s358
    %s376 = sphi 0, %s376
    %s378 = sphi 0, %s376
    %s379 = sphi 0, %s378
    %s393 = sphi 0, %s379
    %s397 = sphi 0, %s397
    %s399 = sphi 0, %s397
    %s400 = sphi 0, %s399
    %s414 = sphi 0, %s400
    %s418 = sphi 0, %s418
    %s420 = sphi 0, %s418
    %s421 = sphi 0, %s420
    %s435 = sphi 0, %s421
    %s439 = sphi 0, %s439
    %s441 = sphi 0, %s439
    %s442 = sphi 0, %s441
    %s456 = sphi 0, %s442
    %s460 = sphi 0, %s460
    %s462 = sphi 0, %s460
    %s463 = sphi 0, %s462
    %s477 = sphi 0, %s463
    %s483 = sphi 0, %s485
    %s486 = sphi 0, %s483
    %s487 = sphi 0, %s486
    %s503 = sphi 0, %s487
  $region4: #{encode_image.1} parent=0 // loop_header_branch
    %30 = sbr.rel (%p28) target = $region8
  $region5: #{encode_image.1} parent=0 // loop_body
    %s32 = ssub.s32 %s27, 1
    %s33 = ssub.s32 %s27, 2
    %s34 = sadd.s32 %s27, 1
    %s35 = ssub.s32 %s27, %s34
    %p36 = scmp.eq.s32.totalorder %s35, 0
    %s38 = sadd.s32 %s37, 1
    %s39 = scalar_select %p36, %s37, %s38
    %p42 = pneg %p36
    %p43 = scmp.eq.s32.totalorder %s27, 1
    %p44 = por %p42, %p43
    %p45 = scmp.ne.s32.totalorder %s37, %s40
    %p46 = scmp.eq.s32.totalorder %s27, 0
    %p47 = por %p45, %p46
    %p48 = scmp.ne.s32.totalorder %s37, %s40
    %p49 = scmp.eq.s32.totalorder %s32, 1
    %p50 = por %p48, %p49
    %p51 = scmp.ne.s32.totalorder %s40, %s41
    %p52 = scmp.eq.s32.totalorder %s32, 0
    %p53 = por %p51, %p52
    %p54 = scmp.ne.s32.totalorder %s40, %s41
    %p55 = scmp.eq.s32.totalorder %s33, 1
    %p56 = por %p54, %p55
    %p58 = scmp.ne.s32.totalorder %s41, %s57
    %p59 = scmp.eq.s32.totalorder %s33, 0
    %p60 = por %p58, %p59
    %s62 = sadd.s32 %s61, 1
    %p65 = scmp.eq.s32.totalorder %s27, 1
    %p66 = scmp.ne.s32.totalorder %s61, %s63
    %p67 = scmp.eq.s32.totalorder %s27, 0
    %p68 = por %p66, %p67
    %p69 = scmp.ne.s32.totalorder %s61, %s63
    %p70 = scmp.eq.s32.totalorder %s32, 1
    %p71 = por %p69, %p70
    %p72 = scmp.ne.s32.totalorder %s63, %s64
    %p73 = scmp.eq.s32.totalorder %s32, 0
    %p74 = por %p72, %p73
    %p75 = scmp.ne.s32.totalorder %s63, %s64
    %p76 = scmp.eq.s32.totalorder %s33, 1
    %p77 = por %p75, %p76
    %p79 = scmp.ne.s32.totalorder %s64, %s78
    %p80 = scmp.eq.s32.totalorder %s33, 0
    %p81 = por %p79, %p80
    %s83 = sadd.s32 %s82, 1
    %p86 = scmp.eq.s32.totalorder %s27, 1
    %p87 = scmp.ne.s32.totalorder %s82, %s84
    %p88 = scmp.eq.s32.totalorder %s27, 0
    %p89 = por %p87, %p88
    %p90 = scmp.ne.s32.totalorder %s82, %s84
    %p91 = scmp.eq.s32.totalorder %s32, 1
    %p92 = por %p90, %p91
    %p93 = scmp.ne.s32.totalorder %s84, %s85
    %p94 = scmp.eq.s32.totalorder %s32, 0
    %p95 = por %p93, %p94
    %p96 = scmp.ne.s32.totalorder %s84, %s85
    %p97 = scmp.eq.s32.totalorder %s33, 1
    %p98 = por %p96, %p97
    %p100 = scmp.ne.s32.totalorder %s85, %s99
    %p101 = scmp.eq.s32.totalorder %s33, 0
    %p102 = por %p100, %p101
    %s104 = sadd.s32 %s103, 1
    %p107 = scmp.eq.s32.totalorder %s27, 1
    %p108 = scmp.ne.s32.totalorder %s103, %s105
    %p109 = scmp.eq.s32.totalorder %s27, 0
    %p110 = por %p108, %p109
    %p111 = scmp.ne.s32.totalorder %s103, %s105
    %p112 = scmp.eq.s32.totalorder %s32, 1
    %p113 = por %p111, %p112
    %p114 = scmp.ne.s32.totalorder %s105, %s106
    %p115 = scmp.eq.s32.totalorder %s32, 0
    %p116 = por %p114, %p115
    %p117 = scmp.ne.s32.totalorder %s105, %s106
    %p118 = scmp.eq.s32.totalorder %s33, 1
    %p119 = por %p117, %p118
    %p121 = scmp.ne.s32.totalorder %s106, %s120
    %p122 = scmp.eq.s32.totalorder %s33, 0
    %p123 = por %p121, %p122
    %s125 = sadd.s32 %s124, 1
    %p128 = scmp.eq.s32.totalorder %s27, 1
    %p129 = scmp.ne.s32.totalorder %s124, %s126
    %p130 = scmp.eq.s32.totalorder %s27, 0
    %p131 = por %p129, %p130
    %p132 = scmp.ne.s32.totalorder %s124, %s126
    %p133 = scmp.eq.s32.totalorder %s32, 1
    %p134 = por %p132, %p133
    %p135 = scmp.ne.s32.totalorder %s126, %s127
    %p136 = scmp.eq.s32.totalorder %s32, 0
    %p137 = por %p135, %p136
    %p138 = scmp.ne.s32.totalorder %s126, %s127
    %p139 = scmp.eq.s32.totalorder %s33, 1
    %p140 = por %p138, %p139
    %p142 = scmp.ne.s32.totalorder %s127, %s141
    %p143 = scmp.eq.s32.totalorder %s33, 0
    %p144 = por %p142, %p143
    %s146 = sadd.s32 %s145, 1
    %p149 = scmp.eq.s32.totalorder %s27, 1
    %p150 = scmp.ne.s32.totalorder %s145, %s147
    %p151 = scmp.eq.s32.totalorder %s27, 0
    %p152 = por %p150, %p151
    %p153 = scmp.ne.s32.totalorder %s145, %s147
    %p154 = scmp.eq.s32.totalorder %s32, 1
    %p155 = por %p153, %p154
    %p156 = scmp.ne.s32.totalorder %s147, %s148
    %p157 = scmp.eq.s32.totalorder %s32, 0
    %p158 = por %p156, %p157
    %p159 = scmp.ne.s32.totalorder %s147, %s148
    %p160 = scmp.eq.s32.totalorder %s33, 1
    %p161 = por %p159, %p160
    %p163 = scmp.ne.s32.totalorder %s148, %s162
    %p164 = scmp.eq.s32.totalorder %s33, 0
    %p165 = por %p163, %p164
    %s167 = sadd.s32 %s166, 1
    %p170 = scmp.eq.s32.totalorder %s27, 1
    %p171 = scmp.ne.s32.totalorder %s166, %s168
    %p172 = scmp.eq.s32.totalorder %s27, 0
    %p173 = por %p171, %p172
    %p174 = scmp.ne.s32.totalorder %s166, %s168
    %p175 = scmp.eq.s32.totalorder %s32, 1
    %p176 = por %p174, %p175
    %p177 = scmp.ne.s32.totalorder %s168, %s169
    %p178 = scmp.eq.s32.totalorder %s32, 0
    %p179 = por %p177, %p178
    %p180 = scmp.ne.s32.totalorder %s168, %s169
    %p181 = scmp.eq.s32.totalorder %s33, 1
    %p182 = por %p180, %p181
    %p184 = scmp.ne.s32.totalorder %s169, %s183
    %p185 = scmp.eq.s32.totalorder %s33, 0
    %p186 = por %p184, %p185
    %s188 = sadd.s32 %s187, 1
    %p191 = scmp.eq.s32.totalorder %s27, 1
    %p192 = scmp.ne.s32.totalorder %s187, %s189
    %p193 = scmp.eq.s32.totalorder %s27, 0
    %p194 = por %p192, %p193
    %p195 = scmp.ne.s32.totalorder %s187, %s189
    %p196 = scmp.eq.s32.totalorder %s32, 1
    %p197 = por %p195, %p196
    %p198 = scmp.ne.s32.totalorder %s189, %s190
    %p199 = scmp.eq.s32.totalorder %s32, 0
    %p200 = por %p198, %p199
    %p201 = scmp.ne.s32.totalorder %s189, %s190
    %p202 = scmp.eq.s32.totalorder %s33, 1
    %p203 = por %p201, %p202
    %p205 = scmp.ne.s32.totalorder %s190, %s204
    %p206 = scmp.eq.s32.totalorder %s33, 0
    %p207 = por %p205, %p206
    %s209 = sadd.s32 %s208, 1
    %p212 = scmp.eq.s32.totalorder %s27, 1
    %p213 = scmp.ne.s32.totalorder %s208, %s210
    %p214 = scmp.eq.s32.totalorder %s27, 0
    %p215 = por %p213, %p214
    %p216 = scmp.ne.s32.totalorder %s208, %s210
    %p217 = scmp.eq.s32.totalorder %s32, 1
    %p218 = por %p216, %p217
    %p219 = scmp.ne.s32.totalorder %s210, %s211
    %p220 = scmp.eq.s32.totalorder %s32, 0
    %p221 = por %p219, %p220
    %p222 = scmp.ne.s32.totalorder %s210, %s211
    %p223 = scmp.eq.s32.totalorder %s33, 1
    %p224 = por %p222, %p223
    %p226 = scmp.ne.s32.totalorder %s211, %s225
    %p227 = scmp.eq.s32.totalorder %s33, 0
    %p228 = por %p226, %p227
    %s230 = sadd.s32 %s229, 1
    %p233 = scmp.eq.s32.totalorder %s27, 1
    %p234 = scmp.ne.s32.totalorder %s229, %s231
    %p235 = scmp.eq.s32.totalorder %s27, 0
    %p236 = por %p234, %p235
    %p237 = scmp.ne.s32.totalorder %s229, %s231
    %p238 = scmp.eq.s32.totalorder %s32, 1
    %p239 = por %p237, %p238
    %p240 = scmp.ne.s32.totalorder %s231, %s232
    %p241 = scmp.eq.s32.totalorder %s32, 0
    %p242 = por %p240, %p241
    %p243 = scmp.ne.s32.totalorder %s231, %s232
    %p244 = scmp.eq.s32.totalorder %s33, 1
    %p245 = por %p243, %p244
    %p247 = scmp.ne.s32.totalorder %s232, %s246
    %p248 = scmp.eq.s32.totalorder %s33, 0
    %p249 = por %p247, %p248
    %s251 = sadd.s32 %s250, 1
    %p254 = scmp.eq.s32.totalorder %s27, 1
    %p255 = scmp.ne.s32.totalorder %s250, %s252
    %p256 = scmp.eq.s32.totalorder %s27, 0
    %p257 = por %p255, %p256
    %p258 = scmp.ne.s32.totalorder %s250, %s252
    %p259 = scmp.eq.s32.totalorder %s32, 1
    %p260 = por %p258, %p259
    %p261 = scmp.ne.s32.totalorder %s252, %s253
    %p262 = scmp.eq.s32.totalorder %s32, 0
    %p263 = por %p261, %p262
    %p264 = scmp.ne.s32.totalorder %s252, %s253
    %p265 = scmp.eq.s32.totalorder %s33, 1
    %p266 = por %p264, %p265
    %p268 = scmp.ne.s32.totalorder %s253, %s267
    %p269 = scmp.eq.s32.totalorder %s33, 0
    %p270 = por %p268, %p269
    %s272 = sadd.s32 %s271, 1
    %p275 = scmp.eq.s32.totalorder %s27, 1
    %p276 = scmp.ne.s32.totalorder %s271, %s273
    %p277 = scmp.eq.s32.totalorder %s27, 0
    %p278 = por %p276, %p277
    %p279 = scmp.ne.s32.totalorder %s271, %s273
    %p280 = scmp.eq.s32.totalorder %s32, 1
    %p281 = por %p279, %p280
    %p282 = scmp.ne.s32.totalorder %s273, %s274
    %p283 = scmp.eq.s32.totalorder %s32, 0
    %p284 = por %p282, %p283
    %p285 = scmp.ne.s32.totalorder %s273, %s274
    %p286 = scmp.eq.s32.totalorder %s33, 1
    %p287 = por %p285, %p286
    %p289 = scmp.ne.s32.totalorder %s274, %s288
    %p290 = scmp.eq.s32.totalorder %s33, 0
    %p291 = por %p289, %p290
    %s293 = sadd.s32 %s292, 1
    %p296 = scmp.eq.s32.totalorder %s27, 1
    %p297 = scmp.ne.s32.totalorder %s292, %s294
    %p298 = scmp.eq.s32.totalorder %s27, 0
    %p299 = por %p297, %p298
    %p300 = scmp.ne.s32.totalorder %s292, %s294
    %p301 = scmp.eq.s32.totalorder %s32, 1
    %p302 = por %p300, %p301
    %p303 = scmp.ne.s32.totalorder %s294, %s295
    %p304 = scmp.eq.s32.totalorder %s32, 0
    %p305 = por %p303, %p304
    %p306 = scmp.ne.s32.totalorder %s294, %s295
    %p307 = scmp.eq.s32.totalorder %s33, 1
    %p308 = por %p306, %p307
    %p310 = scmp.ne.s32.totalorder %s295, %s309
    %p311 = scmp.eq.s32.totalorder %s33, 0
    %p312 = por %p310, %p311
    %s314 = sadd.s32 %s313, 1
    %p317 = scmp.eq.s32.totalorder %s27, 1
    %p318 = scmp.ne.s32.totalorder %s313, %s315
    %p319 = scmp.eq.s32.totalorder %s27, 0
    %p320 = por %p318, %p319
    %p321 = scmp.ne.s32.totalorder %s313, %s315
    %p322 = scmp.eq.s32.totalorder %s32, 1
    %p323 = por %p321, %p322
    %p324 = scmp.ne.s32.totalorder %s315, %s316
    %p325 = scmp.eq.s32.totalorder %s32, 0
    %p326 = por %p324, %p325
    %p327 = scmp.ne.s32.totalorder %s315, %s316
    %p328 = scmp.eq.s32.totalorder %s33, 1
    %p329 = por %p327, %p328
    %p331 = scmp.ne.s32.totalorder %s316, %s330
    %p332 = scmp.eq.s32.totalorder %s33, 0
    %p333 = por %p331, %p332
    %s335 = sadd.s32 %s334, 1
    %p338 = scmp.eq.s32.totalorder %s27, 1
    %p339 = scmp.ne.s32.totalorder %s334, %s336
    %p340 = scmp.eq.s32.totalorder %s27, 0
    %p341 = por %p339, %p340
    %p342 = scmp.ne.s32.totalorder %s334, %s336
    %p343 = scmp.eq.s32.totalorder %s32, 1
    %p344 = por %p342, %p343
    %p345 = scmp.ne.s32.totalorder %s336, %s337
    %p346 = scmp.eq.s32.totalorder %s32, 0
    %p347 = por %p345, %p346
    %p348 = scmp.ne.s32.totalorder %s336, %s337
    %p349 = scmp.eq.s32.totalorder %s33, 1
    %p350 = por %p348, %p349
    %p352 = scmp.ne.s32.totalorder %s337, %s351
    %p353 = scmp.eq.s32.totalorder %s33, 0
    %p354 = por %p352, %p353
    %s356 = sadd.s32 %s355, 1
    %p359 = scmp.eq.s32.totalorder %s27, 1
    %p360 = scmp.ne.s32.totalorder %s355, %s357
    %p361 = scmp.eq.s32.totalorder %s27, 0
    %p362 = por %p360, %p361
    %p363 = scmp.ne.s32.totalorder %s355, %s357
    %p364 = scmp.eq.s32.totalorder %s32, 1
    %p365 = por %p363, %p364
    %p366 = scmp.ne.s32.totalorder %s357, %s358
    %p367 = scmp.eq.s32.totalorder %s32, 0
    %p368 = por %p366, %p367
    %p369 = scmp.ne.s32.totalorder %s357, %s358
    %p370 = scmp.eq.s32.totalorder %s33, 1
    %p371 = por %p369, %p370
    %p373 = scmp.ne.s32.totalorder %s358, %s372
    %p374 = scmp.eq.s32.totalorder %s33, 0
    %p375 = por %p373, %p374
    %s377 = sadd.s32 %s376, 1
    %p380 = scmp.eq.s32.totalorder %s27, 1
    %p381 = scmp.ne.s32.totalorder %s376, %s378
    %p382 = scmp.eq.s32.totalorder %s27, 0
    %p383 = por %p381, %p382
    %p384 = scmp.ne.s32.totalorder %s376, %s378
    %p385 = scmp.eq.s32.totalorder %s32, 1
    %p386 = por %p384, %p385
    %p387 = scmp.ne.s32.totalorder %s378, %s379
    %p388 = scmp.eq.s32.totalorder %s32, 0
    %p389 = por %p387, %p388
    %p390 = scmp.ne.s32.totalorder %s378, %s379
    %p391 = scmp.eq.s32.totalorder %s33, 1
    %p392 = por %p390, %p391
    %p394 = scmp.ne.s32.totalorder %s379, %s393
    %p395 = scmp.eq.s32.totalorder %s33, 0
    %p396 = por %p394, %p395
    %s398 = sadd.s32 %s397, 1
    %p401 = scmp.eq.s32.totalorder %s27, 1
    %p402 = scmp.ne.s32.totalorder %s397, %s399
    %p403 = scmp.eq.s32.totalorder %s27, 0
    %p404 = por %p402, %p403
    %p405 = scmp.ne.s32.totalorder %s397, %s399
    %p406 = scmp.eq.s32.totalorder %s32, 1
    %p407 = por %p405, %p406
    %p408 = scmp.ne.s32.totalorder %s399, %s400
    %p409 = scmp.eq.s32.totalorder %s32, 0
    %p410 = por %p408, %p409
    %p411 = scmp.ne.s32.totalorder %s399, %s400
    %p412 = scmp.eq.s32.totalorder %s33, 1
    %p413 = por %p411, %p412
    %p415 = scmp.ne.s32.totalorder %s400, %s414
    %p416 = scmp.eq.s32.totalorder %s33, 0
    %p417 = por %p415, %p416
    %s419 = sadd.s32 %s418, 1
    %p422 = scmp.eq.s32.totalorder %s27, 1
    %p423 = scmp.ne.s32.totalorder %s418, %s420
    %p424 = scmp.eq.s32.totalorder %s27, 0
    %p425 = por %p423, %p424
    %p426 = scmp.ne.s32.totalorder %s418, %s420
    %p427 = scmp.eq.s32.totalorder %s32, 1
    %p428 = por %p426, %p427
    %p429 = scmp.ne.s32.totalorder %s420, %s421
    %p430 = scmp.eq.s32.totalorder %s32, 0
    %p431 = por %p429, %p430
    %p432 = scmp.ne.s32.totalorder %s420, %s421
    %p433 = scmp.eq.s32.totalorder %s33, 1
    %p434 = por %p432, %p433
    %p436 = scmp.ne.s32.totalorder %s421, %s435
    %p437 = scmp.eq.s32.totalorder %s33, 0
    %p438 = por %p436, %p437
    %s440 = sadd.s32 %s439, 1
    %p443 = scmp.eq.s32.totalorder %s27, 1
    %p444 = scmp.ne.s32.totalorder %s439, %s441
    %p445 = scmp.eq.s32.totalorder %s27, 0
    %p446 = por %p444, %p445
    %p447 = scmp.ne.s32.totalorder %s439, %s441
    %p448 = scmp.eq.s32.totalorder %s32, 1
    %p449 = por %p447, %p448
    %p450 = scmp.ne.s32.totalorder %s441, %s442
    %p451 = scmp.eq.s32.totalorder %s32, 0
    %p452 = por %p450, %p451
    %p453 = scmp.ne.s32.totalorder %s441, %s442
    %p454 = scmp.eq.s32.totalorder %s33, 1
    %p455 = por %p453, %p454
    %p457 = scmp.ne.s32.totalorder %s442, %s456
    %p458 = scmp.eq.s32.totalorder %s33, 0
    %p459 = por %p457, %p458
    %s461 = sadd.s32 %s460, 1
    %p464 = scmp.eq.s32.totalorder %s27, 1
    %p465 = scmp.ne.s32.totalorder %s460, %s462
    %p466 = scmp.eq.s32.totalorder %s27, 0
    %p467 = por %p465, %p466
    %p468 = scmp.ne.s32.totalorder %s460, %s462
    %p469 = scmp.eq.s32.totalorder %s32, 1
    %p470 = por %p468, %p469
    %p471 = scmp.ne.s32.totalorder %s462, %s463
    %p472 = scmp.eq.s32.totalorder %s32, 0
    %p473 = por %p471, %p472
    %p474 = scmp.ne.s32.totalorder %s462, %s463
    %p475 = scmp.eq.s32.totalorder %s33, 1
    %p476 = por %p474, %p475
    %p478 = scmp.ne.s32.totalorder %s463, %s477
    %p479 = scmp.eq.s32.totalorder %s33, 0
    %p480 = por %p478, %p479
    %s481 = ssub.s32 %s27, %s34
    %p482 = scmp.eq.s32.totalorder %s481, 0
    %s484 = sadd.s32 %s483, 1
    %s485 = scalar_select %p482, %s483, %s484
    %p488 = pneg %p482
    %p489 = scmp.eq.s32.totalorder %s27, 1
    %p490 = por %p488, %p489
    %p491 = scmp.ne.s32.totalorder %s483, %s486
    %p492 = scmp.eq.s32.totalorder %s27, 0
    %p493 = por %p491, %p492
    %p494 = scmp.ne.s32.totalorder %s483, %s486
    %p495 = scmp.eq.s32.totalorder %s32, 1
    %p496 = por %p494, %p495
    %p497 = scmp.ne.s32.totalorder %s486, %s487
    %p498 = scmp.eq.s32.totalorder %s32, 0
    %p499 = por %p497, %p498
    %p500 = scmp.ne.s32.totalorder %s486, %s487
    %p501 = scmp.eq.s32.totalorder %s33, 1
    %p502 = por %p500, %p501
    %p504 = scmp.ne.s32.totalorder %s487, %s503
    %p505 = scmp.eq.s32.totalorder %s33, 0
    %p506 = por %p504, %p505
    %p507 = scmp.le.s32.totalorder 1, %s27
    %p508 = scmp.lt.s32.totalorder %s27, 3
    %p509 = pnand %p507, %p508
    %p510 = pneg %p509
    // Predicated region
    $region9: #{encode_image.1} parent=5 // pred_check
      _
    $region10: #{encode_image.1} parent=5 // pred_check_branch
      %512 = sbr.rel (%p509) target = $region12
    $region11: #{encode_image.1} parent=5 // pred_region
      %s513 = ssub.s32 %s27, 1
      // Predicated region
      $region13: #{encode_image.1} parent=11 // pred_check
        %p514 = pneg %p74
      $region14: #{encode_image.1} parent=11 // pred_check_branch
        %516 = sbr.rel (%p514) target = $region16
      $region15: #{encode_image.1} parent=11 // pred_region
        _
      $region16: #{encode_image.1} parent=11 // pred_fallthru
        _
      // Predicated region
      $region17: #{encode_image.1} parent=11 // pred_check
        %p517 = pneg %p95
      $region18: #{encode_image.1} parent=11 // pred_check_branch
        %519 = sbr.rel (%p517) target = $region20
      $region19: #{encode_image.1} parent=11 // pred_region
        _
      $region20: #{encode_image.1} parent=11 // pred_fallthru
        _
      // Predicated region
      $region21: #{encode_image.1} parent=11 // pred_check
        %p520 = pneg %p116
      $region22: #{encode_image.1} parent=11 // pred_check_branch
        %522 = sbr.rel (%p520) target = $region24
      $region23: #{encode_image.1} parent=11 // pred_region
        _
      $region24: #{encode_image.1} parent=11 // pred_fallthru
        _
      // Predicated region
      $region25: #{encode_image.1} parent=11 // pred_check
        %p523 = pneg %p137
      $region26: #{encode_image.1} parent=11 // pred_check_branch
        %525 = sbr.rel (%p523) target = $region28
      $region27: #{encode_image.1} parent=11 // pred_region
        _
      $region28: #{encode_image.1} parent=11 // pred_fallthru
        _
      // Predicated region
      $region29: #{encode_image.1} parent=11 // pred_check
        %p526 = pneg %p158
      $region30: #{encode_image.1} parent=11 // pred_check_branch
        %528 = sbr.rel (%p526) target = $region32
      $region31: #{encode_image.1} parent=11 // pred_region
        _
      $region32: #{encode_image.1} parent=11 // pred_fallthru
        _
      // Predicated region
      $region33: #{encode_image.1} parent=11 // pred_check
        %p529 = pneg %p179
      $region34: #{encode_image.1} parent=11 // pred_check_branch
        %531 = sbr.rel (%p529) target = $region36
      $region35: #{encode_image.1} parent=11 // pred_region
        _
      $region36: #{encode_image.1} parent=11 // pred_fallthru
        _
      // Predicated region
      $region37: #{encode_image.1} parent=11 // pred_check
        %p532 = pneg %p200
      $region38: #{encode_image.1} parent=11 // pred_check_branch
        %534 = sbr.rel (%p532) target = $region40
      $region39: #{encode_image.1} parent=11 // pred_region
        _
      $region40: #{encode_image.1} parent=11 // pred_fallthru
        _
      // Predicated region
      $region41: #{encode_image.1} parent=11 // pred_check
        %p535 = pneg %p221
      $region42: #{encode_image.1} parent=11 // pred_check_branch
        %537 = sbr.rel (%p535) target = $region44
      $region43: #{encode_image.1} parent=11 // pred_region
        _
      $region44: #{encode_image.1} parent=11 // pred_fallthru
        _
      // Predicated region
      $region45: #{encode_image.1} parent=11 // pred_check
        %p538 = pneg %p242
      $region46: #{encode_image.1} parent=11 // pred_check_branch
        %540 = sbr.rel (%p538) target = $region48
      $region47: #{encode_image.1} parent=11 // pred_region
        _
      $region48: #{encode_image.1} parent=11 // pred_fallthru
        _
      // Predicated region
      $region49: #{encode_image.1} parent=11 // pred_check
        %p541 = pneg %p263
      $region50: #{encode_image.1} parent=11 // pred_check_branch
        %543 = sbr.rel (%p541) target = $region52
      $region51: #{encode_image.1} parent=11 // pred_region
        _
      $region52: #{encode_image.1} parent=11 // pred_fallthru
        _
      // Predicated region
      $region53: #{encode_image.1} parent=11 // pred_check
        %p544 = pneg %p284
      $region54: #{encode_image.1} parent=11 // pred_check_branch
        %546 = sbr.rel (%p544) target = $region56
      $region55: #{encode_image.1} parent=11 // pred_region
        _
      $region56: #{encode_image.1} parent=11 // pred_fallthru
        _
      // Predicated region
      $region57: #{encode_image.1} parent=11 // pred_check
        %p547 = pneg %p305
      $region58: #{encode_image.1} parent=11 // pred_check_branch
        %549 = sbr.rel (%p547) target = $region60
      $region59: #{encode_image.1} parent=11 // pred_region
        _
      $region60: #{encode_image.1} parent=11 // pred_fallthru
        _
      // Predicated region
      $region61: #{encode_image.1} parent=11 // pred_check
        %p550 = pneg %p326
      $region62: #{encode_image.1} parent=11 // pred_check_branch
        %552 = sbr.rel (%p550) target = $region64
      $region63: #{encode_image.1} parent=11 // pred_region
        _
      $region64: #{encode_image.1} parent=11 // pred_fallthru
        _
      // Predicated region
      $region65: #{encode_image.1} parent=11 // pred_check
        %p553 = pneg %p347
      $region66: #{encode_image.1} parent=11 // pred_check_branch
        %555 = sbr.rel (%p553) target = $region68
      $region67: #{encode_image.1} parent=11 // pred_region
        _
      $region68: #{encode_image.1} parent=11 // pred_fallthru
        _
      // Predicated region
      $region69: #{encode_image.1} parent=11 // pred_check
        %p556 = pneg %p368
      $region70: #{encode_image.1} parent=11 // pred_check_branch
        %558 = sbr.rel (%p556) target = $region72
      $region71: #{encode_image.1} parent=11 // pred_region
        _
      $region72: #{encode_image.1} parent=11 // pred_fallthru
        _
      // Predicated region
      $region73: #{encode_image.1} parent=11 // pred_check
        %p559 = pneg %p389
      $region74: #{encode_image.1} parent=11 // pred_check_branch
        %561 = sbr.rel (%p559) target = $region76
      $region75: #{encode_image.1} parent=11 // pred_region
        _
      $region76: #{encode_image.1} parent=11 // pred_fallthru
        _
      // Predicated region
      $region77: #{encode_image.1} parent=11 // pred_check
        %p562 = pneg %p410
      $region78: #{encode_image.1} parent=11 // pred_check_branch
        %564 = sbr.rel (%p562) target = $region80
      $region79: #{encode_image.1} parent=11 // pred_region
        _
      $region80: #{encode_image.1} parent=11 // pred_fallthru
        _
      // Predicated region
      $region81: #{encode_image.1} parent=11 // pred_check
        %p565 = pneg %p431
      $region82: #{encode_image.1} parent=11 // pred_check_branch
        %567 = sbr.rel (%p565) target = $region84
      $region83: #{encode_image.1} parent=11 // pred_region
        _
      $region84: #{encode_image.1} parent=11 // pred_fallthru
        _
      // Predicated region
      $region85: #{encode_image.1} parent=11 // pred_check
        %p568 = pneg %p452
      $region86: #{encode_image.1} parent=11 // pred_check_branch
        %570 = sbr.rel (%p568) target = $region88
      $region87: #{encode_image.1} parent=11 // pred_region
        _
      $region88: #{encode_image.1} parent=11 // pred_fallthru
        _
      // Predicated region
      $region89: #{encode_image.1} parent=11 // pred_check
        %p571 = pneg %p473
      $region90: #{encode_image.1} parent=11 // pred_check_branch
        %573 = sbr.rel (%p571) target = $region92
      $region91: #{encode_image.1} parent=11 // pred_region
        _
      $region92: #{encode_image.1} parent=11 // pred_fallthru
        _
    $region12: #{encode_image.1} parent=5 // pred_fallthru
      _
    %p574 = scmp.lt.s32.totalorder %s27, 2
    // Predicated region
    $region93: #{encode_image.1} parent=5 // pred_check
      %p575 = pneg %p574
    $region94: #{encode_image.1} parent=5 // pred_check_branch
      %577 = sbr.rel (%p575) target = $region96
    $region95: #{encode_image.1} parent=5 // pred_region
      // Predicated region
      $region97: #{encode_image.1} parent=95 // pred_check
        %p578 = pneg %p47
      $region98: #{encode_image.1} parent=95 // pred_check_branch
        %580 = sbr.rel (%p578) target = $region100
      $region99: #{encode_image.1} parent=95 // pred_region
        %p581 = scmp.lt.s32.totalorder %s27, 1
        %s582 = scalar_select %p581, %s27, 1
        %s583 = smul.addr %s582, 3
        %s584 = smul.addr %s583, 4
        %s585 = scalar_lea.vmem %s0, %s584
      $region100: #{encode_image.1} parent=95 // pred_fallthru
        _
    $region96: #{encode_image.1} parent=5 // pred_fallthru
      _
    %p586 = scmp.le.s32.totalorder 1, %s27
    %p587 = scmp.lt.s32.totalorder %s27, 3
    %p588 = pnand %p586, %p587
    %p589 = pneg %p588
    // Predicated region
    $region101: #{encode_image.1} parent=5 // pred_check
      _
    $region102: #{encode_image.1} parent=5 // pred_check_branch
      %591 = sbr.rel (%p588) target = $region104
    $region103: #{encode_image.1} parent=5 // pred_region
      %s592 = ssub.s32 %s27, 1
      %p593 = scmp.lt.s32.totalorder %s32, 1
      %s594 = scalar_select %p593, %s32, 1
      %s595 = smul.addr %s594, 3
      %s596 = smul.addr %s595, 4
      %s597 = scalar_lea.vmem %s0, %s596
      %p598 = pneg %p53
      %p599 = pneg %p50
      %p600 = pneg %p74
      %p601 = pneg %p71
      %p602 = pneg %p95
      %p603 = pneg %p92
      %p604 = pneg %p116
      %p605 = pneg %p113
      %p606 = pneg %p137
      %p607 = pneg %p134
      %p608 = pneg %p158
      %p609 = pneg %p155
      %p610 = pneg %p179
      %p611 = pneg %p176
      %p612 = pneg %p200
      %p613 = pneg %p197
      %p614 = pneg %p221
      %p615 = pneg %p218
      %p616 = pneg %p242
      %p617 = pneg %p239
      %p618 = pneg %p263
      %p619 = pneg %p260
      %p620 = pneg %p284
      %p621 = pneg %p281
      %p622 = pneg %p305
      %p623 = pneg %p302
      %p624 = pneg %p326
      %p625 = pneg %p323
      %p626 = pneg %p347
      %p627 = pneg %p344
      %p628 = pneg %p368
      %p629 = pneg %p365
      %p630 = pneg %p389
      %p631 = pneg %p386
      %p632 = pneg %p410
      %p633 = pneg %p407
      %p634 = pneg %p431
      %p635 = pneg %p428
      %p636 = pneg %p452
      %p637 = pneg %p449
      %p638 = pneg %p473
      %p639 = pneg %p470
      %p640 = pneg %p499
      %p641 = pneg %p496
      %p642 = scmp.lt.s32.totalorder %s32, 1
      %s643 = scalar_select %p642, %s32, 1
      %s644 = smul.addr %s643, 8
      %s645 = scalar_lea.vmem %s21, %s644
      %p646 = scmp.lt.s32.totalorder %s32, 1
      %s647 = scalar_select %p646, %s32, 1
      %s648 = smul.addr %s647, 3
      %s649 = smul.addr %s648, 4
      %s650 = scalar_lea.vmem %s0, %s649
      %p651 = scmp.lt.s32.totalorder %s32, 1
      %s652 = scalar_select %p651, %s32, 1
      %s653 = smul.addr %s652, 8
      %s654 = scalar_lea.vmem %s21, %s653
      %v656 = vld [vmem:[%s650] sm:$0xf]
      %v657 = vld [vmem:[%s650 + $0x4] sm:$0xf]
      %v658 = vld [vmem:[%s650 + $0x8] sm:$0xf]
      %v659 = vld [vmem:[%s1] sm:$0xf]
      %v660 = vld [vmem:[%s1 + $0x4] sm:$0xf]
      %v661 = vld [vmem:[%s1 + $0x8] sm:$0xf]
      %v662 = vld [vmem:[%s1 + $0xc] sm:$0xf]
      %v663 = vld [vmem:[%s1 + $0x10] sm:$0xf]
      %v664 = vld [vmem:[%s1 + $0x14] sm:$0xf]
      %v665 = vld [vmem:[%s2] sm:$0xff]
      %v666 = vld [vmem:[%s2 + $0x8] sm:$0xff]
      %v667 = vld [vmem:[%s2 + $0x10] sm:$0xff]
      %v671 = vunpack.c.l.b16 %v656
      %v672 = vunpack.c.l.b16 %v657
      %v673 = vunpack.c.l.b16 %v658
      %v674 = vpack.c.b16 %v672, %v671
      %v675 = vpack.c.b16 %v673, %v673
      %v682 = vunpack.c.l.b16 %v659
      %v683 = vunpack.c.l.b16 %v660
      %v684 = vunpack.c.l.b16 %v661
      %v685 = vunpack.c.l.b16 %v662
      %v686 = vunpack.c.l.b16 %v663
      %v687 = vunpack.c.l.b16 %v664
      %v688 = vpack.c.b16 %v683, %v682
      %v689 = vpack.c.b16 %v685, %v684
      %v690 = vpack.c.b16 %v687, %v686
      %vm694 = vcmask 392192
      %v696 = vsel %vm694, %v674, 0
      %v699 = vsel %vm694, %v675, 0
      %701 = vmatprep.subr.bf16.mxu0 0
      %702 = vmatpush1.bf16.msra.mxu0 %v688
      %703 = vmatprep.subr.bf16.mxu0 0
      %704 = vmatpush1.bf16.msra.mxu0 %v689
      %705 = vmatprep.subr.bf16.mxu0 0
      %706 = vmatpush1.bf16.msra.mxu0 %v690
      %707 = vmatprep.subr.bf16.mxu0 0
      %708 = vmatpush1.bf16.msra.mxu0 0
      %709 = vmatprep.subr.bf16.mxu0 0
      %710 = vmatpush1.bf16.msra.mxu0 0
      %711 = vmatprep.subr.bf16.mxu0 0
      %712 = vmatpush1.bf16.msra.mxu0 0
      %713 = vmatprep.subr.bf16.mxu0 0
      %714 = vmatpush1.bf16.msra.mxu0 0
      %715 = vmatprep.subr.bf16.mxu0 0
      %716 = vmatpush1.bf16.msra.mxu0 0
      %717 = vmatprep.subr.bf16.mxu0 0
      %718 = vmatpush1.bf16.msra.mxu0 0
      %719 = vmatprep.subr.bf16.mxu0 0
      %720 = vmatpush1.bf16.msra.mxu0 0
      %721 = vmatprep.subr.bf16.mxu0 0
      %722 = vmatpush1.bf16.msra.mxu0 0
      %723 = vmatprep.subr.bf16.mxu0 0
      %724 = vmatpush1.bf16.msra.mxu0 0
      %725 = vmatprep.subr.bf16.mxu0 0
      %726 = vmatpush1.bf16.msra.mxu0 0
      %727 = vmatprep.subr.bf16.mxu0 0
      %728 = vmatpush1.bf16.msra.mxu0 0
      %729 = vmatprep.subr.bf16.mxu0 0
      %730 = vmatpush1.bf16.msra.mxu0 0
      %731 = vmatprep.subr.bf16.mxu0 0
      %732 = vmatpush1.bf16.msra.mxu0 0
      %733 = vmatprep.mubr.bf16.mxu0 0
      %734 = vmatmul.mubr.bf16.gmra.mrb[0].mxu0 %v696
      %v735 = vpop.f32.mrb[0].mxu0
      %v736 = vadd.f32 %v665, %v735
      %v737 = vpop.f32.mrb[0].mxu0
      %v738 = vpop.f32.mrb[0].mxu0
      %v739 = vadd.f32 %v666, %v738
      %v740 = vpop.f32.mrb[0].mxu0
      %741 = vmatprep.mubr.bf16.mxu0 0
      %742 = vmatmul.mubr.bf16.gmra.mrb[0].mxu0 %v699
      %v743 = vpop.f32.mrb[0].mxu0
      %v744 = vadd.f32 %v667, %v743
      %v745 = vpop.f32.mrb[0].mxu0
      %v746 = vpop.f32.mrb[0].mxu0
      %v747 = vpop.f32.mrb[0].mxu0
      %748 = vdwg.mxu0
      %v749 = vld [vmem:[%s4] sm:$0x1]
      %v750 = vld [vmem:[%s5] sm:$0x1]
      %vm751 = vcmask 261120
      %v752 = vsel %vm751, %v736, 0.0
      %753 = vadd.xlane.f32.xlu0 %v752
      %v754 = vpop.xlane.xlu0 %753
      %v755 = vsel %vm751, %v739, 0.0
      %756 = vadd.xlane.f32.xlu0 %v755
      %v757 = vpop.xlane.xlu0 %756
      %v758 = vsel %vm751, %v744, 0.0
      %759 = vadd.xlane.f32.xlu0 %v758
      %v760 = vpop.xlane.xlu0 %759
      %v761 = vrcp.pop 32.0
      %v762 = vmul.f32 %v754, %v761
      %v763 = vmul.f32 %v757, %v761
      %v764 = vmul.f32 %v760, %v761
      %v765 = vsub.f32 %v736, %v762
      %v766 = vsub.f32 %v739, %v763
      %v767 = vsub.f32 %v744, %v764
      %v768 = vmul.f32 %v765, %v765
      %v769 = vmul.f32 %v766, %v766
      %v770 = vmul.f32 %v767, %v767
      %v771 = vsel %vm751, %v768, 0.0
      %772 = vadd.xlane.f32.xlu0 %v771
      %v773 = vpop.xlane.xlu0 %772
      %v774 = vsel %vm751, %v769, 0.0
      %775 = vadd.xlane.f32.xlu0 %v774
      %v776 = vpop.xlane.xlu0 %775
      %v777 = vsel %vm751, %v770, 0.0
      %778 = vadd.xlane.f32.xlu0 %v777
      %v779 = vpop.xlane.xlu0 %778
      %v780 = vmul.f32 %v773, %v761
      %v781 = vmul.f32 %v776, %v761
      %v782 = vmul.f32 %v779, %v761
      %v783 = vadd.f32 %v780, 1e-05
      %v784 = vadd.f32 %v781, 1e-05
      %v785 = vadd.f32 %v782, 1e-05
      %v786 = vrsqrt.pop %v783
      %v787 = vrsqrt.pop %v784
      %v788 = vrsqrt.pop %v785
      %v789 = vmul.f32 %v765, %v786
      %v790 = vmul.f32 %v766, %v787
      %v791 = vmul.f32 %v767, %v788
      %v793 = vlaneseq
      %v794 = vshrl.u32 %v793, 7
      %v795 = vsub.s32 0, %v794
      %v796 = vrot.slane %v749, %v795
      %v798 = vmul.f32 %v789, %v796
      %v799 = vmul.f32 %v790, %v796
      %v800 = vmul.f32 %v791, %v796
      %v802 = vlaneseq
      %v803 = vshrl.u32 %v802, 7
      %v804 = vsub.s32 0, %v803
      %v805 = vrot.slane %v750, %v804
      %v807 = vadd.f32 %v798, %v805
      %v808 = vadd.f32 %v799, %v805
      %v809 = vadd.f32 %v800, %v805
      %v810 = vld [vmem:[%s3] sm:$0x1]
      %v811 = vld [vmem:[%s6] sm:$0x1]
      %v812 = vld [vmem:[%s7] sm:$0x1]
      %v813 = vsel %vm751, %v807, 0.0
      %814 = vadd.xlane.f32.xlu0 %v813
      %v815 = vpop.xlane.xlu0 %814
      %v816 = vsel %vm751, %v808, 0.0
      %817 = vadd.xlane.f32.xlu0 %v816
      %v818 = vpop.xlane.xlu0 %817
      %v819 = vsel %vm751, %v809, 0.0
      %820 = vadd.xlane.f32.xlu0 %v819
      %v821 = vpop.xlane.xlu0 %820
      %v822 = vmul.f32 %v815, %v761
      %v823 = vmul.f32 %v818, %v761
      %v824 = vmul.f32 %v821, %v761
      %v825 = vsub.f32 %v807, %v822
      %v826 = vsub.f32 %v808, %v823
      %v827 = vsub.f32 %v809, %v824
      %v828 = vmul.f32 %v825, %v825
      %v829 = vmul.f32 %v826, %v826
      %v830 = vmul.f32 %v827, %v827
      %v831 = vsel %vm751, %v828, 0.0
      %832 = vadd.xlane.f32.xlu0 %v831
      %v833 = vpop.xlane.xlu0 %832
      %v834 = vsel %vm751, %v829, 0.0
      %835 = vadd.xlane.f32.xlu0 %v834
      %v836 = vpop.xlane.xlu0 %835
      %v837 = vsel %vm751, %v830, 0.0
      %838 = vadd.xlane.f32.xlu0 %v837
      %v839 = vpop.xlane.xlu0 %838
      %v840 = vmul.f32 %v833, %v761
      %v841 = vmul.f32 %v836, %v761
      %v842 = vmul.f32 %v839, %v761
      %v843 = vadd.f32 %v840, 1e-05
      %v844 = vadd.f32 %v841, 1e-05
      %v845 = vadd.f32 %v842, 1e-05
      %v846 = vrsqrt.pop %v843
      %v847 = vrsqrt.pop %v844
      %v848 = vrsqrt.pop %v845
      %v849 = vmul.f32 %v825, %v846
      %v850 = vmul.f32 %v826, %v847
      %v851 = vmul.f32 %v827, %v848
      %v853 = vlaneseq
      %v854 = vshrl.u32 %v853, 7
      %v855 = vsub.s32 0, %v854
      %v856 = vrot.slane %v811, %v855
      %v858 = vmul.f32 %v849, %v856
      %v859 = vmul.f32 %v850, %v856
      %v860 = vmul.f32 %v851, %v856
      %v862 = vlaneseq
      %v863 = vshrl.u32 %v862, 7
      %v864 = vsub.s32 0, %v863
      %v865 = vrot.slane %v812, %v864
      %v867 = vadd.f32 %v858, %v865
      %v868 = vadd.f32 %v859, %v865
      %v869 = vadd.f32 %v860, %v865
      %v870 = vpack.c.bf16 %v868, %v867
      %v871 = vpack.c.bf16 %v869, %v869
      %v872 = vld [vmem:[%s8] sm:$0xf]
      %v873 = vld [vmem:[%s8 + $0x4] sm:$0xf]
      %v874 = vld [vmem:[%s8 + $0x8] sm:$0xf]
      %v875 = vld [vmem:[%s8 + $0xc] sm:$0xf]
      %v876 = vld [vmem:[%s9] sm:$0x1]
      %v878 = vlaneseq
      %v879 = vshrl.u32 %v878, 7
      %v880 = vsub.s32 0, %v879
      %v881 = vrot.slane %v876, %v880
      %v887 = vunpack.c.l.b16 %v872
      %v888 = vunpack.c.l.b16 %v873
      %v889 = vunpack.c.l.b16 %v874
      %v890 = vunpack.c.l.b16 %v875
      %v891 = vpack.c.b16 %v888, %v887
      %v892 = vpack.c.b16 %v890, %v889
      %v896 = vsel %vm751, %v870, 0
      %v899 = vsel %vm751, %v871, 0
      %901 = vmatprep.subr.bf16.mxu0 0
      %902 = vmatpush1.bf16.msra.mxu0 %v891
      %903 = vmatprep.subr.bf16.mxu0 0
      %904 = vmatpush1.bf16.msra.mxu0 %v892
      %905 = vmatprep.subr.bf16.mxu0 0
      %906 = vmatpush1.bf16.msra.mxu0 0
      %907 = vmatprep.subr.bf16.mxu0 0
      %908 = vmatpush1.bf16.msra.mxu0 0
      %909 = vmatprep.subr.bf16.mxu0 0
      %910 = vmatpush1.bf16.msra.mxu0 0
      %911 = vmatprep.subr.bf16.mxu0 0
      %912 = vmatpush1.bf16.msra.mxu0 0
      %913 = vmatprep.subr.bf16.mxu0 0
      %914 = vmatpush1.bf16.msra.mxu0 0
      %915 = vmatprep.subr.bf16.mxu0 0
      %916 = vmatpush1.bf16.msra.mxu0 0
      %917 = vmatprep.subr.bf16.mxu0 0
      %918 = vmatpush1.bf16.msra.mxu0 0
      %919 = vmatprep.subr.bf16.mxu0 0
      %920 = vmatpush1.bf16.msra.mxu0 0
      %921 = vmatprep.subr.bf16.mxu0 0
      %922 = vmatpush1.bf16.msra.mxu0 0
      %923 = vmatprep.subr.bf16.mxu0 0
      %924 = vmatpush1.bf16.msra.mxu0 0
      %925 = vmatprep.subr.bf16.mxu0 0
      %926 = vmatpush1.bf16.msra.mxu0 0
      %927 = vmatprep.subr.bf16.mxu0 0
      %928 = vmatpush1.bf16.msra.mxu0 0
      %929 = vmatprep.subr.bf16.mxu0 0
      %930 = vmatpush1.bf16.msra.mxu0 0
      %931 = vmatprep.subr.bf16.mxu0 0
      %932 = vmatpush1.bf16.msra.mxu0 0
      %933 = vmatprep.mubr.bf16.mxu0 0
      %934 = vmatmul.mubr.bf16.gmra.mrb[0].mxu0 %v896
      %v935 = vpop.f32.mrb[0].mxu0
      %v936 = vadd.f32 %v881, %v935
      %v937 = vpop.f32.mrb[0].mxu0
      %v938 = vpop.f32.mrb[0].mxu0
      %v939 = vadd.f32 %v881, %v938
      %v940 = vpop.f32.mrb[0].mxu0
      %941 = vmatprep.mubr.bf16.mxu0 0
      %942 = vmatmul.mubr.bf16.gmra.mrb[0].mxu0 %v899
      %v943 = vpop.f32.mrb[0].mxu0
      %v944 = vadd.f32 %v881, %v943
      %v945 = vpop.f32.mrb[0].mxu0
      %v946 = vpop.f32.mrb[0].mxu0
      %v947 = vpop.f32.mrb[0].mxu0
      %948 = vdwg.mxu0
      %v949 = vpack.c.bf16 %v939, %v936
      %v950 = vpack.c.bf16 %v944, %v944
      %953 = vrot.lane.b32.xlu0 %v949, 96
      %v954 = vpop.permute.xlu0 %953
      %955 = vrot.lane.b32.xlu0 %v950, 96
      %v956 = vpop.permute.xlu0 %955
      %vm957 = vcmask 64512
      %v959 = vsel %vm957, %v949, 0
      %v962 = vsel %vm957, %v950, 0
      %v965 = vsel %vm957, %v954, 0
      %v968 = vsel %vm957, %v956, 0
      %970 = vmatprep.subr.bf16.mxu0 0
      %971 = vmatpush1.bf16.xpose.msra.mxu0 %v965
      %972 = vmatprep.subr.bf16.mxu0 0
      %973 = vmatpush1.bf16.xpose.msra.mxu0 %v968
      %974 = vmatprep.subr.bf16.mxu0 0
      %975 = vmatpush1.bf16.xpose.msra.mxu0 0
      %976 = vmatprep.subr.bf16.mxu0 0
      %977 = vmatpush1.bf16.xpose.msra.mxu0 0
      %978 = vmatprep.subr.bf16.mxu0 0
      %979 = vmatpush1.bf16.xpose.msra.mxu0 0
      %980 = vmatprep.subr.bf16.mxu0 0
      %981 = vmatpush1.bf16.xpose.msra.mxu0 0
      %982 = vmatprep.subr.bf16.mxu0 0
      %983 = vmatpush1.bf16.xpose.msra.mxu0 0
      %984 = vmatprep.subr.bf16.mxu0 0
      %985 = vmatpush1.bf16.xpose.msra.mxu0 0
      %986 = vmatprep.subr.bf16.mxu0 0
      %987 = vmatpush1.bf16.xpose.msra.mxu0 0
      %988 = vmatprep.subr.bf16.mxu0 0
      %989 = vmatpush1.bf16.xpose.msra.mxu0 0
      %990 = vmatprep.subr.bf16.mxu0 0
      %991 = vmatpush1.bf16.xpose.msra.mxu0 0
      %992 = vmatprep.subr.bf16.mxu0 0
      %993 = vmatpush1.bf16.xpose.msra.mxu0 0
      %994 = vmatprep.subr.bf16.mxu0 0
      %995 = vmatpush1.bf16.xpose.msra.mxu0 0
      %996 = vmatprep.subr.bf16.mxu0 0
      %997 = vmatpush1.bf16.xpose.msra.mxu0 0
      %998 = vmatprep.subr.bf16.mxu0 0
      %999 = vmatpush1.bf16.xpose.msra.mxu0 0
      %1000 = vmatprep.subr.bf16.mxu0 0
      %1001 = vmatpush1.bf16.xpose.msra.mxu0 0
      %1002 = vmatprep.mubr.bf16.mxu0 0
      %1003 = vmatmul.mubr.bf16.gmra.mrb[0].mxu0 %v959
      %v1004 = vpop.f32.mrb[0].mxu0
      %v1005 = vadd.f32 0.0, %v1004
      %v1006 = vpop.f32.mrb[0].mxu0
      %v1007 = vpop.f32.mrb[0].mxu0
      %v1008 = vadd.f32 0.0, %v1007
      %v1009 = vpop.f32.mrb[0].mxu0
      %1010 = vmatprep.mubr.bf16.mxu0 0
      %1011 = vmatmul.mubr.bf16.gmra.mrb[0].mxu0 %v962
      %v1012 = vpop.f32.mrb[0].mxu0
      %v1013 = vadd.f32 0.0, %v1012
      %v1014 = vpop.f32.mrb[0].mxu0
      %v1015 = vpop.f32.mrb[0].mxu0
      %v1016 = vpop.f32.mrb[0].mxu0
      %1017 = vdwg.mxu0
      %1018 = vrot.lane.b32.xlu0 %v949, 120
      %v1019 = vpop.permute.xlu0 %1018
      %1020 = vrot.lane.b32.xlu0 %v950, 120
      %v1021 = vpop.permute.xlu0 %1020
      %1022 = vrot.lane.b32.xlu0 %v949, 88
      %v1023 = vpop.permute.xlu0 %1022
      %1024 = vrot.lane.b32.xlu0 %v950, 88
      %v1025 = vpop.permute.xlu0 %1024
      %v1027 = vsel %vm957, %v1019, 0
      %v1030 = vsel %vm957, %v1021, 0
      %v1033 = vsel %vm957, %v1023, 0
      %v1036 = vsel %vm957, %v1025, 0
      %1038 = vmatprep.subr.bf16.mxu0 0
      %1039 = vmatpush1.bf16.xpose.msra.mxu0 %v1033
      %1040 = vmatprep.subr.bf16.mxu0 0
      %1041 = vmatpush1.bf16.xpose.msra.mxu0 %v1036
      %1042 = vmatprep.subr.bf16.mxu0 0
      %1043 = vmatpush1.bf16.xpose.msra.mxu0 0
      %1044 = vmatprep.subr.bf16.mxu0 0
      %1045 = vmatpush1.bf16.xpose.msra.mxu0 0
      %1046 = vmatprep.subr.bf16.mxu0 0
      %1047 = vmatpush1.bf16.xpose.msra.mxu0 0
      %1048 = vmatprep.subr.bf16.mxu0 0
      %1049 = vmatpush1.bf16.xpose.msra.mxu0 0
      %1050 = vmatprep.subr.bf16.mxu0 0
      %1051 = vmatpush1.bf16.xpose.msra.mxu0 0
      %1052 = vmatprep.subr.bf16.mxu0 0
      %1053 = vmatpush1.bf16.xpose.msra.mxu0 0
      %1054 = vmatprep.subr.bf16.mxu0 0
      %1055 = vmatpush1.bf16.xpose.msra.mxu0 0
      %1056 = vmatprep.subr.bf16.mxu0 0
      %1057 = vmatpush1.bf16.xpose.msra.mxu0 0
      %1058 = vmatprep.subr.bf16.mxu0 0
      %1059 = vmatpush1.bf16.xpose.msra.mxu0 0
      %1060 = vmatprep.subr.bf16.mxu0 0
      %1061 = vmatpush1.bf16.xpose.msra.mxu0 0
      %1062 = vmatprep.subr.bf16.mxu0 0
      %1063 = vmatpush1.bf16.xpose.msra.mxu0 0
      %1064 = vmatprep.subr.bf16.mxu0 0
      %1065 = vmatpush1.bf16.xpose.msra.mxu0 0
      %1066 = vmatprep.subr.bf16.mxu0 0
      %1067 = vmatpush1.bf16.xpose.msra.mxu0 0
      %1068 = vmatprep.subr.bf16.mxu0 0
      %1069 = vmatpush1.bf16.xpose.msra.mxu0 0
      %1070 = vmatprep.mubr.bf16.mxu0 0
      %1071 = vmatmul.mubr.bf16.gmra.mrb[0].mxu0 %v1027
      %v1072 = vpop.f32.mrb[0].mxu0
      %v1073 = vadd.f32 0.0, %v1072
      %v1074 = vpop.f32.mrb[0].mxu0
      %v1075 = vpop.f32.mrb[0].mxu0
      %v1076 = vadd.f32 0.0, %v1075
      %v1077 = vpop.f32.mrb[0].mxu0
      %1078 = vmatprep.mubr.bf16.mxu0 0
      %1079 = vmatmul.mubr.bf16.gmra.mrb[0].mxu0 %v1030
      %v1080 = vpop.f32.mrb[0].mxu0
      %v1081 = vadd.f32 0.0, %v1080
      %v1082 = vpop.f32.mrb[0].mxu0
      %v1083 = vpop.f32.mrb[0].mxu0
      %v1084 = vpop.f32.mrb[0].mxu0
      %1085 = vdwg.mxu0
      %1086 = vrot.lane.b32.xlu0 %v949, 112
      %v1087 = vpop.permute.xlu0 %1086
      %1088 = vrot.lane.b32.xlu0 %v950, 112
      %v1089 = vpop.permute.xlu0 %1088
      %1090 = vrot.lane.b32.xlu0 %v949, 80
      %v1091 = vpop.permute.xlu0 %1090
      %1092 = vrot.lane.b32.xlu0 %v950, 80
      %v1093 = vpop.permute.xlu0 %1092
      %v1095 = vsel %vm957, %v1087, 0
      %v1098 = vsel %vm957, %v1089, 0
      %v1101 = vsel %vm957, %v1091, 0
      %v1104 = vsel %vm957, %v1093, 0
      %1106 = vmatprep.subr.bf16.mxu0 0
      %1107 = vmatpush1.bf16.xpose.msra.mxu0 %v1101
      %1108 = vmatprep.subr.bf16.mxu0 0
      %1109 = vmatpush1.bf16.xpose.msra.mxu0 %v1104
      %1110 = vmatprep.subr.bf16.mxu0 0
      %1111 = vmatpush1.bf16.xpose.msra.mxu0 0
      %1112 = vmatprep.subr.bf16.mxu0 0
      %1113 = vmatpush1.bf16.xpose.msra.mxu0 0
      %1114 = vmatprep.subr.bf16.mxu0 0
      %1115 = vmatpush1.bf16.xpose.msra.mxu0 0
      %1116 = vmatprep.subr.bf16.mxu0 0
      %1117 = vmatpush1.bf16.xpose.msra.mxu0 0
      %1118 = vmatprep.subr.bf16.mxu0 0
      %1119 = vmatpush1.bf16.xpose.msra.mxu0 0
      %1120 = vmatprep.subr.bf16.mxu0 0
      %1121 = vmatpush1.bf16.xpose.msra.mxu0 0
      %1122 = vmatprep.subr.bf16.mxu0 0
      %1123 = vmatpush1.bf16.xpose.msra.mxu0 0
      %1124 = vmatprep.subr.bf16.mxu0 0
      %1125 = vmatpush1.bf16.xpose.msra.mxu0 0
      %1126 = vmatprep.subr.bf16.mxu0 0
      %1127 = vmatpush1.bf16.xpose.msra.mxu0 0
      %1128 = vmatprep.subr.bf16.mxu0 0
      %1129 = vmatpush1.bf16.xpose.msra.mxu0 0
      %1130 = vmatprep.subr.bf16.mxu0 0
      %1131 = vmatpush1.bf16.xpose.msra.mxu0 0
      %1132 = vmatprep.subr.bf16.mxu0 0
      %1133 = vmatpush1.bf16.xpose.msra.mxu0 0
      %1134 = vmatprep.subr.bf16.mxu0 0
      %1135 = vmatpush1.bf16.xpose.msra.mxu0 0
      %1136 = vmatprep.subr.bf16.mxu0 0
      %1137 = vmatpush1.bf16.xpose.msra.mxu0 0
      %1138 = vmatprep.mubr.bf16.mxu0 0
      %1139 = vmatmul.mubr.bf16.gmra.mrb[0].mxu0 %v1095
      %v1140 = vpop.f32.mrb[0].mxu0
      %v1141 = vadd.f32 0.0, %v1140
      %v1142 = vpop.f32.mrb[0].mxu0
      %v1143 = vpop.f32.mrb[0].mxu0
      %v1144 = vadd.f32 0.0, %v1143
      %v1145 = vpop.f32.mrb[0].mxu0
      %1146 = vmatprep.mubr.bf16.mxu0 0
      %1147 = vmatmul.mubr.bf16.gmra.mrb[0].mxu0 %v1098
      %v1148 = vpop.f32.mrb[0].mxu0
      %v1149 = vadd.f32 0.0, %v1148
      %v1150 = vpop.f32.mrb[0].mxu0
      %v1151 = vpop.f32.mrb[0].mxu0
      %v1152 = vpop.f32.mrb[0].mxu0
      %1153 = vdwg.mxu0
      %1154 = vrot.lane.b32.xlu0 %v949, 104
      %v1155 = vpop.permute.xlu0 %1154
      %1156 = vrot.lane.b32.xlu0 %v950, 104
      %v1157 = vpop.permute.xlu0 %1156
      %1158 = vrot.lane.b32.xlu0 %v949, 72
      %v1159 = vpop.permute.xlu0 %1158
      %1160 = vrot.lane.b32.xlu0 %v950, 72
      %v1161 = vpop.permute.xlu0 %1160
      %v1163 = vsel %vm957, %v1155, 0
      %v1166 = vsel %vm957, %v1157, 0
      %v1169 = vsel %vm957, %v1159, 0
      %v1172 = vsel %vm957, %v1161, 0
      %1174 = vmatprep.subr.bf16.mxu0 0
      %1175 = vmatpush1.bf16.xpose.msra.mxu0 %v1169
      %1176 = vmatprep.subr.bf16.mxu0 0
      %1177 = vmatpush1.bf16.xpose.msra.mxu0 %v1172
      %1178 = vmatprep.subr.bf16.mxu0 0
      %1179 = vmatpush1.bf16.xpose.msra.mxu0 0
      %1180 = vmatprep.subr.bf16.mxu0 0
      %1181 = vmatpush1.bf16.xpose.msra.mxu0 0
      %1182 = vmatprep.subr.bf16.mxu0 0
      %1183 = vmatpush1.bf16.xpose.msra.mxu0 0
      %1184 = vmatprep.subr.bf16.mxu0 0
      %1185 = vmatpush1.bf16.xpose.msra.mxu0 0
      %1186 = vmatprep.subr.bf16.mxu0 0
      %1187 = vmatpush1.bf16.xpose.msra.mxu0 0
      %1188 = vmatprep.subr.bf16.mxu0 0
      %1189 = vmatpush1.bf16.xpose.msra.mxu0 0
      %1190 = vmatprep.subr.bf16.mxu0 0
      %1191 = vmatpush1.bf16.xpose.msra.mxu0 0
      %1192 = vmatprep.subr.bf16.mxu0 0
      %1193 = vmatpush1.bf16.xpose.msra.mxu0 0
      %1194 = vmatprep.subr.bf16.mxu0 0
      %1195 = vmatpush1.bf16.xpose.msra.mxu0 0
      %1196 = vmatprep.subr.bf16.mxu0 0
      %1197 = vmatpush1.bf16.xpose.msra.mxu0 0
      %1198 = vmatprep.subr.bf16.mxu0 0
      %1199 = vmatpush1.bf16.xpose.msra.mxu0 0
      %1200 = vmatprep.subr.bf16.mxu0 0
      %1201 = vmatpush1.bf16.xpose.msra.mxu0 0
      %1202 = vmatprep.subr.bf16.mxu0 0
      %1203 = vmatpush1.bf16.xpose.msra.mxu0 0
      %1204 = vmatprep.subr.bf16.mxu0 0
      %1205 = vmatpush1.bf16.xpose.msra.mxu0 0
      %1206 = vmatprep.mubr.bf16.mxu0 0
      %1207 = vmatmul.mubr.bf16.gmra.mrb[0].mxu0 %v1163
      %v1208 = vpop.f32.mrb[0].mxu0
      %v1209 = vadd.f32 0.0, %v1208
      %v1210 = vpop.f32.mrb[0].mxu0
      %v1211 = vpop.f32.mrb[0].mxu0
      %v1212 = vadd.f32 0.0, %v1211
      %v1213 = vpop.f32.mrb[0].mxu0
      %1214 = vmatprep.mubr.bf16.mxu0 0
      %1215 = vmatmul.mubr.bf16.gmra.mrb[0].mxu0 %v1166
      %v1216 = vpop.f32.mrb[0].mxu0
      %v1217 = vadd.f32 0.0, %v1216
      %v1218 = vpop.f32.mrb[0].mxu0
      %v1219 = vpop.f32.mrb[0].mxu0
      %v1220 = vpop.f32.mrb[0].mxu0
      %1221 = vdwg.mxu0
      %v1223 = vlaneseq
      %v1224 = vshrl.u32 %v1223, 7
      %v1225 = vsub.s32 0, %v1224
      %v1226 = vrot.slane %v810, %v1225
      %v1228 = vadd.f32 %v1005, %v1226
      %v1229 = vadd.f32 %v1008, %v1226
      %v1230 = vadd.f32 %v1013, %v1226
      %v1231 = vadd.f32 %v1073, %v1226
      %v1232 = vadd.f32 %v1076, %v1226
      %v1233 = vadd.f32 %v1081, %v1226
      %v1234 = vadd.f32 %v1141, %v1226
      %v1235 = vadd.f32 %v1144, %v1226
      %v1236 = vadd.f32 %v1149, %v1226
      %v1237 = vadd.f32 %v1209, %v1226
      %v1238 = vadd.f32 %v1212, %v1226
      %v1239 = vadd.f32 %v1217, %v1226
      %vm1240 = vcmask 195584
      %v1241 = vsel %vm1240, %v1228, -inf
      %1242 = vmax.xlane.f32.xlu0 %v1241
      %v1243 = vpop.xlane.xlu0 %1242
      %v1244 = vsel %vm1240, %v1229, -inf
      %1245 = vmax.xlane.f32.xlu0 %v1244
      %v1246 = vpop.xlane.xlu0 %1245
      %v1247 = vsel %vm1240, %v1230, -inf
      %1248 = vmax.xlane.f32.xlu0 %v1247
      %v1249 = vpop.xlane.xlu0 %1248
      %v1250 = vsel %vm1240, %v1231, -inf
      %1251 = vmax.xlane.f32.xlu0 %v1250
      %v1252 = vpop.xlane.xlu0 %1251
      %v1253 = vsel %vm1240, %v1232, -inf
      %1254 = vmax.xlane.f32.xlu0 %v1253
      %v1255 = vpop.xlane.xlu0 %1254
      %v1256 = vsel %vm1240, %v1233, -inf
      %1257 = vmax.xlane.f32.xlu0 %v1256
      %v1258 = vpop.xlane.xlu0 %1257
      %v1259 = vsel %vm1240, %v1234, -inf
      %1260 = vmax.xlane.f32.xlu0 %v1259
      %v1261 = vpop.xlane.xlu0 %1260
      %v1262 = vsel %vm1240, %v1235, -inf
      %1263 = vmax.xlane.f32.xlu0 %v1262
      %v1264 = vpop.xlane.xlu0 %1263
      %v1265 = vsel %vm1240, %v1236, -inf
      %1266 = vmax.xlane.f32.xlu0 %v1265
      %v1267 = vpop.xlane.xlu0 %1266
      %v1268 = vsel %vm1240, %v1237, -inf
      %1269 = vmax.xlane.f32.xlu0 %v1268
      %v1270 = vpop.xlane.xlu0 %1269
      %v1271 = vsel %vm1240, %v1238, -inf
      %1272 = vmax.xlane.f32.xlu0 %v1271
      %v1273 = vpop.xlane.xlu0 %1272
      %v1274 = vsel %vm1240, %v1239, -inf
      %1275 = vmax.xlane.f32.xlu0 %v1274
      %v1276 = vpop.xlane.xlu0 %1275
      %v1277 = vsub.f32 %v1228, %v1243
      %v1278 = vsub.f32 %v1229, %v1246
      %v1279 = vsub.f32 %v1230, %v1249
      %v1280 = vsub.f32 %v1231, %v1252
      %v1281 = vsub.f32 %v1232, %v1255
      %v1282 = vsub.f32 %v1233, %v1258
      %v1283 = vsub.f32 %v1234, %v1261
      %v1284 = vsub.f32 %v1235, %v1264
      %v1285 = vsub.f32 %v1236, %v1267
      %v1286 = vsub.f32 %v1237, %v1270
      %v1287 = vsub.f32 %v1238, %v1273
      %v1288 = vsub.f32 %v1239, %v1276
      %v1289 = vmul.f32 %v1277, 1.442695
      %v1290 = vpow.pop %v1289
      %v1291 = vmul.f32 %v1278, 1.442695
      %v1292 = vpow.pop %v1291
      %v1293 = vmul.f32 %v1279, 1.442695
      %v1294 = vpow.pop %v1293
      %v1295 = vmul.f32 %v1280, 1.442695
      %v1296 = vpow.pop %v1295
      %v1297 = vmul.f32 %v1281, 1.442695
      %v1298 = vpow.pop %v1297
      %v1299 = vmul.f32 %v1282, 1.442695
      %v1300 = vpow.pop %v1299
      %v1301 = vmul.f32 %v1283, 1.442695
      %v1302 = vpow.pop %v1301
      %v1303 = vmul.f32 %v1284, 1.442695
      %v1304 = vpow.pop %v1303
      %v1305 = vmul.f32 %v1285, 1.442695
      %v1306 = vpow.pop %v1305
      %v1307 = vmul.f32 %v1286, 1.442695
      %v1308 = vpow.pop %v1307
      %v1309 = vmul.f32 %v1287, 1.442695
      %v1310 = vpow.pop %v1309
      %v1311 = vmul.f32 %v1288, 1.442695
      %v1312 = vpow.pop %v1311
      %v1313 = vsel %vm1240, %v1290, 0.0
      %1314 = vadd.xlane.f32.xlu0 %v1313
      %v1315 = vpop.xlane.xlu0 %1314
      %v1316 = vsel %vm1240, %v1292, 0.0
      %1317 = vadd.xlane.f32.xlu0 %v1316
      %v1318 = vpop.xlane.xlu0 %1317
      %v1319 = vsel %vm1240, %v1294, 0.0
      %1320 = vadd.xlane.f32.xlu0 %v1319
      %v1321 = vpop.xlane.xlu0 %1320
      %v1322 = vsel %vm1240, %v1296, 0.0
      %1323 = vadd.xlane.f32.xlu0 %v1322
      %v1324 = vpop.xlane.xlu0 %1323
      %v1325 = vsel %vm1240, %v1298, 0.0
      %1326 = vadd.xlane.f32.xlu0 %v1325
      %v1327 = vpop.xlane.xlu0 %1326
      %v1328 = vsel %vm1240, %v1300, 0.0
      %1329 = vadd.xlane.f32.xlu0 %v1328
      %v1330 = vpop.xlane.xlu0 %1329
      %v1331 = vsel %vm1240, %v1302, 0.0
      %1332 = vadd.xlane.f32.xlu0 %v1331
      %v1333 = vpop.xlane.xlu0 %1332
      %v1334 = vsel %vm1240, %v1304, 0.0
      %1335 = vadd.xlane.f32.xlu0 %v1334
      %v1336 = vpop.xlane.xlu0 %1335
      %v1337 = vsel %vm1240, %v1306, 0.0
      %1338 = vadd.xlane.f32.xlu0 %v1337
      %v1339 = vpop.xlane.xlu0 %1338
      %v1340 = vsel %vm1240, %v1308, 0.0
      %1341 = vadd.xlane.f32.xlu0 %v1340
      %v1342 = vpop.xlane.xlu0 %1341
      %v1343 = vsel %vm1240, %v1310, 0.0
      %1344 = vadd.xlane.f32.xlu0 %v1343
      %v1345 = vpop.xlane.xlu0 %1344
      %v1346 = vsel %vm1240, %v1312, 0.0
      %1347 = vadd.xlane.f32.xlu0 %v1346
      %v1348 = vpop.xlane.xlu0 %1347
      %v1349 = vrcp.pop %v1315
      %v1350 = vrcp.pop %v1318
      %v1351 = vrcp.pop %v1321
      %v1352 = vrcp.pop %v1324
      %v1353 = vrcp.pop %v1327
      %v1354 = vrcp.pop %v1330
      %v1355 = vrcp.pop %v1333
      %v1356 = vrcp.pop %v1336
      %v1357 = vrcp.pop %v1339
      %v1358 = vrcp.pop %v1342
      %v1359 = vrcp.pop %v1345
      %v1360 = vrcp.pop %v1348
      %v1361 = vmul.f32 %v1290, %v1349
      %v1362 = vmul.f32 %v1292, %v1350
      %v1363 = vmul.f32 %v1294, %v1351
      %v1364 = vmul.f32 %v1296, %v1352
      %v1365 = vmul.f32 %v1298, %v1353
      %v1366 = vmul.f32 %v1300, %v1354
      %v1367 = vmul.f32 %v1302, %v1355
      %v1368 = vmul.f32 %v1304, %v1356
      %v1369 = vmul.f32 %v1306, %v1357
      %v1370 = vmul.f32 %v1308, %v1358
      %v1371 = vmul.f32 %v1310, %v1359
      %v1372 = vmul.f32 %v1312, %v1360
      %v1373 = vpack.c.bf16 %v1362, %v1361
      %v1374 = vpack.c.bf16 %v1363, %v1363
      %1375 = vrot.lane.b32.xlu0 %v949, 64
      %v1376 = vpop.permute.xlu0 %1375
      %1377 = vrot.lane.b32.xlu0 %v950, 64
      %v1378 = vpop.permute.xlu0 %1377
      %v1381 = vsel %vm1240, %v1373, 0
      %v1384 = vsel %vm1240, %v1374, 0
      %vm1386 = vcmask 1043456
      %v1388 = vsel %vm1386, %v1378, 0
      %1390 = vmatprep.subr.bf16.mxu0 0
      %1391 = vmatpush1.bf16.msra.mxu0 %v1376
      %1392 = vmatprep.subr.bf16.mxu0 0
      %1393 = vmatpush1.bf16.msra.mxu0 %v1388
      %1394 = vmatprep.subr.bf16.mxu0 0
      %1395 = vmatpush1.bf16.msra.mxu0 0
      %1396 = vmatprep.subr.bf16.mxu0 0
      %1397 = vmatpush1.bf16.msra.mxu0 0
      %1398 = vmatprep.subr.bf16.mxu0 0
      %1399 = vmatpush1.bf16.msra.mxu0 0
      %1400 = vmatprep.subr.bf16.mxu0 0
      %1401 = vmatpush1.bf16.msra.mxu0 0
      %1402 = vmatprep.subr.bf16.mxu0 0
      %1403 = vmatpush1.bf16.msra.mxu0 0
      %1404 = vmatprep.subr.bf16.mxu0 0
      %1405 = vmatpush1.bf16.msra.mxu0 0
      %1406 = vmatprep.subr.bf16.mxu0 0
      %1407 = vmatpush1.bf16.msra.mxu0 0
      %1408 = vmatprep.subr.bf16.mxu0 0
      %1409 = vmatpush1.bf16.msra.mxu0 0
      %1410 = vmatprep.subr.bf16.mxu0 0
      %1411 = vmatpush1.bf16.msra.mxu0 0
      %1412 = vmatprep.subr.bf16.mxu0 0
      %1413 = vmatpush1.bf16.msra.mxu0 0
      %1414 = vmatprep.subr.bf16.mxu0 0
      %1415 = vmatpush1.bf16.msra.mxu0 0
      %1416 = vmatprep.subr.bf16.mxu0 0
      %1417 = vmatpush1.bf16.msra.mxu0 0
      %1418 = vmatprep.subr.bf16.mxu0 0
      %1419 = vmatpush1.bf16.msra.mxu0 0
      %1420 = vmatprep.subr.bf16.mxu0 0
      %1421 = vmatpush1.bf16.msra.mxu0 0
      %1422 = vmatprep.mubr.bf16.mxu0 0
      %1423 = vmatmul.mubr.bf16.gmra.mrb[0].mxu0 %v1381
      %v1424 = vpop.f32.mrb[0].mxu0
      %v1425 = vadd.f32 0.0, %v1424
      %v1426 = vpop.f32.mrb[0].mxu0
      %v1427 = vpop.f32.mrb[0].mxu0
      %v1428 = vadd.f32 0.0, %v1427
      %v1429 = vpop.f32.mrb[0].mxu0
      %1430 = vmatprep.mubr.bf16.mxu0 0
      %1431 = vmatmul.mubr.bf16.gmra.mrb[0].mxu0 %v1384
      %v1432 = vpop.f32.mrb[0].mxu0
      %v1433 = vadd.f32 0.0, %v1432
      %v1434 = vpop.f32.mrb[0].mxu0
      %v1435 = vpop.f32.mrb[0].mxu0
      %v1436 = vpop.f32.mrb[0].mxu0
      %1437 = vdwg.mxu0
      %v1438 = vpack.c.bf16 %v1365, %v1364
      %v1439 = vpack.c.bf16 %v1366, %v1366
      %1440 = vrot.lane.b32.xlu0 %v949, 56
      %v1441 = vpop.permute.xlu0 %1440
      %1442 = vrot.lane.b32.xlu0 %v950, 56
      %v1443 = vpop.permute.xlu0 %1442
      %v1446 = vsel %vm1240, %v1438, 0
      %v1449 = vsel %vm1240, %v1439, 0
      %v1452 = vsel %vm1386, %v1443, 0
      %1454 = vmatprep.subr.bf16.mxu0 0
      %1455 = vmatpush1.bf16.msra.mxu0 %v1441
      %1456 = vmatprep.subr.bf16.mxu0 0
      %1457 = vmatpush1.bf16.msra.mxu0 %v1452
      %1458 = vmatprep.subr.bf16.mxu0 0
      %1459 = vmatpush1.bf16.msra.mxu0 0
      %1460 = vmatprep.subr.bf16.mxu0 0
      %1461 = vmatpush1.bf16.msra.mxu0 0
      %1462 = vmatprep.subr.bf16.mxu0 0
      %1463 = vmatpush1.bf16.msra.mxu0 0
      %1464 = vmatprep.subr.bf16.mxu0 0
      %1465 = vmatpush1.bf16.msra.mxu0 0
      %1466 = vmatprep.subr.bf16.mxu0 0
      %1467 = vmatpush1.bf16.msra.mxu0 0
      %1468 = vmatprep.subr.bf16.mxu0 0
      %1469 = vmatpush1.bf16.msra.mxu0 0
      %1470 = vmatprep.subr.bf16.mxu0 0
      %1471 = vmatpush1.bf16.msra.mxu0 0
      %1472 = vmatprep.subr.bf16.mxu0 0
      %1473 = vmatpush1.bf16.msra.mxu0 0
      %1474 = vmatprep.subr.bf16.mxu0 0
      %1475 = vmatpush1.bf16.msra.mxu0 0
      %1476 = vmatprep.subr.bf16.mxu0 0
      %1477 = vmatpush1.bf16.msra.mxu0 0
      %1478 = vmatprep.subr.bf16.mxu0 0
      %1479 = vmatpush1.bf16.msra.mxu0 0
      %1480 = vmatprep.subr.bf16.mxu0 0
      %1481 = vmatpush1.bf16.msra.mxu0 0
      %1482 = vmatprep.subr.bf16.mxu0 0
      %1483 = vmatpush1.bf16.msra.mxu0 0
      %1484 = vmatprep.subr.bf16.mxu0 0
      %1485 = vmatpush1.bf16.msra.mxu0 0
      %1486 = vmatprep.mubr.bf16.mxu0 0
      %1487 = vmatmul.mubr.bf16.gmra.mrb[0].mxu0 %v1446
      %v1488 = vpop.f32.mrb[0].mxu0
      %v1489 = vadd.f32 0.0, %v1488
      %v1490 = vpop.f32.mrb[0].mxu0
      %v1491 = vpop.f32.mrb[0].mxu0
      %v1492 = vadd.f32 0.0, %v1491
      %v1493 = vpop.f32.mrb[0].mxu0
      %1494 = vmatprep.mubr.bf16.mxu0 0
      %1495 = vmatmul.mubr.bf16.gmra.mrb[0].mxu0 %v1449
      %v1496 = vpop.f32.mrb[0].mxu0
      %v1497 = vadd.f32 0.0, %v1496
      %v1498 = vpop.f32.mrb[0].mxu0
      %v1499 = vpop.f32.mrb[0].mxu0
      %v1500 = vpop.f32.mrb[0].mxu0
      %1501 = vdwg.mxu0
      %v1502 = vpack.c.bf16 %v1368, %v1367
      %v1503 = vpack.c.bf16 %v1369, %v1369
      %1504 = vrot.lane.b32.xlu0 %v949, 48
      %v1505 = vpop.permute.xlu0 %1504
      %1506 = vrot.lane.b32.xlu0 %v950, 48
      %v1507 = vpop.permute.xlu0 %1506
      %v1510 = vsel %vm1240, %v1502, 0
      %v1513 = vsel %vm1240, %v1503, 0
      %v1516 = vsel %vm1386, %v1507, 0
      %1518 = vmatprep.subr.bf16.mxu0 0
      %1519 = vmatpush1.bf16.msra.mxu0 %v1505
      %1520 = vmatprep.subr.bf16.mxu0 0
      %1521 = vmatpush1.bf16.msra.mxu0 %v1516
      %1522 = vmatprep.subr.bf16.mxu0 0
      %1523 = vmatpush1.bf16.msra.mxu0 0
      %1524 = vmatprep.subr.bf16.mxu0 0
      %1525 = vmatpush1.bf16.msra.mxu0 0
      %1526 = vmatprep.subr.bf16.mxu0 0
      %1527 = vmatpush1.bf16.msra.mxu0 0
      %1528 = vmatprep.subr.bf16.mxu0 0
      %1529 = vmatpush1.bf16.msra.mxu0 0
      %1530 = vmatprep.subr.bf16.mxu0 0
      %1531 = vmatpush1.bf16.msra.mxu0 0
      %1532 = vmatprep.subr.bf16.mxu0 0
      %1533 = vmatpush1.bf16.msra.mxu0 0
      %1534 = vmatprep.subr.bf16.mxu0 0
      %1535 = vmatpush1.bf16.msra.mxu0 0
      %1536 = vmatprep.subr.bf16.mxu0 0
      %1537 = vmatpush1.bf16.msra.mxu0 0
      %1538 = vmatprep.subr.bf16.mxu0 0
      %1539 = vmatpush1.bf16.msra.mxu0 0
      %1540 = vmatprep.subr.bf16.mxu0 0
      %1541 = vmatpush1.bf16.msra.mxu0 0
      %1542 = vmatprep.subr.bf16.mxu0 0
      %1543 = vmatpush1.bf16.msra.mxu0 0
      %1544 = vmatprep.subr.bf16.mxu0 0
      %1545 = vmatpush1.bf16.msra.mxu0 0
      %1546 = vmatprep.subr.bf16.mxu0 0
      %1547 = vmatpush1.bf16.msra.mxu0 0
      %1548 = vmatprep.subr.bf16.mxu0 0
      %1549 = vmatpush1.bf16.msra.mxu0 0
      %1550 = vmatprep.mubr.bf16.mxu0 0
      %1551 = vmatmul.mubr.bf16.gmra.mrb[0].mxu0 %v1510
      %v1552 = vpop.f32.mrb[0].mxu0
      %v1553 = vadd.f32 0.0, %v1552
      %v1554 = vpop.f32.mrb[0].mxu0
      %v1555 = vpop.f32.mrb[0].mxu0
      %v1556 = vadd.f32 0.0, %v1555
      %v1557 = vpop.f32.mrb[0].mxu0
      %1558 = vmatprep.mubr.bf16.mxu0 0
      %1559 = vmatmul.mubr.bf16.gmra.mrb[0].mxu0 %v1513
      %v1560 = vpop.f32.mrb[0].mxu0
      %v1561 = vadd.f32 0.0, %v1560
      %v1562 = vpop.f32.mrb[0].mxu0
      %v1563 = vpop.f32.mrb[0].mxu0
      %v1564 = vpop.f32.mrb[0].mxu0
      %1565 = vdwg.mxu0
      %v1566 = vpack.c.bf16 %v1371, %v1370
      %v1567 = vpack.c.bf16 %v1372, %v1372
      %1568 = vrot.lane.b32.xlu0 %v949, 40
      %v1569 = vpop.permute.xlu0 %1568
      %1570 = vrot.lane.b32.xlu0 %v950, 40
      %v1571 = vpop.permute.xlu0 %1570
      %v1574 = vsel %vm1240, %v1566, 0
      %v1577 = vsel %vm1240, %v1567, 0
      %v1580 = vsel %vm1386, %v1571, 0
      %1582 = vmatprep.subr.bf16.mxu0 0
      %1583 = vmatpush1.bf16.msra.mxu0 %v1569
      %1584 = vmatprep.subr.bf16.mxu0 0
      %1585 = vmatpush1.bf16.msra.mxu0 %v1580
      %1586 = vmatprep.subr.bf16.mxu0 0
      %1587 = vmatpush1.bf16.msra.mxu0 0
      %1588 = vmatprep.subr.bf16.mxu0 0
      %1589 = vmatpush1.bf16.msra.mxu0 0
      %1590 = vmatprep.subr.bf16.mxu0 0
      %1591 = vmatpush1.bf16.msra.mxu0 0
      %1592 = vmatprep.subr.bf16.mxu0 0
      %1593 = vmatpush1.bf16.msra.mxu0 0
      %1594 = vmatprep.subr.bf16.mxu0 0
      %1595 = vmatpush1.bf16.msra.mxu0 0
      %1596 = vmatprep.subr.bf16.mxu0 0
      %1597 = vmatpush1.bf16.msra.mxu0 0
      %1598 = vmatprep.subr.bf16.mxu0 0
      %1599 = vmatpush1.bf16.msra.mxu0 0
      %1600 = vmatprep.subr.bf16.mxu0 0
      %1601 = vmatpush1.bf16.msra.mxu0 0
      %1602 = vmatprep.subr.bf16.mxu0 0
      %1603 = vmatpush1.bf16.msra.mxu0 0
      %1604 = vmatprep.subr.bf16.mxu0 0
      %1605 = vmatpush1.bf16.msra.mxu0 0
      %1606 = vmatprep.subr.bf16.mxu0 0
      %1607 = vmatpush1.bf16.msra.mxu0 0
      %1608 = vmatprep.subr.bf16.mxu0 0
      %1609 = vmatpush1.bf16.msra.mxu0 0
      %1610 = vmatprep.subr.bf16.mxu0 0
      %1611 = vmatpush1.bf16.msra.mxu0 0
      %1612 = vmatprep.subr.bf16.mxu0 0
      %1613 = vmatpush1.bf16.msra.mxu0 0
      %1614 = vmatprep.mubr.bf16.mxu0 0
      %1615 = vmatmul.mubr.bf16.gmra.mrb[0].mxu0 %v1574
      %v1616 = vpop.f32.mrb[0].mxu0
      %v1617 = vadd.f32 0.0, %v1616
      %v1618 = vpop.f32.mrb[0].mxu0
      %v1619 = vpop.f32.mrb[0].mxu0
      %v1620 = vadd.f32 0.0, %v1619
      %v1621 = vpop.f32.mrb[0].mxu0
      %1622 = vmatprep.mubr.bf16.mxu0 0
      %1623 = vmatmul.mubr.bf16.gmra.mrb[0].mxu0 %v1577
      %v1624 = vpop.f32.mrb[0].mxu0
      %v1625 = vadd.f32 0.0, %v1624
      %v1626 = vpop.f32.mrb[0].mxu0
      %v1627 = vpop.f32.mrb[0].mxu0
      %v1628 = vpop.f32.mrb[0].mxu0
      %1629 = vdwg.mxu0
      %1633 = vrot.lane.b32.xlu0 %v1489, 8
      %v1634 = vpop.permute.xlu0 %1633
      %1635 = vrot.lane.b32.xlu0 %v1492, 8
      %v1636 = vpop.permute.xlu0 %1635
      %1637 = vrot.lane.b32.xlu0 %v1497, 8
      %v1638 = vpop.permute.xlu0 %1637
      %1645 = vrot.lane.b32.xlu0 %v1553, 16
      %v1646 = vpop.permute.xlu0 %1645
      %1647 = vrot.lane.b32.xlu0 %v1556, 16
      %v1648 = vpop.permute.xlu0 %1647
      %1649 = vrot.lane.b32.xlu0 %v1561, 16
      %v1650 = vpop.permute.xlu0 %1649
      %1657 = vrot.lane.b32.xlu0 %v1617, 24
      %v1658 = vpop.permute.xlu0 %1657
      %1659 = vrot.lane.b32.xlu0 %v1620, 24
      %v1660 = vpop.permute.xlu0 %1659
      %1661 = vrot.lane.b32.xlu0 %v1625, 24
      %v1662 = vpop.permute.xlu0 %1661
      %v1666 = vsel %vm957, %v1425, %v1634
      %v1667 = vsel %vm957, %v1428, %v1636
      %v1668 = vsel %vm957, %v1433, %v1638
      %vm1669 = vcmask 130048
      %v1670 = vsel %vm1669, %v1666, %v1646
      %v1671 = vsel %vm1669, %v1667, %v1648
      %v1672 = vsel %vm1669, %v1668, %v1650
      %v1673 = vsel %vm1240, %v1670, %v1658
      %v1674 = vsel %vm1240, %v1671, %v1660
      %v1675 = vsel %vm1240, %v1672, %v1662
      %v1676 = vpack.c.bf16 %v1674, %v1673
      %v1677 = vpack.c.bf16 %v1675, %v1675
      %v1678 = vld [vmem:[%s10] sm:$0xf]
      %v1679 = vld [vmem:[%s10 + $0x4] sm:$0xf]
      %v1680 = vld [vmem:[%s10 + $0x8] sm:$0xf]
      %v1681 = vld [vmem:[%s10 + $0xc] sm:$0xf]
      %v1686 = vunpack.c.l.b16 %v1678
      %v1687 = vunpack.c.l.b16 %v1679
      %v1688 = vunpack.c.l.b16 %v1680
      %v1689 = vunpack.c.l.b16 %v1681
      %v1690 = vpack.c.b16 %v1687, %v1686
      %v1691 = vpack.c.b16 %v1689, %v1688
      %v1695 = vsel %vm751, %v1676, 0
      %v1698 = vsel %vm751, %v1677, 0
      %1700 = vmatprep.subr.bf16.mxu0 0
      %1701 = vmatpush1.bf16.msra.mxu0 %v1690
      %1702 = vmatprep.subr.bf16.mxu0 0
      %1703 = vmatpush1.bf16.msra.mxu0 %v1691
      %1704 = vmatprep.subr.bf16.mxu0 0
      %1705 = vmatpush1.bf16.msra.mxu0 0
      %1706 = vmatprep.subr.bf16.mxu0 0
      %1707 = vmatpush1.bf16.msra.mxu0 0
      %1708 = vmatprep.subr.bf16.mxu0 0
      %1709 = vmatpush1.bf16.msra.mxu0 0
      %1710 = vmatprep.subr.bf16.mxu0 0
      %1711 = vmatpush1.bf16.msra.mxu0 0
      %1712 = vmatprep.subr.bf16.mxu0 0
      %1713 = vmatpush1.bf16.msra.mxu0 0
      %1714 = vmatprep.subr.bf16.mxu0 0
      %1715 = vmatpush1.bf16.msra.mxu0 0
      %1716 = vmatprep.subr.bf16.mxu0 0
      %1717 = vmatpush1.bf16.msra.mxu0 0
      %1718 = vmatprep.subr.bf16.mxu0 0
      %1719 = vmatpush1.bf16.msra.mxu0 0
      %1720 = vmatprep.subr.bf16.mxu0 0
      %1721 = vmatpush1.bf16.msra.mxu0 0
      %1722 = vmatprep.subr.bf16.mxu0 0
      %1723 = vmatpush1.bf16.msra.mxu0 0
      %1724 = vmatprep.subr.bf16.mxu0 0
      %1725 = vmatpush1.bf16.msra.mxu0 0
      %1726 = vmatprep.subr.bf16.mxu0 0
      %1727 = vmatpush1.bf16.msra.mxu0 0
      %1728 = vmatprep.subr.bf16.mxu0 0
      %1729 = vmatpush1.bf16.msra.mxu0 0
      %1730 = vmatprep.subr.bf16.mxu0 0
      %1731 = vmatpush1.bf16.msra.mxu0 0
      %1732 = vmatprep.mubr.bf16.mxu0 0
      %1733 = vmatmul.mubr.bf16.gmra.mrb[0].mxu0 %v1695
      %v1734 = vpop.f32.mrb[0].mxu0
      %v1735 = vadd.f32 0.0, %v1734
      %v1736 = vpop.f32.mrb[0].mxu0
      %v1737 = vpop.f32.mrb[0].mxu0
      %v1738 = vadd.f32 0.0, %v1737
      %v1739 = vpop.f32.mrb[0].mxu0
      %1740 = vmatprep.mubr.bf16.mxu0 0
      %1741 = vmatmul.mubr.bf16.gmra.mrb[0].mxu0 %v1698
      %v1742 = vpop.f32.mrb[0].mxu0
      %v1743 = vadd.f32 0.0, %v1742
      %v1744 = vpop.f32.mrb[0].mxu0
      %v1745 = vpop.f32.mrb[0].mxu0
      %v1746 = vpop.f32.mrb[0].mxu0
      %1747 = vdwg.mxu0
      %v1748 = vadd.f32 %v807, %v1735
      %v1749 = vadd.f32 %v808, %v1738
      %v1750 = vadd.f32 %v809, %v1743
      %v1751 = vld [vmem:[%s11] sm:$0x1]
      %v1753 = vlaneseq
      %v1754 = vshrl.u32 %v1753, 7
      %v1755 = vsub.s32 0, %v1754
      %v1756 = vrot.slane %v1751, %v1755
      %v1758 = vadd.f32 %v1748, %v1756
      %v1759 = vadd.f32 %v1749, %v1756
      %v1760 = vadd.f32 %v1750, %v1756
      %v1761 = vld [vmem:[%s12] sm:$0x1]
      %v1762 = vld [vmem:[%s13] sm:$0x1]
      %v1763 = vsel %vm751, %v1758, 0.0
      %1764 = vadd.xlane.f32.xlu0 %v1763
      %v1765 = vpop.xlane.xlu0 %1764
      %v1766 = vsel %vm751, %v1759, 0.0
      %1767 = vadd.xlane.f32.xlu0 %v1766
      %v1768 = vpop.xlane.xlu0 %1767
      %v1769 = vsel %vm751, %v1760, 0.0
      %1770 = vadd.xlane.f32.xlu0 %v1769
      %v1771 = vpop.xlane.xlu0 %1770
      %v1772 = vmul.f32 %v1765, %v761
      %v1773 = vmul.f32 %v1768, %v761
      %v1774 = vmul.f32 %v1771, %v761
      %v1775 = vsub.f32 %v1758, %v1772
      %v1776 = vsub.f32 %v1759, %v1773
      %v1777 = vsub.f32 %v1760, %v1774
      %v1778 = vmul.f32 %v1775, %v1775
      %v1779 = vmul.f32 %v1776, %v1776
      %v1780 = vmul.f32 %v1777, %v1777
      %v1781 = vsel %vm751, %v1778, 0.0
      %1782 = vadd.xlane.f32.xlu0 %v1781
      %v1783 = vpop.xlane.xlu0 %1782
      %v1784 = vsel %vm751, %v1779, 0.0
      %1785 = vadd.xlane.f32.xlu0 %v1784
      %v1786 = vpop.xlane.xlu0 %1785
      %v1787 = vsel %vm751, %v1780, 0.0
      %1788 = vadd.xlane.f32.xlu0 %v1787
      %v1789 = vpop.xlane.xlu0 %1788
      %v1790 = vmul.f32 %v1783, %v761
      %v1791 = vmul.f32 %v1786, %v761
      %v1792 = vmul.f32 %v1789, %v761
      %v1793 = vadd.f32 %v1790, 1e-05
      %v1794 = vadd.f32 %v1791, 1e-05
      %v1795 = vadd.f32 %v1792, 1e-05
      %v1796 = vrsqrt.pop %v1793
      %v1797 = vrsqrt.pop %v1794
      %v1798 = vrsqrt.pop %v1795
      %v1799 = vmul.f32 %v1775, %v1796
      %v1800 = vmul.f32 %v1776, %v1797
      %v1801 = vmul.f32 %v1777, %v1798
      %v1803 = vlaneseq
      %v1804 = vshrl.u32 %v1803, 7
      %v1805 = vsub.s32 0, %v1804
      %v1806 = vrot.slane %v1761, %v1805
      %v1808 = vmul.f32 %v1799, %v1806
      %v1809 = vmul.f32 %v1800, %v1806
      %v1810 = vmul.f32 %v1801, %v1806
      %v1812 = vlaneseq
      %v1813 = vshrl.u32 %v1812, 7
      %v1814 = vsub.s32 0, %v1813
      %v1815 = vrot.slane %v1762, %v1814
      %v1817 = vadd.f32 %v1808, %v1815
      %v1818 = vadd.f32 %v1809, %v1815
      %v1819 = vadd.f32 %v1810, %v1815
      %v1820 = vpack.c.bf16 %v1818, %v1817
      %v1821 = vpack.c.bf16 %v1819, %v1819
      %v1822 = vld [vmem:[%s14] sm:$0xf]
      %v1823 = vld [vmem:[%s14 + $0x4] sm:$0xf]
      %v1824 = vld [vmem:[%s14 + $0x8] sm:$0xf]
      %v1825 = vld [vmem:[%s14 + $0xc] sm:$0xf]
      %v1826 = vld [vmem:[%s15] sm:$0x1]
      %v1828 = vlaneseq
      %v1829 = vshrl.u32 %v1828, 7
      %v1830 = vsub.s32 0, %v1829
      %v1831 = vrot.slane %v1826, %v1830
      %v1837 = vunpack.c.l.b16 %v1822
      %v1838 = vunpack.c.l.b16 %v1823
      %v1839 = vunpack.c.l.b16 %v1824
      %v1840 = vunpack.c.l.b16 %v1825
      %v1841 = vpack.c.b16 %v1838, %v1837
      %v1842 = vpack.c.b16 %v1840, %v1839
      %v1846 = vsel %vm751, %v1820, 0
      %v1849 = vsel %vm751, %v1821, 0
      %1851 = vmatprep.subr.bf16.mxu0 0
      %1852 = vmatpush1.bf16.msra.mxu0 %v1841
      %1853 = vmatprep.subr.bf16.mxu0 0
      %1854 = vmatpush1.bf16.msra.mxu0 %v1842
      %1855 = vmatprep.subr.bf16.mxu0 0
      %1856 = vmatpush1.bf16.msra.mxu0 0
      %1857 = vmatprep.subr.bf16.mxu0 0
      %1858 = vmatpush1.bf16.msra.mxu0 0
      %1859 = vmatprep.subr.bf16.mxu0 0
      %1860 = vmatpush1.bf16.msra.mxu0 0
      %1861 = vmatprep.subr.bf16.mxu0 0
      %1862 = vmatpush1.bf16.msra.mxu0 0
      %1863 = vmatprep.subr.bf16.mxu0 0
      %1864 = vmatpush1.bf16.msra.mxu0 0
      %1865 = vmatprep.subr.bf16.mxu0 0
      %1866 = vmatpush1.bf16.msra.mxu0 0
      %1867 = vmatprep.subr.bf16.mxu0 0
      %1868 = vmatpush1.bf16.msra.mxu0 0
      %1869 = vmatprep.subr.bf16.mxu0 0
      %1870 = vmatpush1.bf16.msra.mxu0 0
      %1871 = vmatprep.subr.bf16.mxu0 0
      %1872 = vmatpush1.bf16.msra.mxu0 0
      %1873 = vmatprep.subr.bf16.mxu0 0
      %1874 = vmatpush1.bf16.msra.mxu0 0
      %1875 = vmatprep.subr.bf16.mxu0 0
      %1876 = vmatpush1.bf16.msra.mxu0 0
      %1877 = vmatprep.subr.bf16.mxu0 0
      %1878 = vmatpush1.bf16.msra.mxu0 0
      %1879 = vmatprep.subr.bf16.mxu0 0
      %1880 = vmatpush1.bf16.msra.mxu0 0
      %1881 = vmatprep.subr.bf16.mxu0 0
      %1882 = vmatpush1.bf16.msra.mxu0 0
      %1883 = vmatprep.mubr.bf16.mxu0 0
      %1884 = vmatmul.mubr.bf16.gmra.mrb[0].mxu0 %v1846
      %v1885 = vpop.f32.mrb[0].mxu0
      %v1886 = vadd.f32 %v1831, %v1885
      %v1887 = vpop.f32.mrb[0].mxu0
      %v1888 = vpop.f32.mrb[0].mxu0
      %v1889 = vadd.f32 %v1831, %v1888
      %v1890 = vpop.f32.mrb[0].mxu0
      %1891 = vmatprep.mubr.bf16.mxu0 0
      %1892 = vmatmul.mubr.bf16.gmra.mrb[0].mxu0 %v1849
      %v1893 = vpop.f32.mrb[0].mxu0
      %v1894 = vadd.f32 %v1831, %v1893
      %v1895 = vpop.f32.mrb[0].mxu0
      %v1896 = vpop.f32.mrb[0].mxu0
      %v1897 = vpop.f32.mrb[0].mxu0
      %1898 = vdwg.mxu0
      %v1899 = vmul.f32 %v1886, 1.702
      %v1900 = vmul.f32 %v1889, 1.702
      %v1901 = vmul.f32 %v1894, 1.702
      %v1902 = vxor.u32 %v1899, 2147483648
      %v1903 = vxor.u32 %v1900, 2147483648
      %v1904 = vxor.u32 %v1901, 2147483648
      %v1905 = vmul.f32 %v1902, 1.442695
      %v1906 = vpow.pop %v1905
      %v1907 = vmul.f32 %v1903, 1.442695
      %v1908 = vpow.pop %v1907
      %v1909 = vmul.f32 %v1904, 1.442695
      %v1910 = vpow.pop %v1909
      %v1911 = vadd.f32 %v1906, 1.0
      %v1912 = vadd.f32 %v1908, 1.0
      %v1913 = vadd.f32 %v1910, 1.0
      %v1914 = vrcp.pop %v1911
      %v1915 = vmul.f32 1.0, %v1914
      %v1916 = vrcp.pop %v1912
      %v1917 = vmul.f32 1.0, %v1916
      %v1918 = vrcp.pop %v1913
      %v1919 = vmul.f32 1.0, %v1918
      %v1920 = vmul.f32 %v1886, %v1915
      %v1921 = vmul.f32 %v1889, %v1917
      %v1922 = vmul.f32 %v1894, %v1919
      %v1923 = vpack.c.bf16 %v1921, %v1920
      %v1924 = vpack.c.bf16 %v1922, %v1922
      %v1925 = vld [vmem:[%s16] sm:$0xf]
      %v1926 = vld [vmem:[%s16 + $0x4] sm:$0xf]
      %v1927 = vld [vmem:[%s16 + $0x8] sm:$0xf]
      %v1928 = vld [vmem:[%s16 + $0xc] sm:$0xf]
      %v1929 = vld [vmem:[%s16 + $0x10] sm:$0xf]
      %v1930 = vld [vmem:[%s16 + $0x14] sm:$0xf]
      %v1931 = vld [vmem:[%s16 + $0x18] sm:$0xf]
      %v1932 = vld [vmem:[%s16 + $0x1c] sm:$0xf]
      %v1933 = vld [vmem:[%s16 + $0x20] sm:$0xf]
      %v1934 = vld [vmem:[%s16 + $0x24] sm:$0xf]
      %v1935 = vld [vmem:[%s16 + $0x28] sm:$0xf]
      %v1936 = vld [vmem:[%s16 + $0x2c] sm:$0xf]
      %v1937 = vld [vmem:[%s16 + $0x30] sm:$0xf]
      %v1938 = vld [vmem:[%s16 + $0x34] sm:$0xf]
      %v1939 = vld [vmem:[%s16 + $0x38] sm:$0xf]
      %v1940 = vld [vmem:[%s16 + $0x3c] sm:$0xf]
      %v1957 = vunpack.c.l.b16 %v1925
      %v1958 = vunpack.c.l.b16 %v1926
      %v1959 = vunpack.c.l.b16 %v1927
      %v1960 = vunpack.c.l.b16 %v1928
      %v1961 = vunpack.c.l.b16 %v1929
      %v1962 = vunpack.c.l.b16 %v1930
      %v1963 = vunpack.c.l.b16 %v1931
      %v1964 = vunpack.c.l.b16 %v1932
      %v1965 = vunpack.c.l.b16 %v1933
      %v1966 = vunpack.c.l.b16 %v1934
      %v1967 = vunpack.c.l.b16 %v1935
      %v1968 = vunpack.c.l.b16 %v1936
      %v1969 = vunpack.c.l.b16 %v1937
      %v1970 = vunpack.c.l.b16 %v1938
      %v1971 = vunpack.c.l.b16 %v1939
      %v1972 = vunpack.c.l.b16 %v1940
      %v1973 = vpack.c.b16 %v1958, %v1957
      %v1974 = vpack.c.b16 %v1960, %v1959
      %v1975 = vpack.c.b16 %v1962, %v1961
      %v1976 = vpack.c.b16 %v1964, %v1963
      %v1977 = vpack.c.b16 %v1966, %v1965
      %v1978 = vpack.c.b16 %v1968, %v1967
      %v1979 = vpack.c.b16 %v1970, %v1969
      %v1980 = vpack.c.b16 %v1972, %v1971
      %1989 = vmatprep.subr.bf16.mxu0 0
      %1990 = vmatpush1.bf16.msra.mxu0 %v1973
      %1991 = vmatprep.subr.bf16.mxu0 0
      %1992 = vmatpush1.bf16.msra.mxu0 %v1974
      %1993 = vmatprep.subr.bf16.mxu0 0
      %1994 = vmatpush1.bf16.msra.mxu0 %v1975
      %1995 = vmatprep.subr.bf16.mxu0 0
      %1996 = vmatpush1.bf16.msra.mxu0 %v1976
      %1997 = vmatprep.subr.bf16.mxu0 0
      %1998 = vmatpush1.bf16.msra.mxu0 %v1977
      %1999 = vmatprep.subr.bf16.mxu0 0
      %2000 = vmatpush1.bf16.msra.mxu0 %v1978
      %2001 = vmatprep.subr.bf16.mxu0 0
      %2002 = vmatpush1.bf16.msra.mxu0 %v1979
      %2003 = vmatprep.subr.bf16.mxu0 0
      %2004 = vmatpush1.bf16.msra.mxu0 %v1980
      %2005 = vmatprep.subr.bf16.mxu0 0
      %2006 = vmatpush1.bf16.msra.mxu0 0
      %2007 = vmatprep.subr.bf16.mxu0 0
      %2008 = vmatpush1.bf16.msra.mxu0 0
      %2009 = vmatprep.subr.bf16.mxu0 0
      %2010 = vmatpush1.bf16.msra.mxu0 0
      %2011 = vmatprep.subr.bf16.mxu0 0
      %2012 = vmatpush1.bf16.msra.mxu0 0
      %2013 = vmatprep.subr.bf16.mxu0 0
      %2014 = vmatpush1.bf16.msra.mxu0 0
      %2015 = vmatprep.subr.bf16.mxu0 0
      %2016 = vmatpush1.bf16.msra.mxu0 0
      %2017 = vmatprep.subr.bf16.mxu0 0
      %2018 = vmatpush1.bf16.msra.mxu0 0
      %2019 = vmatprep.subr.bf16.mxu0 0
      %2020 = vmatpush1.bf16.msra.mxu0 0
      %2021 = vmatprep.mubr.bf16.mxu0 0
      %2022 = vmatmul.mubr.bf16.gmra.mrb[0].mxu0 %v1923
      %v2023 = vpop.f32.mrb[0].mxu0
      %v2024 = vadd.f32 0.0, %v2023
      %v2025 = vpop.f32.mrb[0].mxu0
      %v2026 = vpop.f32.mrb[0].mxu0
      %v2027 = vadd.f32 0.0, %v2026
      %v2028 = vpop.f32.mrb[0].mxu0
      %2029 = vmatprep.mubr.bf16.mxu0 0
      %2030 = vmatmul.mubr.bf16.gmra.mrb[0].mxu0 %v1924
      %v2031 = vpop.f32.mrb[0].mxu0
      %v2032 = vadd.f32 0.0, %v2031
      %v2033 = vpop.f32.mrb[0].mxu0
      %v2034 = vpop.f32.mrb[0].mxu0
      %v2035 = vpop.f32.mrb[0].mxu0
      %2036 = vdwg.mxu0
      %v2037 = vadd.f32 %v1758, %v2024
      %v2038 = vadd.f32 %v1759, %v2027
      %v2039 = vadd.f32 %v1760, %v2032
      %v2040 = vld [vmem:[%s17] sm:$0x1]
      %v2042 = vlaneseq
      %v2043 = vshrl.u32 %v2042, 7
      %v2044 = vsub.s32 0, %v2043
      %v2045 = vrot.slane %v2040, %v2044
      %v2047 = vadd.f32 %v2037, %v2045
      %v2048 = vadd.f32 %v2038, %v2045
      %v2049 = vadd.f32 %v2039, %v2045
      %s2050 = scalar_lea.vmem %s6, 1
      %v2051 = vld [vmem:[%s2050] sm:$0x1]
      %s2052 = scalar_lea.vmem %s7, 1
      %v2053 = vld [vmem:[%s2052] sm:$0x1]
      %v2054 = vsel %vm751, %v2047, 0.0
      %2055 = vadd.xlane.f32.xlu0 %v2054
      %v2056 = vpop.xlane.xlu0 %2055
      %v2057 = vsel %vm751, %v2048, 0.0
      %2058 = vadd.xlane.f32.xlu0 %v2057
      %v2059 = vpop.xlane.xlu0 %2058
      %v2060 = vsel %vm751, %v2049, 0.0
      %2061 = vadd.xlane.f32.xlu0 %v2060
      %v2062 = vpop.xlane.xlu0 %2061
      %v2063 = vmul.f32 %v2056, %v761
      %v2064 = vmul.f32 %v2059, %v761
      %v2065 = vmul.f32 %v2062, %v761
      %v2066 = vsub.f32 %v2047, %v2063
      %v2067 = vsub.f32 %v2048, %v2064
      %v2068 = vsub.f32 %v2049, %v2065
      %v2069 = vmul.f32 %v2066, %v2066
      %v2070 = vmul.f32 %v2067, %v2067
      %v2071 = vmul.f32 %v2068, %v2068
      %v2072 = vsel %vm751, %v2069, 0.0
      %2073 = vadd.xlane.f32.xlu0 %v2072
      %v2074 = vpop.xlane.xlu0 %2073
      %v2075 = vsel %vm751, %v2070, 0.0
      %2076 = vadd.xlane.f32.xlu0 %v2075
      %v2077 = vpop.xlane.xlu0 %2076
      %v2078 = vsel %vm751, %v2071, 0.0
      %2079 = vadd.xlane.f32.xlu0 %v2078
      %v2080 = vpop.xlane.xlu0 %2079
      %v2081 = vmul.f32 %v2074, %v761
      %v2082 = vmul.f32 %v2077, %v761
      %v2083 = vmul.f32 %v2080, %v761
      %v2084 = vadd.f32 %v2081, 1e-05
      %v2085 = vadd.f32 %v2082, 1e-05
      %v2086 = vadd.f32 %v2083, 1e-05
      %v2087 = vrsqrt.pop %v2084
      %v2088 = vrsqrt.pop %v2085
      %v2089 = vrsqrt.pop %v2086
      %v2090 = vmul.f32 %v2066, %v2087
      %v2091 = vmul.f32 %v2067, %v2088
      %v2092 = vmul.f32 %v2068, %v2089
      %v2094 = vlaneseq
      %v2095 = vshrl.u32 %v2094, 7
      %v2096 = vsub.s32 0, %v2095
      %v2097 = vrot.slane %v2051, %v2096
      %v2099 = vmul.f32 %v2090, %v2097
      %v2100 = vmul.f32 %v2091, %v2097
      %v2101 = vmul.f32 %v2092, %v2097
      %v2103 = vlaneseq
      %v2104 = vshrl.u32 %v2103, 7
      %v2105 = vsub.s32 0, %v2104
      %v2106 = vrot.slane %v2053, %v2105
      %v2108 = vadd.f32 %v2099, %v2106
      %v2109 = vadd.f32 %v2100, %v2106
      %v2110 = vadd.f32 %v2101, %v2106
      %v2111 = vpack.c.bf16 %v2109, %v2108
      %v2112 = vpack.c.bf16 %v2110, %v2110
      %s2113 = scalar_lea.vmem %s8, 16
      %v2114 = vld [vmem:[%s2113] sm:$0xf]
      %v2115 = vld [vmem:[%s2113 + $0x4] sm:$0xf]
      %v2116 = vld [vmem:[%s2113 + $0x8] sm:$0xf]
      %v2117 = vld [vmem:[%s2113 + $0xc] sm:$0xf]
      %s2118 = scalar_lea.vmem %s9, 1
      %v2119 = vld [vmem:[%s2118] sm:$0x1]
      %v2121 = vlaneseq
      %v2122 = vshrl.u32 %v2121, 7
      %v2123 = vsub.s32 0, %v2122
      %v2124 = vrot.slane %v2119, %v2123
      %v2130 = vunpack.c.l.b16 %v2114
      %v2131 = vunpack.c.l.b16 %v2115
      %v2132 = vunpack.c.l.b16 %v2116
      %v2133 = vunpack.c.l.b16 %v2117
      %v2134 = vpack.c.b16 %v2131, %v2130
      %v2135 = vpack.c.b16 %v2133, %v2132
      %v2139 = vsel %vm751, %v2111, 0
      %v2142 = vsel %vm751, %v2112, 0
      %2144 = vmatprep.subr.bf16.mxu0 0
      %2145 = vmatpush1.bf16.msra.mxu0 %v2134
      %2146 = vmatprep.subr.bf16.mxu0 0
      %2147 = vmatpush1.bf16.msra.mxu0 %v2135
      %2148 = vmatprep.subr.bf16.mxu0 0
      %2149 = vmatpush1.bf16.msra.mxu0 0
      %2150 = vmatprep.subr.bf16.mxu0 0
      %2151 = vmatpush1.bf16.msra.mxu0 0
      %2152 = vmatprep.subr.bf16.mxu0 0
      %2153 = vmatpush1.bf16.msra.mxu0 0
      %2154 = vmatprep.subr.bf16.mxu0 0
      %2155 = vmatpush1.bf16.msra.mxu0 0
      %2156 = vmatprep.subr.bf16.mxu0 0
      %2157 = vmatpush1.bf16.msra.mxu0 0
      %2158 = vmatprep.subr.bf16.mxu0 0
      %2159 = vmatpush1.bf16.msra.mxu0 0
      %2160 = vmatprep.subr.bf16.mxu0 0
      %2161 = vmatpush1.bf16.msra.mxu0 0
      %2162 = vmatprep.subr.bf16.mxu0 0
      %2163 = vmatpush1.bf16.msra.mxu0 0
      %2164 = vmatprep.subr.bf16.mxu0 0
      %2165 = vmatpush1.bf16.msra.mxu0 0
      %2166 = vmatprep.subr.bf16.mxu0 0
      %2167 = vmatpush1.bf16.msra.mxu0 0
      %2168 = vmatprep.subr.bf16.mxu0 0
      %2169 = vmatpush1.bf16.msra.mxu0 0
      %2170 = vmatprep.subr.bf16.mxu0 0
      %2171 = vmatpush1.bf16.msra.mxu0 0
      %2172 = vmatprep.subr.bf16.mxu0 0
      %2173 = vmatpush1.bf16.msra.mxu0 0
      %2174 = vmatprep.subr.bf16.mxu0 0
      %2175 = vmatpush1.bf16.msra.mxu0 0
      %2176 = vmatprep.mubr.bf16.mxu0 0
      %2177 = vmatmul.mubr.bf16.gmra.mrb[0].mxu0 %v2139
      %v2178 = vpop.f32.mrb[0].mxu0
      %v2179 = vadd.f32 %v2124, %v2178
      %v2180 = vpop.f32.mrb[0].mxu0
      %v2181 = vpop.f32.mrb[0].mxu0
      %v2182 = vadd.f32 %v2124, %v2181
      %v2183 = vpop.f32.mrb[0].mxu0
      %2184 = vmatprep.mubr.bf16.mxu0 0
      %2185 = vmatmul.mubr.bf16.gmra.mrb[0].mxu0 %v2142
      %v2186 = vpop.f32.mrb[0].mxu0
      %v2187 = vadd.f32 %v2124, %v2186
      %v2188 = vpop.f32.mrb[0].mxu0
      %v2189 = vpop.f32.mrb[0].mxu0
      %v2190 = vpop.f32.mrb[0].mxu0
      %2191 = vdwg.mxu0
      %v2192 = vpack.c.bf16 %v2182, %v2179
      %v2193 = vpack.c.bf16 %v2187, %v2187
      %2196 = vrot.lane.b32.xlu0 %v2192, 96
      %v2197 = vpop.permute.xlu0 %2196
      %2198 = vrot.lane.b32.xlu0 %v2193, 96
      %v2199 = vpop.permute.xlu0 %2198
      %v2201 = vsel %vm957, %v2192, 0
      %v2204 = vsel %vm957, %v2193, 0
      %v2207 = vsel %vm957, %v2197, 0
      %v2210 = vsel %vm957, %v2199, 0
      %2212 = vmatprep.subr.bf16.mxu0 0
      %2213 = vmatpush1.bf16.xpose.msra.mxu0 %v2207
      %2214 = vmatprep.subr.bf16.mxu0 0
      %2215 = vmatpush1.bf16.xpose.msra.mxu0 %v2210
      %2216 = vmatprep.subr.bf16.mxu0 0
      %2217 = vmatpush1.bf16.xpose.msra.mxu0 0
      %2218 = vmatprep.subr.bf16.mxu0 0
      %2219 = vmatpush1.bf16.xpose.msra.mxu0 0
      %2220 = vmatprep.subr.bf16.mxu0 0
      %2221 = vmatpush1.bf16.xpose.msra.mxu0 0
      %2222 = vmatprep.subr.bf16.mxu0 0
      %2223 = vmatpush1.bf16.xpose.msra.mxu0 0
      %2224 = vmatprep.subr.bf16.mxu0 0
      %2225 = vmatpush1.bf16.xpose.msra.mxu0 0
      %2226 = vmatprep.subr.bf16.mxu0 0
      %2227 = vmatpush1.bf16.xpose.msra.mxu0 0
      %2228 = vmatprep.subr.bf16.mxu0 0
      %2229 = vmatpush1.bf16.xpose.msra.mxu0 0
      %2230 = vmatprep.subr.bf16.mxu0 0
      %2231 = vmatpush1.bf16.xpose.msra.mxu0 0
      %2232 = vmatprep.subr.bf16.mxu0 0
      %2233 = vmatpush1.bf16.xpose.msra.mxu0 0
      %2234 = vmatprep.subr.bf16.mxu0 0
      %2235 = vmatpush1.bf16.xpose.msra.mxu0 0
      %2236 = vmatprep.subr.bf16.mxu0 0
      %2237 = vmatpush1.bf16.xpose.msra.mxu0 0
      %2238 = vmatprep.subr.bf16.mxu0 0
      %2239 = vmatpush1.bf16.xpose.msra.mxu0 0
      %2240 = vmatprep.subr.bf16.mxu0 0
      %2241 = vmatpush1.bf16.xpose.msra.mxu0 0
      %2242 = vmatprep.subr.bf16.mxu0 0
      %2243 = vmatpush1.bf16.xpose.msra.mxu0 0
      %2244 = vmatprep.mubr.bf16.mxu0 0
      %2245 = vmatmul.mubr.bf16.gmra.mrb[0].mxu0 %v2201
      %v2246 = vpop.f32.mrb[0].mxu0
      %v2247 = vadd.f32 0.0, %v2246
      %v2248 = vpop.f32.mrb[0].mxu0
      %v2249 = vpop.f32.mrb[0].mxu0
      %v2250 = vadd.f32 0.0, %v2249
      %v2251 = vpop.f32.mrb[0].mxu0
      %2252 = vmatprep.mubr.bf16.mxu0 0
      %2253 = vmatmul.mubr.bf16.gmra.mrb[0].mxu0 %v2204
      %v2254 = vpop.f32.mrb[0].mxu0
      %v2255 = vadd.f32 0.0, %v2254
      %v2256 = vpop.f32.mrb[0].mxu0
      %v2257 = vpop.f32.mrb[0].mxu0
      %v2258 = vpop.f32.mrb[0].mxu0
      %2259 = vdwg.mxu0
      %2260 = vrot.lane.b32.xlu0 %v2192, 120
      %v2261 = vpop.permute.xlu0 %2260
      %2262 = vrot.lane.b32.xlu0 %v2193, 120
      %v2263 = vpop.permute.xlu0 %2262
      %2264 = vrot.lane.b32.xlu0 %v2192, 88
      %v2265 = vpop.permute.xlu0 %2264
      %2266 = vrot.lane.b32.xlu0 %v2193, 88
      %v2267 = vpop.permute.xlu0 %2266
      %v2269 = vsel %vm957, %v2261, 0
      %v2272 = vsel %vm957, %v2263, 0
      %v2275 = vsel %vm957, %v2265, 0
      %v2278 = vsel %vm957, %v2267, 0
      %2280 = vmatprep.subr.bf16.mxu0 0
      %2281 = vmatpush1.bf16.xpose.msra.mxu0 %v2275
      %2282 = vmatprep.subr.bf16.mxu0 0
      %2283 = vmatpush1.bf16.xpose.msra.mxu0 %v2278
      %2284 = vmatprep.subr.bf16.mxu0 0
      %2285 = vmatpush1.bf16.xpose.msra.mxu0 0
      %2286 = vmatprep.subr.bf16.mxu0 0
      %2287 = vmatpush1.bf16.xpose.msra.mxu0 0
      %2288 = vmatprep.subr.bf16.mxu0 0
      %2289 = vmatpush1.bf16.xpose.msra.mxu0 0
      %2290 = vmatprep.subr.bf16.mxu0 0
      %2291 = vmatpush1.bf16.xpose.msra.mxu0 0
      %2292 = vmatprep.subr.bf16.mxu0 0
      %2293 = vmatpush1.bf16.xpose.msra.mxu0 0
      %2294 = vmatprep.subr.bf16.mxu0 0
      %2295 = vmatpush1.bf16.xpose.msra.mxu0 0
      %2296 = vmatprep.subr.bf16.mxu0 0
      %2297 = vmatpush1.bf16.xpose.msra.mxu0 0
      %2298 = vmatprep.subr.bf16.mxu0 0
      %2299 = vmatpush1.bf16.xpose.msra.mxu0 0
      %2300 = vmatprep.subr.bf16.mxu0 0
      %2301 = vmatpush1.bf16.xpose.msra.mxu0 0
      %2302 = vmatprep.subr.bf16.mxu0 0
      %2303 = vmatpush1.bf16.xpose.msra.mxu0 0
      %2304 = vmatprep.subr.bf16.mxu0 0
      %2305 = vmatpush1.bf16.xpose.msra.mxu0 0
      %2306 = vmatprep.subr.bf16.mxu0 0
      %2307 = vmatpush1.bf16.xpose.msra.mxu0 0
      %2308 = vmatprep.subr.bf16.mxu0 0
      %2309 = vmatpush1.bf16.xpose.msra.mxu0 0
      %2310 = vmatprep.subr.bf16.mxu0 0
      %2311 = vmatpush1.bf16.xpose.msra.mxu0 0
      %2312 = vmatprep.mubr.bf16.mxu0 0
      %2313 = vmatmul.mubr.bf16.gmra.mrb[0].mxu0 %v2269
      %v2314 = vpop.f32.mrb[0].mxu0
      %v2315 = vadd.f32 0.0, %v2314
      %v2316 = vpop.f32.mrb[0].mxu0
      %v2317 = vpop.f32.mrb[0].mxu0
      %v2318 = vadd.f32 0.0, %v2317
      %v2319 = vpop.f32.mrb[0].mxu0
      %2320 = vmatprep.mubr.bf16.mxu0 0
      %2321 = vmatmul.mubr.bf16.gmra.mrb[0].mxu0 %v2272
      %v2322 = vpop.f32.mrb[0].mxu0
      %v2323 = vadd.f32 0.0, %v2322
      %v2324 = vpop.f32.mrb[0].mxu0
      %v2325 = vpop.f32.mrb[0].mxu0
      %v2326 = vpop.f32.mrb[0].mxu0
      %2327 = vdwg.mxu0
      %2328 = vrot.lane.b32.xlu0 %v2192, 112
      %v2329 = vpop.permute.xlu0 %2328
      %2330 = vrot.lane.b32.xlu0 %v2193, 112
      %v2331 = vpop.permute.xlu0 %2330
      %2332 = vrot.lane.b32.xlu0 %v2192, 80
      %v2333 = vpop.permute.xlu0 %2332
      %2334 = vrot.lane.b32.xlu0 %v2193, 80
      %v2335 = vpop.permute.xlu0 %2334
      %v2337 = vsel %vm957, %v2329, 0
      %v2340 = vsel %vm957, %v2331, 0
      %v2343 = vsel %vm957, %v2333, 0
      %v2346 = vsel %vm957, %v2335, 0
      %2348 = vmatprep.subr.bf16.mxu0 0
      %2349 = vmatpush1.bf16.xpose.msra.mxu0 %v2343
      %2350 = vmatprep.subr.bf16.mxu0 0
      %2351 = vmatpush1.bf16.xpose.msra.mxu0 %v2346
      %2352 = vmatprep.subr.bf16.mxu0 0
      %2353 = vmatpush1.bf16.xpose.msra.mxu0 0
      %2354 = vmatprep.subr.bf16.mxu0 0
      %2355 = vmatpush1.bf16.xpose.msra.mxu0 0
      %2356 = vmatprep.subr.bf16.mxu0 0
      %2357 = vmatpush1.bf16.xpose.msra.mxu0 0
      %2358 = vmatprep.subr.bf16.mxu0 0
      %2359 = vmatpush1.bf16.xpose.msra.mxu0 0
      %2360 = vmatprep.subr.bf16.mxu0 0
      %2361 = vmatpush1.bf16.xpose.msra.mxu0 0
      %2362 = vmatprep.subr.bf16.mxu0 0
      %2363 = vmatpush1.bf16.xpose.msra.mxu0 0
      %2364 = vmatprep.subr.bf16.mxu0 0
      %2365 = vmatpush1.bf16.xpose.msra.mxu0 0
      %2366 = vmatprep.subr.bf16.mxu0 0
      %2367 = vmatpush1.bf16.xpose.msra.mxu0 0
      %2368 = vmatprep.subr.bf16.mxu0 0
      %2369 = vmatpush1.bf16.xpose.msra.mxu0 0
      %2370 = vmatprep.subr.bf16.mxu0 0
      %2371 = vmatpush1.bf16.xpose.msra.mxu0 0
      %2372 = vmatprep.subr.bf16.mxu0 0
      %2373 = vmatpush1.bf16.xpose.msra.mxu0 0
      %2374 = vmatprep.subr.bf16.mxu0 0
      %2375 = vmatpush1.bf16.xpose.msra.mxu0 0
      %2376 = vmatprep.subr.bf16.mxu0 0
      %2377 = vmatpush1.bf16.xpose.msra.mxu0 0
      %2378 = vmatprep.subr.bf16.mxu0 0
      %2379 = vmatpush1.bf16.xpose.msra.mxu0 0
      %2380 = vmatprep.mubr.bf16.mxu0 0
      %2381 = vmatmul.mubr.bf16.gmra.mrb[0].mxu0 %v2337
      %v2382 = vpop.f32.mrb[0].mxu0
      %v2383 = vadd.f32 0.0, %v2382
      %v2384 = vpop.f32.mrb[0].mxu0
      %v2385 = vpop.f32.mrb[0].mxu0
      %v2386 = vadd.f32 0.0, %v2385
      %v2387 = vpop.f32.mrb[0].mxu0
      %2388 = vmatprep.mubr.bf16.mxu0 0
      %2389 = vmatmul.mubr.bf16.gmra.mrb[0].mxu0 %v2340
      %v2390 = vpop.f32.mrb[0].mxu0
      %v2391 = vadd.f32 0.0, %v2390
      %v2392 = vpop.f32.mrb[0].mxu0
      %v2393 = vpop.f32.mrb[0].mxu0
      %v2394 = vpop.f32.mrb[0].mxu0
      %2395 = vdwg.mxu0
      %2396 = vrot.lane.b32.xlu0 %v2192, 104
      %v2397 = vpop.permute.xlu0 %2396
      %2398 = vrot.lane.b32.xlu0 %v2193, 104
      %v2399 = vpop.permute.xlu0 %2398
      %2400 = vrot.lane.b32.xlu0 %v2192, 72
      %v2401 = vpop.permute.xlu0 %2400
      %2402 = vrot.lane.b32.xlu0 %v2193, 72
      %v2403 = vpop.permute.xlu0 %2402
      %v2405 = vsel %vm957, %v2397, 0
      %v2408 = vsel %vm957, %v2399, 0
      %v2411 = vsel %vm957, %v2401, 0
      %v2414 = vsel %vm957, %v2403, 0
      %2416 = vmatprep.subr.bf16.mxu0 0
      %2417 = vmatpush1.bf16.xpose.msra.mxu0 %v2411
      %2418 = vmatprep.subr.bf16.mxu0 0
      %2419 = vmatpush1.bf16.xpose.msra.mxu0 %v2414
      %2420 = vmatprep.subr.bf16.mxu0 0
      %2421 = vmatpush1.bf16.xpose.msra.mxu0 0
      %2422 = vmatprep.subr.bf16.mxu0 0
      %2423 = vmatpush1.bf16.xpose.msra.mxu0 0
      %2424 = vmatprep.subr.bf16.mxu0 0
      %2425 = vmatpush1.bf16.xpose.msra.mxu0 0
      %2426 = vmatprep.subr.bf16.mxu0 0
      %2427 = vmatpush1.bf16.xpose.msra.mxu0 0
      %2428 = vmatprep.subr.bf16.mxu0 0
      %2429 = vmatpush1.bf16.xpose.msra.mxu0 0
      %2430 = vmatprep.subr.bf16.mxu0 0
      %2431 = vmatpush1.bf16.xpose.msra.mxu0 0
      %2432 = vmatprep.subr.bf16.mxu0 0
      %2433 = vmatpush1.bf16.xpose.msra.mxu0 0
      %2434 = vmatprep.subr.bf16.mxu0 0
      %2435 = vmatpush1.bf16.xpose.msra.mxu0 0
      %2436 = vmatprep.subr.bf16.mxu0 0
      %2437 = vmatpush1.bf16.xpose.msra.mxu0 0
      %2438 = vmatprep.subr.bf16.mxu0 0
      %2439 = vmatpush1.bf16.xpose.msra.mxu0 0
      %2440 = vmatprep.subr.bf16.mxu0 0
      %2441 = vmatpush1.bf16.xpose.msra.mxu0 0
      %2442 = vmatprep.subr.bf16.mxu0 0
      %2443 = vmatpush1.bf16.xpose.msra.mxu0 0
      %2444 = vmatprep.subr.bf16.mxu0 0
      %2445 = vmatpush1.bf16.xpose.msra.mxu0 0
      %2446 = vmatprep.subr.bf16.mxu0 0
      %2447 = vmatpush1.bf16.xpose.msra.mxu0 0
      %2448 = vmatprep.mubr.bf16.mxu0 0
      %2449 = vmatmul.mubr.bf16.gmra.mrb[0].mxu0 %v2405
      %v2450 = vpop.f32.mrb[0].mxu0
      %v2451 = vadd.f32 0.0, %v2450
      %v2452 = vpop.f32.mrb[0].mxu0
      %v2453 = vpop.f32.mrb[0].mxu0
      %v2454 = vadd.f32 0.0, %v2453
      %v2455 = vpop.f32.mrb[0].mxu0
      %2456 = vmatprep.mubr.bf16.mxu0 0
      %2457 = vmatmul.mubr.bf16.gmra.mrb[0].mxu0 %v2408
      %v2458 = vpop.f32.mrb[0].mxu0
      %v2459 = vadd.f32 0.0, %v2458
      %v2460 = vpop.f32.mrb[0].mxu0
      %v2461 = vpop.f32.mrb[0].mxu0
      %v2462 = vpop.f32.mrb[0].mxu0
      %2463 = vdwg.mxu0
      %v2464 = vadd.f32 %v2247, %v1226
      %v2465 = vadd.f32 %v2250, %v1226
      %v2466 = vadd.f32 %v2255, %v1226
      %v2467 = vadd.f32 %v2315, %v1226
      %v2468 = vadd.f32 %v2318, %v1226
      %v2469 = vadd.f32 %v2323, %v1226
      %v2470 = vadd.f32 %v2383, %v1226
      %v2471 = vadd.f32 %v2386, %v1226
      %v2472 = vadd.f32 %v2391, %v1226
      %v2473 = vadd.f32 %v2451, %v1226
      %v2474 = vadd.f32 %v2454, %v1226
      %v2475 = vadd.f32 %v2459, %v1226
      %v2476 = vsel %vm1240, %v2464, -inf
      %2477 = vmax.xlane.f32.xlu0 %v2476
      %v2478 = vpop.xlane.xlu0 %2477
      %v2479 = vsel %vm1240, %v2465, -inf
      %2480 = vmax.xlane.f32.xlu0 %v2479
      %v2481 = vpop.xlane.xlu0 %2480
      %v2482 = vsel %vm1240, %v2466, -inf
      %2483 = vmax.xlane.f32.xlu0 %v2482
      %v2484 = vpop.xlane.xlu0 %2483
      %v2485 = vsel %vm1240, %v2467, -inf
      %2486 = vmax.xlane.f32.xlu0 %v2485
      %v2487 = vpop.xlane.xlu0 %2486
      %v2488 = vsel %vm1240, %v2468, -inf
      %2489 = vmax.xlane.f32.xlu0 %v2488
      %v2490 = vpop.xlane.xlu0 %2489
      %v2491 = vsel %vm1240, %v2469, -inf
      %2492 = vmax.xlane.f32.xlu0 %v2491
      %v2493 = vpop.xlane.xlu0 %2492
      %v2494 = vsel %vm1240, %v2470, -inf
      %2495 = vmax.xlane.f32.xlu0 %v2494
      %v2496 = vpop.xlane.xlu0 %2495
      %v2497 = vsel %vm1240, %v2471, -inf
      %2498 = vmax.xlane.f32.xlu0 %v2497
      %v2499 = vpop.xlane.xlu0 %2498
      %v2500 = vsel %vm1240, %v2472, -inf
      %2501 = vmax.xlane.f32.xlu0 %v2500
      %v2502 = vpop.xlane.xlu0 %2501
      %v2503 = vsel %vm1240, %v2473, -inf
      %2504 = vmax.xlane.f32.xlu0 %v2503
      %v2505 = vpop.xlane.xlu0 %2504
      %v2506 = vsel %vm1240, %v2474, -inf
      %2507 = vmax.xlane.f32.xlu0 %v2506
      %v2508 = vpop.xlane.xlu0 %2507
      %v2509 = vsel %vm1240, %v2475, -inf
      %2510 = vmax.xlane.f32.xlu0 %v2509
      %v2511 = vpop.xlane.xlu0 %2510
      %v2512 = vsub.f32 %v2464, %v2478
      %v2513 = vsub.f32 %v2465, %v2481
      %v2514 = vsub.f32 %v2466, %v2484
      %v2515 = vsub.f32 %v2467, %v2487
      %v2516 = vsub.f32 %v2468, %v2490
      %v2517 = vsub.f32 %v2469, %v2493
      %v2518 = vsub.f32 %v2470, %v2496
      %v2519 = vsub.f32 %v2471, %v2499
      %v2520 = vsub.f32 %v2472, %v2502
      %v2521 = vsub.f32 %v2473, %v2505
      %v2522 = vsub.f32 %v2474, %v2508
      %v2523 = vsub.f32 %v2475, %v2511
      %v2524 = vmul.f32 %v2512, 1.442695
      %v2525 = vpow.pop %v2524
      %v2526 = vmul.f32 %v2513, 1.442695
      %v2527 = vpow.pop %v2526
      %v2528 = vmul.f32 %v2514, 1.442695
      %v2529 = vpow.pop %v2528
      %v2530 = vmul.f32 %v2515, 1.442695
      %v2531 = vpow.pop %v2530
      %v2532 = vmul.f32 %v2516, 1.442695
      %v2533 = vpow.pop %v2532
      %v2534 = vmul.f32 %v2517, 1.442695
      %v2535 = vpow.pop %v2534
      %v2536 = vmul.f32 %v2518, 1.442695
      %v2537 = vpow.pop %v2536
      %v2538 = vmul.f32 %v2519, 1.442695
      %v2539 = vpow.pop %v2538
      %v2540 = vmul.f32 %v2520, 1.442695
      %v2541 = vpow.pop %v2540
      %v2542 = vmul.f32 %v2521, 1.442695
      %v2543 = vpow.pop %v2542
      %v2544 = vmul.f32 %v2522, 1.442695
      %v2545 = vpow.pop %v2544
      %v2546 = vmul.f32 %v2523, 1.442695
      %v2547 = vpow.pop %v2546
      %v2548 = vsel %vm1240, %v2525, 0.0
      %2549 = vadd.xlane.f32.xlu0 %v2548
      %v2550 = vpop.xlane.xlu0 %2549
      %v2551 = vsel %vm1240, %v2527, 0.0
      %2552 = vadd.xlane.f32.xlu0 %v2551
      %v2553 = vpop.xlane.xlu0 %2552
      %v2554 = vsel %vm1240, %v2529, 0.0
      %2555 = vadd.xlane.f32.xlu0 %v2554
      %v2556 = vpop.xlane.xlu0 %2555
      %v2557 = vsel %vm1240, %v2531, 0.0
      %2558 = vadd.xlane.f32.xlu0 %v2557
      %v2559 = vpop.xlane.xlu0 %2558
      %v2560 = vsel %vm1240, %v2533, 0.0
      %2561 = vadd.xlane.f32.xlu0 %v2560
      %v2562 = vpop.xlane.xlu0 %2561
      %v2563 = vsel %vm1240, %v2535, 0.0
      %2564 = vadd.xlane.f32.xlu0 %v2563
      %v2565 = vpop.xlane.xlu0 %2564
      %v2566 = vsel %vm1240, %v2537, 0.0
      %2567 = vadd.xlane.f32.xlu0 %v2566
      %v2568 = vpop.xlane.xlu0 %2567
      %v2569 = vsel %vm1240, %v2539, 0.0
      %2570 = vadd.xlane.f32.xlu0 %v2569
      %v2571 = vpop.xlane.xlu0 %2570
      %v2572 = vsel %vm1240, %v2541, 0.0
      %2573 = vadd.xlane.f32.xlu0 %v2572
      %v2574 = vpop.xlane.xlu0 %2573
      %v2575 = vsel %vm1240, %v2543, 0.0
      %2576 = vadd.xlane.f32.xlu0 %v2575
      %v2577 = vpop.xlane.xlu0 %2576
      %v2578 = vsel %vm1240, %v2545, 0.0
      %2579 = vadd.xlane.f32.xlu0 %v2578
      %v2580 = vpop.xlane.xlu0 %2579
      %v2581 = vsel %vm1240, %v2547, 0.0
      %2582 = vadd.xlane.f32.xlu0 %v2581
      %v2583 = vpop.xlane.xlu0 %2582
      %v2584 = vrcp.pop %v2550
      %v2585 = vrcp.pop %v2553
      %v2586 = vrcp.pop %v2556
      %v2587 = vrcp.pop %v2559
      %v2588 = vrcp.pop %v2562
      %v2589 = vrcp.pop %v2565
      %v2590 = vrcp.pop %v2568
      %v2591 = vrcp.pop %v2571
      %v2592 = vrcp.pop %v2574
      %v2593 = vrcp.pop %v2577
      %v2594 = vrcp.pop %v2580
      %v2595 = vrcp.pop %v2583
      %v2596 = vmul.f32 %v2525, %v2584
      %v2597 = vmul.f32 %v2527, %v2585
      %v2598 = vmul.f32 %v2529, %v2586
      %v2599 = vmul.f32 %v2531, %v2587
      %v2600 = vmul.f32 %v2533, %v2588
      %v2601 = vmul.f32 %v2535, %v2589
      %v2602 = vmul.f32 %v2537, %v2590
      %v2603 = vmul.f32 %v2539, %v2591
      %v2604 = vmul.f32 %v2541, %v2592
      %v2605 = vmul.f32 %v2543, %v2593
      %v2606 = vmul.f32 %v2545, %v2594
      %v2607 = vmul.f32 %v2547, %v2595
      %v2608 = vpack.c.bf16 %v2597, %v2596
      %v2609 = vpack.c.bf16 %v2598, %v2598
      %2610 = vrot.lane.b32.xlu0 %v2192, 64
      %v2611 = vpop.permute.xlu0 %2610
      %2612 = vrot.lane.b32.xlu0 %v2193, 64
      %v2613 = vpop.permute.xlu0 %2612
      %v2616 = vsel %vm1240, %v2608, 0
      %v2619 = vsel %vm1240, %v2609, 0
      %v2622 = vsel %vm1386, %v2613, 0
      %2624 = vmatprep.subr.bf16.mxu0 0
      %2625 = vmatpush1.bf16.msra.mxu0 %v2611
      %2626 = vmatprep.subr.bf16.mxu0 0
      %2627 = vmatpush1.bf16.msra.mxu0 %v2622
      %2628 = vmatprep.subr.bf16.mxu0 0
      %2629 = vmatpush1.bf16.msra.mxu0 0
      %2630 = vmatprep.subr.bf16.mxu0 0
      %2631 = vmatpush1.bf16.msra.mxu0 0
      %2632 = vmatprep.subr.bf16.mxu0 0
      %2633 = vmatpush1.bf16.msra.mxu0 0
      %2634 = vmatprep.subr.bf16.mxu0 0
      %2635 = vmatpush1.bf16.msra.mxu0 0
      %2636 = vmatprep.subr.bf16.mxu0 0
      %2637 = vmatpush1.bf16.msra.mxu0 0
      %2638 = vmatprep.subr.bf16.mxu0 0
      %2639 = vmatpush1.bf16.msra.mxu0 0
      %2640 = vmatprep.subr.bf16.mxu0 0
      %2641 = vmatpush1.bf16.msra.mxu0 0
      %2642 = vmatprep.subr.bf16.mxu0 0
      %2643 = vmatpush1.bf16.msra.mxu0 0
      %2644 = vmatprep.subr.bf16.mxu0 0
      %2645 = vmatpush1.bf16.msra.mxu0 0
      %2646 = vmatprep.subr.bf16.mxu0 0
      %2647 = vmatpush1.bf16.msra.mxu0 0
      %2648 = vmatprep.subr.bf16.mxu0 0
      %2649 = vmatpush1.bf16.msra.mxu0 0
      %2650 = vmatprep.subr.bf16.mxu0 0
      %2651 = vmatpush1.bf16.msra.mxu0 0
      %2652 = vmatprep.subr.bf16.mxu0 0
      %2653 = vmatpush1.bf16.msra.mxu0 0
      %2654 = vmatprep.subr.bf16.mxu0 0
      %2655 = vmatpush1.bf16.msra.mxu0 0
      %2656 = vmatprep.mubr.bf16.mxu0 0
      %2657 = vmatmul.mubr.bf16.gmra.mrb[0].mxu0 %v2616
      %v2658 = vpop.f32.mrb[0].mxu0
      %v2659 = vadd.f32 0.0, %v2658
      %v2660 = vpop.f32.mrb[0].mxu0
      %v2661 = vpop.f32.mrb[0].mxu0
      %v2662 = vadd.f32 0.0, %v2661
      %v2663 = vpop.f32.mrb[0].mxu0
      %2664 = vmatprep.mubr.bf16.mxu0 0
      %2665 = vmatmul.mubr.bf16.gmra.mrb[0].mxu0 %v2619
      %v2666 = vpop.f32.mrb[0].mxu0
      %v2667 = vadd.f32 0.0, %v2666
      %v2668 = vpop.f32.mrb[0].mxu0
      %v2669 = vpop.f32.mrb[0].mxu0
      %v2670 = vpop.f32.mrb[0].mxu0
      %2671 = vdwg.mxu0
      %v2672 = vpack.c.bf16 %v2600, %v2599
      %v2673 = vpack.c.bf16 %v2601, %v2601
      %2674 = vrot.lane.b32.xlu0 %v2192, 56
      %v2675 = vpop.permute.xlu0 %2674
      %2676 = vrot.lane.b32.xlu0 %v2193, 56
      %v2677 = vpop.permute.xlu0 %2676
      %v2680 = vsel %vm1240, %v2672, 0
      %v2683 = vsel %vm1240, %v2673, 0
      %v2686 = vsel %vm1386, %v2677, 0
      %2688 = vmatprep.subr.bf16.mxu0 0
      %2689 = vmatpush1.bf16.msra.mxu0 %v2675
      %2690 = vmatprep.subr.bf16.mxu0 0
      %2691 = vmatpush1.bf16.msra.mxu0 %v2686
      %2692 = vmatprep.subr.bf16.mxu0 0
      %2693 = vmatpush1.bf16.msra.mxu0 0
      %2694 = vmatprep.subr.bf16.mxu0 0
      %2695 = vmatpush1.bf16.msra.mxu0 0
      %2696 = vmatprep.subr.bf16.mxu0 0
      %2697 = vmatpush1.bf16.msra.mxu0 0
      %2698 = vmatprep.subr.bf16.mxu0 0
      %2699 = vmatpush1.bf16.msra.mxu0 0
      %2700 = vmatprep.subr.bf16.mxu0 0
      %2701 = vmatpush1.bf16.msra.mxu0 0
      %2702 = vmatprep.subr.bf16.mxu0 0
      %2703 = vmatpush1.bf16.msra.mxu0 0
      %2704 = vmatprep.subr.bf16.mxu0 0
      %2705 = vmatpush1.bf16.msra.mxu0 0
      %2706 = vmatprep.subr.bf16.mxu0 0
      %2707 = vmatpush1.bf16.msra.mxu0 0
      %2708 = vmatprep.subr.bf16.mxu0 0
      %2709 = vmatpush1.bf16.msra.mxu0 0
      %2710 = vmatprep.subr.bf16.mxu0 0
      %2711 = vmatpush1.bf16.msra.mxu0 0
      %2712 = vmatprep.subr.bf16.mxu0 0
      %2713 = vmatpush1.bf16.msra.mxu0 0
      %2714 = vmatprep.subr.bf16.mxu0 0
      %2715 = vmatpush1.bf16.msra.mxu0 0
      %2716 = vmatprep.subr.bf16.mxu0 0
      %2717 = vmatpush1.bf16.msra.mxu0 0
      %2718 = vmatprep.subr.bf16.mxu0 0
      %2719 = vmatpush1.bf16.msra.mxu0 0
      %2720 = vmatprep.mubr.bf16.mxu0 0
      %2721 = vmatmul.mubr.bf16.gmra.mrb[0].mxu0 %v2680
      %v2722 = vpop.f32.mrb[0].mxu0
      %v2723 = vadd.f32 0.0, %v2722
      %v2724 = vpop.f32.mrb[0].mxu0
      %v2725 = vpop.f32.mrb[0].mxu0
      %v2726 = vadd.f32 0.0, %v2725
      %v2727 = vpop.f32.mrb[0].mxu0
      %2728 = vmatprep.mubr.bf16.mxu0 0
      %2729 = vmatmul.mubr.bf16.gmra.mrb[0].mxu0 %v2683
      %v2730 = vpop.f32.mrb[0].mxu0
      %v2731 = vadd.f32 0.0, %v2730
      %v2732 = vpop.f32.mrb[0].mxu0
      %v2733 = vpop.f32.mrb[0].mxu0
      %v2734 = vpop.f32.mrb[0].mxu0
      %2735 = vdwg.mxu0
      %v2736 = vpack.c.bf16 %v2603, %v2602
      %v2737 = vpack.c.bf16 %v2604, %v2604
      %2738 = vrot.lane.b32.xlu0 %v2192, 48
      %v2739 = vpop.permute.xlu0 %2738
      %2740 = vrot.lane.b32.xlu0 %v2193, 48
      %v2741 = vpop.permute.xlu0 %2740
      %v2744 = vsel %vm1240, %v2736, 0
      %v2747 = vsel %vm1240, %v2737, 0
      %v2750 = vsel %vm1386, %v2741, 0
      %2752 = vmatprep.subr.bf16.mxu0 0
      %2753 = vmatpush1.bf16.msra.mxu0 %v2739
      %2754 = vmatprep.subr.bf16.mxu0 0
      %2755 = vmatpush1.bf16.msra.mxu0 %v2750
      %2756 = vmatprep.subr.bf16.mxu0 0
      %2757 = vmatpush1.bf16.msra.mxu0 0
      %2758 = vmatprep.subr.bf16.mxu0 0
      %2759 = vmatpush1.bf16.msra.mxu0 0
      %2760 = vmatprep.subr.bf16.mxu0 0
      %2761 = vmatpush1.bf16.msra.mxu0 0
      %2762 = vmatprep.subr.bf16.mxu0 0
      %2763 = vmatpush1.bf16.msra.mxu0 0
      %2764 = vmatprep.subr.bf16.mxu0 0
      %2765 = vmatpush1.bf16.msra.mxu0 0
      %2766 = vmatprep.subr.bf16.mxu0 0
      %2767 = vmatpush1.bf16.msra.mxu0 0
      %2768 = vmatprep.subr.bf16.mxu0 0
      %2769 = vmatpush1.bf16.msra.mxu0 0
      %2770 = vmatprep.subr.bf16.mxu0 0
      %2771 = vmatpush1.bf16.msra.mxu0 0
      %2772 = vmatprep.subr.bf16.mxu0 0
      %2773 = vmatpush1.bf16.msra.mxu0 0
      %2774 = vmatprep.subr.bf16.mxu0 0
      %2775 = vmatpush1.bf16.msra.mxu0 0
      %2776 = vmatprep.subr.bf16.mxu0 0
      %2777 = vmatpush1.bf16.msra.mxu0 0
      %2778 = vmatprep.subr.bf16.mxu0 0
      %2779 = vmatpush1.bf16.msra.mxu0 0
      %2780 = vmatprep.subr.bf16.mxu0 0
      %2781 = vmatpush1.bf16.msra.mxu0 0
      %2782 = vmatprep.subr.bf16.mxu0 0
      %2783 = vmatpush1.bf16.msra.mxu0 0
      %2784 = vmatprep.mubr.bf16.mxu0 0
      %2785 = vmatmul.mubr.bf16.gmra.mrb[0].mxu0 %v2744
      %v2786 = vpop.f32.mrb[0].mxu0
      %v2787 = vadd.f32 0.0, %v2786
      %v2788 = vpop.f32.mrb[0].mxu0
      %v2789 = vpop.f32.mrb[0].mxu0
      %v2790 = vadd.f32 0.0, %v2789
      %v2791 = vpop.f32.mrb[0].mxu0
      %2792 = vmatprep.mubr.bf16.mxu0 0
      %2793 = vmatmul.mubr.bf16.gmra.mrb[0].mxu0 %v2747
      %v2794 = vpop.f32.mrb[0].mxu0
      %v2795 = vadd.f32 0.0, %v2794
      %v2796 = vpop.f32.mrb[0].mxu0
      %v2797 = vpop.f32.mrb[0].mxu0
      %v2798 = vpop.f32.mrb[0].mxu0
      %2799 = vdwg.mxu0
      %v2800 = vpack.c.bf16 %v2606, %v2605
      %v2801 = vpack.c.bf16 %v2607, %v2607
      %2802 = vrot.lane.b32.xlu0 %v2192, 40
      %v2803 = vpop.permute.xlu0 %2802
      %2804 = vrot.lane.b32.xlu0 %v2193, 40
      %v2805 = vpop.permute.xlu0 %2804
      %v2808 = vsel %vm1240, %v2800, 0
      %v2811 = vsel %vm1240, %v2801, 0
      %v2814 = vsel %vm1386, %v2805, 0
      %2816 = vmatprep.subr.bf16.mxu0 0
      %2817 = vmatpush1.bf16.msra.mxu0 %v2803
      %2818 = vmatprep.subr.bf16.mxu0 0
      %2819 = vmatpush1.bf16.msra.mxu0 %v2814
      %2820 = vmatprep.subr.bf16.mxu0 0
      %2821 = vmatpush1.bf16.msra.mxu0 0
      %2822 = vmatprep.subr.bf16.mxu0 0
      %2823 = vmatpush1.bf16.msra.mxu0 0
      %2824 = vmatprep.subr.bf16.mxu0 0
      %2825 = vmatpush1.bf16.msra.mxu0 0
      %2826 = vmatprep.subr.bf16.mxu0 0
      %2827 = vmatpush1.bf16.msra.mxu0 0
      %2828 = vmatprep.subr.bf16.mxu0 0
      %2829 = vmatpush1.bf16.msra.mxu0 0
      %2830 = vmatprep.subr.bf16.mxu0 0
      %2831 = vmatpush1.bf16.msra.mxu0 0
      %2832 = vmatprep.subr.bf16.mxu0 0
      %2833 = vmatpush1.bf16.msra.mxu0 0
      %2834 = vmatprep.subr.bf16.mxu0 0
      %2835 = vmatpush1.bf16.msra.mxu0 0
      %2836 = vmatprep.subr.bf16.mxu0 0
      %2837 = vmatpush1.bf16.msra.mxu0 0
      %2838 = vmatprep.subr.bf16.mxu0 0
      %2839 = vmatpush1.bf16.msra.mxu0 0
      %2840 = vmatprep.subr.bf16.mxu0 0
      %2841 = vmatpush1.bf16.msra.mxu0 0
      %2842 = vmatprep.subr.bf16.mxu0 0
      %2843 = vmatpush1.bf16.msra.mxu0 0
      %2844 = vmatprep.subr.bf16.mxu0 0
      %2845 = vmatpush1.bf16.msra.mxu0 0
      %2846 = vmatprep.subr.bf16.mxu0 0
      %2847 = vmatpush1.bf16.msra.mxu0 0
      %2848 = vmatprep.mubr.bf16.mxu0 0
      %2849 = vmatmul.mubr.bf16.gmra.mrb[0].mxu0 %v2808
      %v2850 = vpop.f32.mrb[0].mxu0
      %v2851 = vadd.f32 0.0, %v2850
      %v2852 = vpop.f32.mrb[0].mxu0
      %v2853 = vpop.f32.mrb[0].mxu0
      %v2854 = vadd.f32 0.0, %v2853
      %v2855 = vpop.f32.mrb[0].mxu0
      %2856 = vmatprep.mubr.bf16.mxu0 0
      %2857 = vmatmul.mubr.bf16.gmra.mrb[0].mxu0 %v2811
      %v2858 = vpop.f32.mrb[0].mxu0
      %v2859 = vadd.f32 0.0, %v2858
      %v2860 = vpop.f32.mrb[0].mxu0
      %v2861 = vpop.f32.mrb[0].mxu0
      %v2862 = vpop.f32.mrb[0].mxu0
      %2863 = vdwg.mxu0
      %2867 = vrot.lane.b32.xlu0 %v2723, 8
      %v2868 = vpop.permute.xlu0 %2867
      %2869 = vrot.lane.b32.xlu0 %v2726, 8
      %v2870 = vpop.permute.xlu0 %2869
      %2871 = vrot.lane.b32.xlu0 %v2731, 8
      %v2872 = vpop.permute.xlu0 %2871
      %2879 = vrot.lane.b32.xlu0 %v2787, 16
      %v2880 = vpop.permute.xlu0 %2879
      %2881 = vrot.lane.b32.xlu0 %v2790, 16
      %v2882 = vpop.permute.xlu0 %2881
      %2883 = vrot.lane.b32.xlu0 %v2795, 16
      %v2884 = vpop.permute.xlu0 %2883
      %2891 = vrot.lane.b32.xlu0 %v2851, 24
      %v2892 = vpop.permute.xlu0 %2891
      %2893 = vrot.lane.b32.xlu0 %v2854, 24
      %v2894 = vpop.permute.xlu0 %2893
      %2895 = vrot.lane.b32.xlu0 %v2859, 24
      %v2896 = vpop.permute.xlu0 %2895
      %v2900 = vsel %vm957, %v2659, %v2868
      %v2901 = vsel %vm957, %v2662, %v2870
      %v2902 = vsel %vm957, %v2667, %v2872
      %v2903 = vsel %vm1669, %v2900, %v2880
      %v2904 = vsel %vm1669, %v2901, %v2882
      %v2905 = vsel %vm1669, %v2902, %v2884
      %v2906 = vsel %vm1240, %v2903, %v2892
      %v2907 = vsel %vm1240, %v2904, %v2894
      %v2908 = vsel %vm1240, %v2905, %v2896
      %v2909 = vpack.c.bf16 %v2907, %v2906
      %v2910 = vpack.c.bf16 %v2908, %v2908
      %s2911 = scalar_lea.vmem %s10, 16
      %v2912 = vld [vmem:[%s2911] sm:$0xf]
      %v2913 = vld [vmem:[%s2911 + $0x4] sm:$0xf]
      %v2914 = vld [vmem:[%s2911 + $0x8] sm:$0xf]
      %v2915 = vld [vmem:[%s2911 + $0xc] sm:$0xf]
      %v2920 = vunpack.c.l.b16 %v2912
      %v2921 = vunpack.c.l.b16 %v2913
      %v2922 = vunpack.c.l.b16 %v2914
      %v2923 = vunpack.c.l.b16 %v2915
      %v2924 = vpack.c.b16 %v2921, %v2920
      %v2925 = vpack.c.b16 %v2923, %v2922
      %v2929 = vsel %vm751, %v2909, 0
      %v2932 = vsel %vm751, %v2910, 0
      %2934 = vmatprep.subr.bf16.mxu0 0
      %2935 = vmatpush1.bf16.msra.mxu0 %v2924
      %2936 = vmatprep.subr.bf16.mxu0 0
      %2937 = vmatpush1.bf16.msra.mxu0 %v2925
      %2938 = vmatprep.subr.bf16.mxu0 0
      %2939 = vmatpush1.bf16.msra.mxu0 0
      %2940 = vmatprep.subr.bf16.mxu0 0
      %2941 = vmatpush1.bf16.msra.mxu0 0
      %2942 = vmatprep.subr.bf16.mxu0 0
      %2943 = vmatpush1.bf16.msra.mxu0 0
      %2944 = vmatprep.subr.bf16.mxu0 0
      %2945 = vmatpush1.bf16.msra.mxu0 0
      %2946 = vmatprep.subr.bf16.mxu0 0
      %2947 = vmatpush1.bf16.msra.mxu0 0
      %2948 = vmatprep.subr.bf16.mxu0 0
      %2949 = vmatpush1.bf16.msra.mxu0 0
      %2950 = vmatprep.subr.bf16.mxu0 0
      %2951 = vmatpush1.bf16.msra.mxu0 0
      %2952 = vmatprep.subr.bf16.mxu0 0
      %2953 = vmatpush1.bf16.msra.mxu0 0
      %2954 = vmatprep.subr.bf16.mxu0 0
      %2955 = vmatpush1.bf16.msra.mxu0 0
      %2956 = vmatprep.subr.bf16.mxu0 0
      %2957 = vmatpush1.bf16.msra.mxu0 0
      %2958 = vmatprep.subr.bf16.mxu0 0
      %2959 = vmatpush1.bf16.msra.mxu0 0
      %2960 = vmatprep.subr.bf16.mxu0 0
      %2961 = vmatpush1.bf16.msra.mxu0 0
      %2962 = vmatprep.subr.bf16.mxu0 0
      %2963 = vmatpush1.bf16.msra.mxu0 0
      %2964 = vmatprep.subr.bf16.mxu0 0
      %2965 = vmatpush1.bf16.msra.mxu0 0
      %2966 = vmatprep.mubr.bf16.mxu0 0
      %2967 = vmatmul.mubr.bf16.gmra.mrb[0].mxu0 %v2929
      %v2968 = vpop.f32.mrb[0].mxu0
      %v2969 = vadd.f32 0.0, %v2968
      %v2970 = vpop.f32.mrb[0].mxu0
      %v2971 = vpop.f32.mrb[0].mxu0
      %v2972 = vadd.f32 0.0, %v2971
      %v2973 = vpop.f32.mrb[0].mxu0
      %2974 = vmatprep.mubr.bf16.mxu0 0
      %2975 = vmatmul.mubr.bf16.gmra.mrb[0].mxu0 %v2932
      %v2976 = vpop.f32.mrb[0].mxu0
      %v2977 = vadd.f32 0.0, %v2976
      %v2978 = vpop.f32.mrb[0].mxu0
      %v2979 = vpop.f32.mrb[0].mxu0
      %v2980 = vpop.f32.mrb[0].mxu0
      %2981 = vdwg.mxu0
      %v2982 = vadd.f32 %v2047, %v2969
      %v2983 = vadd.f32 %v2048, %v2972
      %v2984 = vadd.f32 %v2049, %v2977
      %s2985 = scalar_lea.vmem %s11, 1
      %v2986 = vld [vmem:[%s2985] sm:$0x1]
      %v2988 = vlaneseq
      %v2989 = vshrl.u32 %v2988, 7
      %v2990 = vsub.s32 0, %v2989
      %v2991 = vrot.slane %v2986, %v2990
      %v2993 = vadd.f32 %v2982, %v2991
      %v2994 = vadd.f32 %v2983, %v2991
      %v2995 = vadd.f32 %v2984, %v2991
      %s2996 = scalar_lea.vmem %s12, 1
      %v2997 = vld [vmem:[%s2996] sm:$0x1]
      %s2998 = scalar_lea.vmem %s13, 1
      %v2999 = vld [vmem:[%s2998] sm:$0x1]
      %v3000 = vsel %vm751, %v2993, 0.0
      %3001 = vadd.xlane.f32.xlu0 %v3000
      %v3002 = vpop.xlane.xlu0 %3001
      %v3003 = vsel %vm751, %v2994, 0.0
      %3004 = vadd.xlane.f32.xlu0 %v3003
      %v3005 = vpop.xlane.xlu0 %3004
      %v3006 = vsel %vm751, %v2995, 0.0
      %3007 = vadd.xlane.f32.xlu0 %v3006
      %v3008 = vpop.xlane.xlu0 %3007
      %v3009 = vmul.f32 %v3002, %v761
      %v3010 = vmul.f32 %v3005, %v761
      %v3011 = vmul.f32 %v3008, %v761
      %v3012 = vsub.f32 %v2993, %v3009
      %v3013 = vsub.f32 %v2994, %v3010
      %v3014 = vsub.f32 %v2995, %v3011
      %v3015 = vmul.f32 %v3012, %v3012
      %v3016 = vmul.f32 %v3013, %v3013
      %v3017 = vmul.f32 %v3014, %v3014
      %v3018 = vsel %vm751, %v3015, 0.0
      %3019 = vadd.xlane.f32.xlu0 %v3018
      %v3020 = vpop.xlane.xlu0 %3019
      %v3021 = vsel %vm751, %v3016, 0.0
      %3022 = vadd.xlane.f32.xlu0 %v3021
      %v3023 = vpop.xlane.xlu0 %3022
      %v3024 = vsel %vm751, %v3017, 0.0
      %3025 = vadd.xlane.f32.xlu0 %v3024
      %v3026 = vpop.xlane.xlu0 %3025
      %v3027 = vmul.f32 %v3020, %v761
      %v3028 = vmul.f32 %v3023, %v761
      %v3029 = vmul.f32 %v3026, %v761
      %v3030 = vadd.f32 %v3027, 1e-05
      %v3031 = vadd.f32 %v3028, 1e-05
      %v3032 = vadd.f32 %v3029, 1e-05
      %v3033 = vrsqrt.pop %v3030
      %v3034 = vrsqrt.pop %v3031
      %v3035 = vrsqrt.pop %v3032
      %v3036 = vmul.f32 %v3012, %v3033
      %v3037 = vmul.f32 %v3013, %v3034
      %v3038 = vmul.f32 %v3014, %v3035
      %v3040 = vlaneseq
      %v3041 = vshrl.u32 %v3040, 7
      %v3042 = vsub.s32 0, %v3041
      %v3043 = vrot.slane %v2997, %v3042
      %v3045 = vmul.f32 %v3036, %v3043
      %v3046 = vmul.f32 %v3037, %v3043
      %v3047 = vmul.f32 %v3038, %v3043
      %v3049 = vlaneseq
      %v3050 = vshrl.u32 %v3049, 7
      %v3051 = vsub.s32 0, %v3050
      %v3052 = vrot.slane %v2999, %v3051
      %v3054 = vadd.f32 %v3045, %v3052
      %v3055 = vadd.f32 %v3046, %v3052
      %v3056 = vadd.f32 %v3047, %v3052
      %v3057 = vpack.c.bf16 %v3055, %v3054
      %v3058 = vpack.c.bf16 %v3056, %v3056
      %s3059 = scalar_lea.vmem %s14, 16
      %v3060 = vld [vmem:[%s3059] sm:$0xf]
      %v3061 = vld [vmem:[%s3059 + $0x4] sm:$0xf]
      %v3062 = vld [vmem:[%s3059 + $0x8] sm:$0xf]
      %v3063 = vld [vmem:[%s3059 + $0xc] sm:$0xf]
      %s3064 = scalar_lea.vmem %s15, 1
      %v3065 = vld [vmem:[%s3064] sm:$0x1]
      %v3067 = vlaneseq
      %v3068 = vshrl.u32 %v3067, 7
      %v3069 = vsub.s32 0, %v3068
      %v3070 = vrot.slane %v3065, %v3069
      %v3076 = vunpack.c.l.b16 %v3060
      %v3077 = vunpack.c.l.b16 %v3061
      %v3078 = vunpack.c.l.b16 %v3062
      %v3079 = vunpack.c.l.b16 %v3063
      %v3080 = vpack.c.b16 %v3077, %v3076
      %v3081 = vpack.c.b16 %v3079, %v3078
      %v3085 = vsel %vm751, %v3057, 0
      %v3088 = vsel %vm751, %v3058, 0
      %3090 = vmatprep.subr.bf16.mxu0 0
      %3091 = vmatpush1.bf16.msra.mxu0 %v3080
      %3092 = vmatprep.subr.bf16.mxu0 0
      %3093 = vmatpush1.bf16.msra.mxu0 %v3081
      %3094 = vmatprep.subr.bf16.mxu0 0
      %3095 = vmatpush1.bf16.msra.mxu0 0
      %3096 = vmatprep.subr.bf16.mxu0 0
      %3097 = vmatpush1.bf16.msra.mxu0 0
      %3098 = vmatprep.subr.bf16.mxu0 0
      %3099 = vmatpush1.bf16.msra.mxu0 0
      %3100 = vmatprep.subr.bf16.mxu0 0
      %3101 = vmatpush1.bf16.msra.mxu0 0
      %3102 = vmatprep.subr.bf16.mxu0 0
      %3103 = vmatpush1.bf16.msra.mxu0 0
      %3104 = vmatprep.subr.bf16.mxu0 0
      %3105 = vmatpush1.bf16.msra.mxu0 0
      %3106 = vmatprep.subr.bf16.mxu0 0
      %3107 = vmatpush1.bf16.msra.mxu0 0
      %3108 = vmatprep.subr.bf16.mxu0 0
      %3109 = vmatpush1.bf16.msra.mxu0 0
      %3110 = vmatprep.subr.bf16.mxu0 0
      %3111 = vmatpush1.bf16.msra.mxu0 0
      %3112 = vmatprep.subr.bf16.mxu0 0
      %3113 = vmatpush1.bf16.msra.mxu0 0
      %3114 = vmatprep.subr.bf16.mxu0 0
      %3115 = vmatpush1.bf16.msra.mxu0 0
      %3116 = vmatprep.subr.bf16.mxu0 0
      %3117 = vmatpush1.bf16.msra.mxu0 0
      %3118 = vmatprep.subr.bf16.mxu0 0
      %3119 = vmatpush1.bf16.msra.mxu0 0
      %3120 = vmatprep.subr.bf16.mxu0 0
      %3121 = vmatpush1.bf16.msra.mxu0 0
      %3122 = vmatprep.mubr.bf16.mxu0 0
      %3123 = vmatmul.mubr.bf16.gmra.mrb[0].mxu0 %v3085
      %v3124 = vpop.f32.mrb[0].mxu0
      %v3125 = vadd.f32 %v3070, %v3124
      %v3126 = vpop.f32.mrb[0].mxu0
      %v3127 = vpop.f32.mrb[0].mxu0
      %v3128 = vadd.f32 %v3070, %v3127
      %v3129 = vpop.f32.mrb[0].mxu0
      %3130 = vmatprep.mubr.bf16.mxu0 0
      %3131 = vmatmul.mubr.bf16.gmra.mrb[0].mxu0 %v3088
      %v3132 = vpop.f32.mrb[0].mxu0
      %v3133 = vadd.f32 %v3070, %v3132
      %v3134 = vpop.f32.mrb[0].mxu0
      %v3135 = vpop.f32.mrb[0].mxu0
      %v3136 = vpop.f32.mrb[0].mxu0
      %3137 = vdwg.mxu0
      %v3138 = vmul.f32 %v3125, 1.702
      %v3139 = vmul.f32 %v3128, 1.702
      %v3140 = vmul.f32 %v3133, 1.702
      %v3141 = vxor.u32 %v3138, 2147483648
      %v3142 = vxor.u32 %v3139, 2147483648
      %v3143 = vxor.u32 %v3140, 2147483648
      %v3144 = vmul.f32 %v3141, 1.442695
      %v3145 = vpow.pop %v3144
      %v3146 = vmul.f32 %v3142, 1.442695
      %v3147 = vpow.pop %v3146
      %v3148 = vmul.f32 %v3143, 1.442695
      %v3149 = vpow.pop %v3148
      %v3150 = vadd.f32 %v3145, 1.0
      %v3151 = vadd.f32 %v3147, 1.0
      %v3152 = vadd.f32 %v3149, 1.0
      %v3153 = vrcp.pop %v3150
      %v3154 = vmul.f32 1.0, %v3153
      %v3155 = vrcp.pop %v3151
      %v3156 = vmul.f32 1.0, %v3155
      %v3157 = vrcp.pop %v3152
      %v3158 = vmul.f32 1.0, %v3157
      %v3159 = vmul.f32 %v3125, %v3154
      %v3160 = vmul.f32 %v3128, %v3156
      %v3161 = vmul.f32 %v3133, %v3158
      %v3162 = vpack.c.bf16 %v3160, %v3159
      %v3163 = vpack.c.bf16 %v3161, %v3161
      %s3164 = scalar_lea.vmem %s16, 64
      %v3165 = vld [vmem:[%s3164] sm:$0xf]
      %v3166 = vld [vmem:[%s3164 + $0x4] sm:$0xf]
      %v3167 = vld [vmem:[%s3164 + $0x8] sm:$0xf]
      %v3168 = vld [vmem:[%s3164 + $0xc] sm:$0xf]
      %v3169 = vld [vmem:[%s3164 + $0x10] sm:$0xf]
      %v3170 = vld [vmem:[%s3164 + $0x14] sm:$0xf]
      %v3171 = vld [vmem:[%s3164 + $0x18] sm:$0xf]
      %v3172 = vld [vmem:[%s3164 + $0x1c] sm:$0xf]
      %v3173 = vld [vmem:[%s3164 + $0x20] sm:$0xf]
      %v3174 = vld [vmem:[%s3164 + $0x24] sm:$0xf]
      %v3175 = vld [vmem:[%s3164 + $0x28] sm:$0xf]
      %v3176 = vld [vmem:[%s3164 + $0x2c] sm:$0xf]
      %v3177 = vld [vmem:[%s3164 + $0x30] sm:$0xf]
      %v3178 = vld [vmem:[%s3164 + $0x34] sm:$0xf]
      %v3179 = vld [vmem:[%s3164 + $0x38] sm:$0xf]
      %v3180 = vld [vmem:[%s3164 + $0x3c] sm:$0xf]
      %v3197 = vunpack.c.l.b16 %v3165
      %v3198 = vunpack.c.l.b16 %v3166
      %v3199 = vunpack.c.l.b16 %v3167
      %v3200 = vunpack.c.l.b16 %v3168
      %v3201 = vunpack.c.l.b16 %v3169
      %v3202 = vunpack.c.l.b16 %v3170
      %v3203 = vunpack.c.l.b16 %v3171
      %v3204 = vunpack.c.l.b16 %v3172
      %v3205 = vunpack.c.l.b16 %v3173
      %v3206 = vunpack.c.l.b16 %v3174
      %v3207 = vunpack.c.l.b16 %v3175
      %v3208 = vunpack.c.l.b16 %v3176
      %v3209 = vunpack.c.l.b16 %v3177
      %v3210 = vunpack.c.l.b16 %v3178
      %v3211 = vunpack.c.l.b16 %v3179
      %v3212 = vunpack.c.l.b16 %v3180
      %v3213 = vpack.c.b16 %v3198, %v3197
      %v3214 = vpack.c.b16 %v3200, %v3199
      %v3215 = vpack.c.b16 %v3202, %v3201
      %v3216 = vpack.c.b16 %v3204, %v3203
      %v3217 = vpack.c.b16 %v3206, %v3205
      %v3218 = vpack.c.b16 %v3208, %v3207
      %v3219 = vpack.c.b16 %v3210, %v3209
      %v3220 = vpack.c.b16 %v3212, %v3211
      %3229 = vmatprep.subr.bf16.mxu0 0
      %3230 = vmatpush1.bf16.msra.mxu0 %v3213
      %3231 = vmatprep.subr.bf16.mxu0 0
      %3232 = vmatpush1.bf16.msra.mxu0 %v3214
      %3233 = vmatprep.subr.bf16.mxu0 0
      %3234 = vmatpush1.bf16.msra.mxu0 %v3215
      %3235 = vmatprep.subr.bf16.mxu0 0
      %3236 = vmatpush1.bf16.msra.mxu0 %v3216
      %3237 = vmatprep.subr.bf16.mxu0 0
      %3238 = vmatpush1.bf16.msra.mxu0 %v3217
      %3239 = vmatprep.subr.bf16.mxu0 0
      %3240 = vmatpush1.bf16.msra.mxu0 %v3218
      %3241 = vmatprep.subr.bf16.mxu0 0
      %3242 = vmatpush1.bf16.msra.mxu0 %v3219
      %3243 = vmatprep.subr.bf16.mxu0 0
      %3244 = vmatpush1.bf16.msra.mxu0 %v3220
      %3245 = vmatprep.subr.bf16.mxu0 0
      %3246 = vmatpush1.bf16.msra.mxu0 0
      %3247 = vmatprep.subr.bf16.mxu0 0
      %3248 = vmatpush1.bf16.msra.mxu0 0
      %3249 = vmatprep.subr.bf16.mxu0 0
      %3250 = vmatpush1.bf16.msra.mxu0 0
      %3251 = vmatprep.subr.bf16.mxu0 0
      %3252 = vmatpush1.bf16.msra.mxu0 0
      %3253 = vmatprep.subr.bf16.mxu0 0
      %3254 = vmatpush1.bf16.msra.mxu0 0
      %3255 = vmatprep.subr.bf16.mxu0 0
      %3256 = vmatpush1.bf16.msra.mxu0 0
      %3257 = vmatprep.subr.bf16.mxu0 0
      %3258 = vmatpush1.bf16.msra.mxu0 0
      %3259 = vmatprep.subr.bf16.mxu0 0
      %3260 = vmatpush1.bf16.msra.mxu0 0
      %3261 = vmatprep.mubr.bf16.mxu0 0
      %3262 = vmatmul.mubr.bf16.gmra.mrb[0].mxu0 %v3162
      %v3263 = vpop.f32.mrb[0].mxu0
      %v3264 = vadd.f32 0.0, %v3263
      %v3265 = vpop.f32.mrb[0].mxu0
      %v3266 = vpop.f32.mrb[0].mxu0
      %v3267 = vpop.f32.mrb[0].mxu0
      %3268 = vmatprep.mubr.bf16.mxu0 0
      %3269 = vmatmul.mubr.bf16.gmra.mrb[0].mxu0 %v3163
      %v3270 = vpop.f32.mrb[0].mxu0
      %v3271 = vpop.f32.mrb[0].mxu0
      %v3272 = vpop.f32.mrb[0].mxu0
      %v3273 = vpop.f32.mrb[0].mxu0
      %3274 = vdwg.mxu0
      %v3275 = vadd.f32 %v2993, %v3264
      %s3276 = scalar_lea.vmem %s17, 1
      %v3277 = vld [vmem:[%s3276] sm:$0x1]
      %v3279 = vlaneseq
      %v3280 = vshrl.u32 %v3279, 7
      %v3281 = vsub.s32 0, %v3280
      %v3282 = vrot.slane %v3277, %v3281
      %v3284 = vadd.f32 %v3275, %v3282
      %v3285 = vld [vmem:[%s18] sm:$0x1]
      %v3286 = vld [vmem:[%s19] sm:$0x1]
      %v3287 = vsel %vm751, %v3284, 0.0
      %3288 = vadd.xlane.f32.xlu0 %v3287
      %v3289 = vpop.xlane.xlu0 %3288
      %v3290 = vmul.f32 %v3289, %v761
      %v3291 = vsub.f32 %v3284, %v3290
      %v3292 = vmul.f32 %v3291, %v3291
      %v3293 = vsel %vm751, %v3292, 0.0
      %3294 = vadd.xlane.f32.xlu0 %v3293
      %v3295 = vpop.xlane.xlu0 %3294
      %v3296 = vmul.f32 %v3295, %v761
      %v3297 = vadd.f32 %v3296, 1e-05
      %v3298 = vrsqrt.pop %v3297
      %v3299 = vmul.f32 %v3291, %v3298
      %v3301 = vlaneseq
      %v3302 = vshrl.u32 %v3301, 7
      %v3303 = vsub.s32 0, %v3302
      %v3304 = vrot.slane %v3285, %v3303
      %v3306 = vmul.f32 %v3299, %v3304
      %v3308 = vlaneseq
      %v3309 = vshrl.u32 %v3308, 7
      %v3310 = vsub.s32 0, %v3309
      %v3311 = vrot.slane %v3286, %v3310
      %v3313 = vadd.f32 %v3306, %v3311
      %v3314 = vpack.c.bf16 %v3313, %v3313
      %v3315 = vld [vmem:[%s20] sm:$0xf]
      %v3316 = vld [vmem:[%s20 + $0x4] sm:$0xf]
      %v3317 = vld [vmem:[%s20 + $0x8] sm:$0xf]
      %v3318 = vld [vmem:[%s20 + $0xc] sm:$0xf]
      %v3323 = vunpack.c.l.b16 %v3315
      %v3324 = vunpack.c.l.b16 %v3316
      %v3325 = vunpack.c.l.b16 %v3317
      %v3326 = vunpack.c.l.b16 %v3318
      %v3327 = vpack.c.b16 %v3324, %v3323
      %v3328 = vpack.c.b16 %v3326, %v3325
      %v3332 = vsel %vm751, %v3314, 0
      %3334 = vmatprep.subr.bf16.mxu0 0
      %3335 = vmatpush1.bf16.msra.mxu0 %v3327
      %3336 = vmatprep.subr.bf16.mxu0 0
      %3337 = vmatpush1.bf16.msra.mxu0 %v3328
      %3338 = vmatprep.subr.bf16.mxu0 0
      %3339 = vmatpush1.bf16.msra.mxu0 0
      %3340 = vmatprep.subr.bf16.mxu0 0
      %3341 = vmatpush1.bf16.msra.mxu0 0
      %3342 = vmatprep.subr.bf16.mxu0 0
      %3343 = vmatpush1.bf16.msra.mxu0 0
      %3344 = vmatprep.subr.bf16.mxu0 0
      %3345 = vmatpush1.bf16.msra.mxu0 0
      %3346 = vmatprep.subr.bf16.mxu0 0
      %3347 = vmatpush1.bf16.msra.mxu0 0
      %3348 = vmatprep.subr.bf16.mxu0 0
      %3349 = vmatpush1.bf16.msra.mxu0 0
      %3350 = vmatprep.subr.bf16.mxu0 0
      %3351 = vmatpush1.bf16.msra.mxu0 0
      %3352 = vmatprep.subr.bf16.mxu0 0
      %3353 = vmatpush1.bf16.msra.mxu0 0
      %3354 = vmatprep.subr.bf16.mxu0 0
      %3355 = vmatpush1.bf16.msra.mxu0 0
      %3356 = vmatprep.subr.bf16.mxu0 0
      %3357 = vmatpush1.bf16.msra.mxu0 0
      %3358 = vmatprep.subr.bf16.mxu0 0
      %3359 = vmatpush1.bf16.msra.mxu0 0
      %3360 = vmatprep.subr.bf16.mxu0 0
      %3361 = vmatpush1.bf16.msra.mxu0 0
      %3362 = vmatprep.subr.bf16.mxu0 0
      %3363 = vmatpush1.bf16.msra.mxu0 0
      %3364 = vmatprep.subr.bf16.mxu0 0
      %3365 = vmatpush1.bf16.msra.mxu0 0
      %3366 = vmatprep.mubr.bf16.mxu0 0
      %3367 = vmatmul.mubr.bf16.gmra.mrb[0].mxu0 %v3332
      %v3368 = vpop.f32.mrb[0].mxu0
      %v3369 = vadd.f32 0.0, %v3368
      %v3370 = vpop.f32.mrb[0].mxu0
      %v3371 = vpop.f32.mrb[0].mxu0
      %v3372 = vpop.f32.mrb[0].mxu0
      %3373 = vdwg.mxu0
      %3374 = vst [vmem:[%s654] sm:$0xff] %v3369
      %p3375 = scmp.lt.s32.totalorder %s32, 1
      %s3376 = scalar_select %p3375, %s32, 1
      %s3377 = smul.addr %s3376, 8
      %s3378 = scalar_lea.vmem %s21, %s3377
      // Predicated region
      $region105: #{encode_image.1} parent=103 // pred_check
        %p3379 = pneg %p496
      $region106: #{encode_image.1} parent=103 // pred_check_branch
        %3381 = sbr.rel (%p3379) target = $region108
      $region107: #{encode_image.1} parent=103 // pred_region
        _
      $region108: #{encode_image.1} parent=103 // pred_fallthru
        _
    $region104: #{encode_image.1} parent=5 // pred_fallthru
      _
    %p3382 = scmp.le.s32.totalorder 2, %s27
    // Predicated region
    $region109: #{encode_image.1} parent=5 // pred_check
      %p3383 = pneg %p3382
    $region110: #{encode_image.1} parent=5 // pred_check_branch
      %3385 = sbr.rel (%p3383) target = $region112
    $region111: #{encode_image.1} parent=5 // pred_region
      %s3386 = ssub.s32 %s27, 2
      // Predicated region
      $region113: #{encode_image.1} parent=111 // pred_check
        %p3387 = pneg %p502
      $region114: #{encode_image.1} parent=111 // pred_check_branch
        %3389 = sbr.rel (%p3387) target = $region116
      $region115: #{encode_image.1} parent=111 // pred_region
        %p3390 = scmp.lt.s32.totalorder %s33, 1
        %s3391 = scalar_select %p3390, %s33, 1
        %s3392 = smul.addr %s3391, 8
        %s3393 = scalar_lea.vmem %s21, %s3392
      $region116: #{encode_image.1} parent=111 // pred_fallthru
        _
    $region112: #{encode_image.1} parent=5 // pred_fallthru
      _
  $region6: #{encode_image.1} parent=0 // loop_footer
    %s31 = sadd.s32 1, %s27
  $region7: #{encode_image.1} parent=0 // loop_footer_branch
    %26 = sbr.rel target = $region3
  $region8: #{encode_image.1} parent=0 // loop_exit
    _

</llo_original>
